<compile_context>
chip_gen: v5e
topology: v5e:2x2
jax: 0.10.0
libtpu: 0.0.40
codegen_flags: <defaults>
</compile_context>

<pallas_src>
import jax
import jax.numpy as jnp
from jax.experimental import pallas as pl
from jax.experimental.pallas import tpu as pltpu

_K = 5
_PAD = 2
_CIN_PAD = 8          # pad the 3 RGB input channels to 8 (sublane-aligned)
_LEAKY = 0.2


# ----------------------------------------------------------------------------
# Fused DSEN kernel
# ----------------------------------------------------------------------------
def _build_dsen_kernel(n_re, H, W, K, pad):
    Hp, Wp = H + 2 * pad, W + 2 * pad
    LV = H * Wp                 # conv-output length (j = h*Wp + w), lane dim
    M = pad * Wp + pad          # offset of pixel (0,0) in the canonical layout
    # canonical activation length LA = M + LV + M (flattened padded image + margin)

    taps = [kh * Wp + kw for kh in range(K) for kw in range(K)]

    def conv(a, wmat):
        # a: (Cin, LA) canonical flat-padded activation; wmat: (Cout, K*K*Cin)
        # im2col: each tap is a contiguous lane slice -> single MXU matmul.
        patches = jnp.concatenate([a[:, off:off + LV] for off in taps], axis=0)
        return jnp.dot(wmat, patches, preferred_element_type=jnp.float32)

    def leaky(v):
        return jnp.where(v >= 0, v, _LEAKY * v)

    def kernel(*refs):
        (x_ref, mask_ref, w_pre_ref, b_pre_ref) = refs[0:4]
        re_refs = refs[4:4 + 2 * n_re]
        (d1w_ref, d1b_ref, sw1_ref, sb1_ref, sw2_ref, sb2_ref,
         d2w_ref, d2b_ref, o_ref) = refs[4 + 2 * n_re:]

        mask = mask_ref[...]                                   # (1, LV)
        C4 = w_pre_ref.shape[0]
        zpad = jnp.zeros((C4, M), jnp.float32)

        def embed(v):
            # (C4, LV) conv-output layout -> (C4, LA) canonical (zero pad ring)
            return jnp.concatenate([zpad, v * mask, zpad], axis=1)

        # --- pre_layer: P4ConvZ2(3 -> 4C) + LeakyReLU(0.2) -------------------
        a = x_ref[0].astype(jnp.float32)                       # (Cin_pad, LA)
        h = leaky(conv(a, w_pre_ref[...]) + b_pre_ref[...])    # (C4, LV)
        a = embed(h)

        # --- re_layers: P4ConvP4(4C -> 4C), residual add, LeakyReLU ----------
        for i in range(n_re):
            w_ref, b_ref = re_refs[2 * i], re_refs[2 * i + 1]
            res = a[:, M:M + LV]                               # residual slice (in VMEM)
            h = leaky(conv(a, w_ref[...]) + b_ref[...] + res)
            a = embed(h)

        # --- dec[0]: Conv2d(4C -> C, 5, pad=2) --------------------------------
        d = conv(a, d1w_ref[...]) + d1b_ref[...]               # (C, LV)

        # --- dec[1]: SEBlock (global avg pool -> FC -> ReLU -> FC -> sigmoid) -
        # FCs computed on the VPU via broadcast-multiply + sub/lane reduces.
        mean = jnp.sum(d * mask, axis=1, keepdims=True) * (1.0 / (H * W))  # (C,1)
        z = jnp.maximum(
            jnp.sum(sw1_ref[...] * mean, axis=0, keepdims=True) + sb1_ref[...],
            0.0)                                                           # (1,mid)
        s = jax.nn.sigmoid(
            jnp.sum(sw2_ref[...] * z, axis=1, keepdims=True) + sb2_ref[...])  # (C,1)

        # --- dec[2]: LeakyReLU(0.2) after SE scaling --------------------------
        d = leaky(d * s)

        # --- dec[3]: Conv2d(C -> 3, 1) ----------------------------------------
        out = jnp.dot(d2w_ref[...], d,
                      preferred_element_type=jnp.float32) + d2b_ref[...]   # (3, LV)
        o_ref[0] = out.astype(o_ref.dtype)

    return kernel


# ----------------------------------------------------------------------------
# Host-side weight expansion (p4 rotated filter banks -> dense conv matrices)
# Column convention matches the kernel's im2col rows: (kh*K + kw)*Cin + ci,
# with flattened group channels indexed c*4 + rotation (same as x.view()).
# ----------------------------------------------------------------------------
def p4_z2_wmat(w, b, cin_pad=None):
    """P4ConvZ2: w (Cout, Cin, K, K), b (Cout,) -> (Cout*4, K*K*Cin_pad), (Cout*4, 1)."""
    Cout, Cin, K, _ = w.shape
    ws = jnp.stack([jnp.rot90(w, k=s, axes=(2, 3)) for s in range(4)], axis=1)
    wm = jnp.transpose(ws, (0, 1, 3, 4, 2))                    # (Cout,4,K,K,Cin)
    if cin_pad is not None and cin_pad > Cin:
        wm = jnp.pad(wm, ((0, 0), (0, 0), (0, 0), (0, 0), (0, cin_pad - Cin)))
    cin_e = wm.shape[-1]
    return (wm.reshape(Cout * 4, K * K * cin_e),
            jnp.repeat(b, 4).reshape(Cout * 4, 1))


def p4_p4_wmat(w, b):
    """P4ConvP4: w (Cout, Cin, 4, K, K), b (Cout,) -> (Cout*4, K*K*Cin*4), (Cout*4, 1)."""
    Cout, Cin, _, K, _ = w.shape
    stacks = []
    for s in range(4):
        perm = [(r - s) % 4 for r in range(4)]  # cyclic shift of input-rotation axis
        stacks.append(jnp.rot90(w[:, :, perm, :, :], k=s, axes=(3, 4)))
    w4 = jnp.stack(stacks, axis=1)                             # (Cout,s,Cin,r,K,K)
    wm = jnp.transpose(w4, (0, 1, 4, 5, 2, 3))                 # (Cout,s,K,K,Cin,r)
    return (wm.reshape(Cout * 4, K * K * Cin * 4),
            jnp.repeat(b, 4).reshape(Cout * 4, 1))


def conv_wmat(w, b):
    """nn.Conv2d: w (Cout, Cin, K, K), b (Cout,) -> (Cout, K*K*Cin), (Cout, 1)."""
    Cout, Cin, K, _ = w.shape
    return (jnp.transpose(w, (0, 2, 3, 1)).reshape(Cout, K * K * Cin),
            b.reshape(Cout, 1))


# ----------------------------------------------------------------------------
# DSEN forward (wrapper)
# ----------------------------------------------------------------------------
def dsen_forward(x_nchw, params):
    K, pad = _K, _PAD
    N, Cin, H, W = x_nchw.shape
    Hp, Wp = H + 2 * pad, W + 2 * pad
    LV = H * Wp
    M = pad * Wp + pad
    LA = LV + 2 * M                                # = Hp*Wp + 2*pad
    n_re = len(params["re"])
    C = params["d1_w"].shape[0]
    C4 = params["pre_w"].shape[0]
    mid = params["se_w1"].shape[1]
    cin_pad = params["pre_w"].shape[1] // (K * K)

    # canonical flat-padded input, built ONCE on the tiny 3-channel input
    xp = jnp.pad(x_nchw, ((0, 0), (0, cin_pad - Cin), (pad, pad), (pad, pad)))
    xa = jnp.pad(xp.reshape(N, cin_pad, Hp * Wp),
                 ((0, 0), (0, 0), (0, LA - Hp * Wp)))          # (N, cin_pad, LA)

    # lane-validity mask: position j = h*Wp + w is a real pixel iff (j % Wp) < W
    mask = (jnp.arange(LV, dtype=jnp.int32) % Wp < W).astype(jnp.float32)
    mask = mask.reshape(1, LV)

    kernel = _build_dsen_kernel(n_re=n_re, H=H, W=W, K=K, pad=pad)

    def bcast2(arr):                               # weight blocks (same every step)
        return pl.BlockSpec(arr.shape, lambda n: (0, 0))

    args = [xa, mask, params["pre_w"], params["pre_b"]]
    in_specs = [
        pl.BlockSpec((1, cin_pad, LA), lambda n: (n, 0, 0)),
        bcast2(mask),
        bcast2(params["pre_w"]),
        bcast2(params["pre_b"]),
    ]
    for (w, b) in params["re"]:
        args += [w, b]
        in_specs += [bcast2(w), bcast2(b)]
    for name in ("d1_w", "d1_b", "se_w1", "se_b1", "se_w2", "se_b2",
                 "d2_w", "d2_b"):
        args.append(params[name])
        in_specs.append(bcast2(params[name]))

    out_flat = pl.pallas_call(
        kernel,
        out_shape=jax.ShapeDtypeStruct((N, 3, LV), x_nchw.dtype),
        grid=(N,),
        in_specs=in_specs,
        out_specs=pl.BlockSpec((1, 3, LV), lambda n: (n, 0, 0)),
        compiler_params=pltpu.CompilerParams(
            dimension_semantics=("parallel",)),    # shard batch across v7x TCs
    )(*args)

    # drop the Wp-pad garbage columns; reshape back to NCHW
    out = out_flat.reshape(N, 3, H, Wp)[:, :, :, :W]
    # PyTorch forward also computes `ori - x` but returns only oups = [dec output]
    return [out]


# ----------------------------------------------------------------------------
# Parameter init (random, torch-shaped tensors converted to kernel matrices)
# ----------------------------------------------------------------------------
def init_params(key, channel=8, depth=5):
    C = channel
    n_re = depth - 3
    keys = jax.random.split(key, 10 + 2 * n_re)

    def nrm(k, shape, scale=0.05):
        return scale * jax.random.normal(k, shape, jnp.float32)

    # P4ConvZ2(3, C, k=5)
    pre_w, pre_b = p4_z2_wmat(nrm(keys[0], (C, 3, _K, _K)),
                              nrm(keys[1], (C,)), cin_pad=_CIN_PAD)

    # P4ConvP4(C, C, k=5) x (depth - 3)
    re = []
    for i in range(n_re):
        w, b = p4_p4_wmat(nrm(keys[2 + 2 * i], (C, C, 4, _K, _K)),
                          nrm(keys[3 + 2 * i], (C,)))
        re.append((w, b))

    k = 2 + 2 * n_re
    # dec[0]: Conv2d(4C, C, 5, pad=2)
    d1_w, d1_b = conv_wmat(nrm(keys[k], (C, 4 * C, _K, _K)), nrm(keys[k + 1], (C,)))
    # SEBlock(C, C//2): fc = Linear(C, C//2) -> ReLU -> Linear(C//2, C) -> Sigmoid
    mid = C // 2
    se_w1 = jnp.transpose(nrm(keys[k + 2], (mid, C)))           # torch (mid,C) -> (C,mid)
    se_b1 = nrm(keys[k + 3], (mid,), 0.01).reshape(1, mid)
    se_w2 = nrm(keys[k + 4], (C, mid))                          # torch (C,mid) used as-is
    se_b2 = nrm(keys[k + 5], (C,), 0.01).reshape(C, 1)
    # dec[3]: Conv2d(C, 3, 1)
    d2_w, d2_b = conv_wmat(nrm(keys[k + 6], (3, C, 1, 1)), nrm(keys[k + 7], (3,)))

    return dict(pre_w=pre_w, pre_b=pre_b, re=re,
                d1_w=d1_w, d1_b=d1_b,
                se_w1=se_w1, se_b1=se_b1, se_w2=se_w2, se_b2=se_b2,
                d2_w=d2_w, d2_b=d2_b)


if __name__ == "__main__":
    key = jax.random.PRNGKey(0)
    kx, kp = jax.random.split(key)

    N, H, W = 2, 16, 16
    channel, depth = 8, 5

    x = jax.random.normal(kx, (N, 3, H, W), jnp.float32)   # NCHW like PyTorch input
    params = init_params(kp, channel=channel, depth=depth)

    oups = jax.jit(dsen_forward)(x, params)
    out = jax.block_until_ready(oups[0])
    assert out.shape == (N, 3, H, W), out.shape
    assert bool(jnp.isfinite(out).all())
    print("KERNEL_OK")
</pallas_src>

<mosaic_0001>
module attributes {stable_mosaic.version = 11 : i64} {
  func.func @kernel(%arg0: i32, %arg1: memref<1x8x404xf32, #tpu.memory_space<vmem>>, %arg2: memref<1x320xf32, #tpu.memory_space<vmem>>, %arg3: memref<32x200xf32, #tpu.memory_space<vmem>>, %arg4: memref<32x1xf32, #tpu.memory_space<vmem>>, %arg5: memref<32x800xf32, #tpu.memory_space<vmem>>, %arg6: memref<32x1xf32, #tpu.memory_space<vmem>>, %arg7: memref<32x800xf32, #tpu.memory_space<vmem>>, %arg8: memref<32x1xf32, #tpu.memory_space<vmem>>, %arg9: memref<8x800xf32, #tpu.memory_space<vmem>>, %arg10: memref<8x1xf32, #tpu.memory_space<vmem>>, %arg11: memref<8x4xf32, #tpu.memory_space<vmem>>, %arg12: memref<1x4xf32, #tpu.memory_space<vmem>>, %arg13: memref<8x4xf32, #tpu.memory_space<vmem>>, %arg14: memref<8x1xf32, #tpu.memory_space<vmem>>, %arg15: memref<3x8xf32, #tpu.memory_space<vmem>>, %arg16: memref<3x1xf32, #tpu.memory_space<vmem>>, %arg17: memref<1x3x320xf32, #tpu.memory_space<vmem>>) attributes {dimension_semantics = [#tpu.dimension_semantics<parallel>], iteration_bounds = array<i64: 2>, scalar_prefetch = 0 : i64, scratch_operands = 0 : i64, tpu.core_type = #tpu.core_type<tc>, window_params = [{transform_indices = @transform_0, window_bounds = array<i64: 1, 8, 404>}, {pipeline_mode = #tpu.pipeline_mode<synchronous>, transform_indices = @transform_1, window_bounds = array<i64: 1, 320>}, {pipeline_mode = #tpu.pipeline_mode<synchronous>, transform_indices = @transform_2, window_bounds = array<i64: 32, 200>}, {pipeline_mode = #tpu.pipeline_mode<synchronous>, transform_indices = @transform_3, window_bounds = array<i64: 32, 1>}, {pipeline_mode = #tpu.pipeline_mode<synchronous>, transform_indices = @transform_4, window_bounds = array<i64: 32, 800>}, {pipeline_mode = #tpu.pipeline_mode<synchronous>, transform_indices = @transform_5, window_bounds = array<i64: 32, 1>}, {pipeline_mode = #tpu.pipeline_mode<synchronous>, transform_indices = @transform_6, window_bounds = array<i64: 32, 800>}, {pipeline_mode = #tpu.pipeline_mode<synchronous>, transform_indices = @transform_7, window_bounds = array<i64: 32, 1>}, {pipeline_mode = #tpu.pipeline_mode<synchronous>, transform_indices = @transform_8, window_bounds = array<i64: 8, 800>}, {pipeline_mode = #tpu.pipeline_mode<synchronous>, transform_indices = @transform_9, window_bounds = array<i64: 8, 1>}, {pipeline_mode = #tpu.pipeline_mode<synchronous>, transform_indices = @transform_10, window_bounds = array<i64: 8, 4>}, {pipeline_mode = #tpu.pipeline_mode<synchronous>, transform_indices = @transform_11, window_bounds = array<i64: 1, 4>}, {pipeline_mode = #tpu.pipeline_mode<synchronous>, transform_indices = @transform_12, window_bounds = array<i64: 8, 4>}, {pipeline_mode = #tpu.pipeline_mode<synchronous>, transform_indices = @transform_13, window_bounds = array<i64: 8, 1>}, {pipeline_mode = #tpu.pipeline_mode<synchronous>, transform_indices = @transform_14, window_bounds = array<i64: 3, 8>}, {pipeline_mode = #tpu.pipeline_mode<synchronous>, transform_indices = @transform_15, window_bounds = array<i64: 3, 1>}, {transform_indices = @transform_16, window_bounds = array<i64: 1, 3, 320>}]} {
    %c0 = arith.constant 0 : index
    %c0_0 = arith.constant 0 : index
    %0 = vector.load %arg2[%c0, %c0_0] : memref<1x320xf32, #tpu.memory_space<vmem>>, vector<1x320xf32>
    %cst = arith.constant 0.000000e+00 : f32
    %1 = vector.broadcast %cst : f32 to vector<32x42xf32>
    %c0_1 = arith.constant 0 : index
    %c0_2 = arith.constant 0 : index
    %c0_3 = arith.constant 0 : index
    %2 = vector.load %arg1[%c0_1, %c0_2, %c0_3] : memref<1x8x404xf32, #tpu.memory_space<vmem>>, vector<1x8x404xf32>
    %3 = vector.shape_cast %2 : vector<1x8x404xf32> to vector<8x404xf32>
    %c0_4 = arith.constant 0 : index
    %c0_5 = arith.constant 0 : index
    %4 = vector.load %arg3[%c0_4, %c0_5] : memref<32x200xf32, #tpu.memory_space<vmem>>, vector<32x200xf32>
    %5 = vector.extract_strided_slice %3 {offsets = [0, 0], sizes = [8, 320], strides = [1, 1]} : vector<8x404xf32> to vector<8x320xf32>
    %6 = vector.extract_strided_slice %3 {offsets = [0, 1], sizes = [8, 320], strides = [1, 1]} : vector<8x404xf32> to vector<8x320xf32>
    %7 = vector.extract_strided_slice %3 {offsets = [0, 2], sizes = [8, 320], strides = [1, 1]} : vector<8x404xf32> to vector<8x320xf32>
    %8 = vector.extract_strided_slice %3 {offsets = [0, 3], sizes = [8, 320], strides = [1, 1]} : vector<8x404xf32> to vector<8x320xf32>
    %9 = vector.extract_strided_slice %3 {offsets = [0, 4], sizes = [8, 320], strides = [1, 1]} : vector<8x404xf32> to vector<8x320xf32>
    %10 = vector.extract_strided_slice %3 {offsets = [0, 20], sizes = [8, 320], strides = [1, 1]} : vector<8x404xf32> to vector<8x320xf32>
    %11 = vector.extract_strided_slice %3 {offsets = [0, 21], sizes = [8, 320], strides = [1, 1]} : vector<8x404xf32> to vector<8x320xf32>
    %12 = vector.extract_strided_slice %3 {offsets = [0, 22], sizes = [8, 320], strides = [1, 1]} : vector<8x404xf32> to vector<8x320xf32>
    %13 = vector.extract_strided_slice %3 {offsets = [0, 23], sizes = [8, 320], strides = [1, 1]} : vector<8x404xf32> to vector<8x320xf32>
    %14 = vector.extract_strided_slice %3 {offsets = [0, 24], sizes = [8, 320], strides = [1, 1]} : vector<8x404xf32> to vector<8x320xf32>
    %15 = vector.extract_strided_slice %3 {offsets = [0, 40], sizes = [8, 320], strides = [1, 1]} : vector<8x404xf32> to vector<8x320xf32>
    %16 = vector.extract_strided_slice %3 {offsets = [0, 41], sizes = [8, 320], strides = [1, 1]} : vector<8x404xf32> to vector<8x320xf32>
    %17 = vector.extract_strided_slice %3 {offsets = [0, 42], sizes = [8, 320], strides = [1, 1]} : vector<8x404xf32> to vector<8x320xf32>
    %18 = vector.extract_strided_slice %3 {offsets = [0, 43], sizes = [8, 320], strides = [1, 1]} : vector<8x404xf32> to vector<8x320xf32>
    %19 = vector.extract_strided_slice %3 {offsets = [0, 44], sizes = [8, 320], strides = [1, 1]} : vector<8x404xf32> to vector<8x320xf32>
    %20 = vector.extract_strided_slice %3 {offsets = [0, 60], sizes = [8, 320], strides = [1, 1]} : vector<8x404xf32> to vector<8x320xf32>
    %21 = vector.extract_strided_slice %3 {offsets = [0, 61], sizes = [8, 320], strides = [1, 1]} : vector<8x404xf32> to vector<8x320xf32>
    %22 = vector.extract_strided_slice %3 {offsets = [0, 62], sizes = [8, 320], strides = [1, 1]} : vector<8x404xf32> to vector<8x320xf32>
    %23 = vector.extract_strided_slice %3 {offsets = [0, 63], sizes = [8, 320], strides = [1, 1]} : vector<8x404xf32> to vector<8x320xf32>
    %24 = vector.extract_strided_slice %3 {offsets = [0, 64], sizes = [8, 320], strides = [1, 1]} : vector<8x404xf32> to vector<8x320xf32>
    %25 = vector.extract_strided_slice %3 {offsets = [0, 80], sizes = [8, 320], strides = [1, 1]} : vector<8x404xf32> to vector<8x320xf32>
    %26 = vector.extract_strided_slice %3 {offsets = [0, 81], sizes = [8, 320], strides = [1, 1]} : vector<8x404xf32> to vector<8x320xf32>
    %27 = vector.extract_strided_slice %3 {offsets = [0, 82], sizes = [8, 320], strides = [1, 1]} : vector<8x404xf32> to vector<8x320xf32>
    %28 = vector.extract_strided_slice %3 {offsets = [0, 83], sizes = [8, 320], strides = [1, 1]} : vector<8x404xf32> to vector<8x320xf32>
    %29 = vector.extract_strided_slice %3 {offsets = [0, 84], sizes = [8, 320], strides = [1, 1]} : vector<8x404xf32> to vector<8x320xf32>
    %30 = tpu.concatenate %5, %6, %7, %8, %9, %10, %11, %12, %13, %14, %15, %16, %17, %18, %19, %20 in 0 : vector<8x320xf32>, vector<8x320xf32>, vector<8x320xf32>, vector<8x320xf32>, vector<8x320xf32>, vector<8x320xf32>, vector<8x320xf32>, vector<8x320xf32>, vector<8x320xf32>, vector<8x320xf32>, vector<8x320xf32>, vector<8x320xf32>, vector<8x320xf32>, vector<8x320xf32>, vector<8x320xf32>, vector<8x320xf32> -> vector<128x320xf32>
    %31 = tpu.concatenate %21, %22, %23, %24, %25, %26, %27, %28, %29 in 0 : vector<8x320xf32>, vector<8x320xf32>, vector<8x320xf32>, vector<8x320xf32>, vector<8x320xf32>, vector<8x320xf32>, vector<8x320xf32>, vector<8x320xf32>, vector<8x320xf32> -> vector<72x320xf32>
    %32 = tpu.concatenate %30, %31 in 0 : vector<128x320xf32>, vector<72x320xf32> -> vector<200x320xf32>
    %cst_6 = arith.constant dense<0.000000e+00> : vector<32x320xf32>
    %33 = tpu.matmul %4, %32, %cst_6 {dimension_numbers = #tpu.dot_dimension_numbers<[1], [0], [0], [1], [0, 0, 1, 1], [], []>} : vector<32x200xf32>, vector<200x320xf32>, vector<32x320xf32> -> vector<32x320xf32>
    %c0_7 = arith.constant 0 : index
    %c0_8 = arith.constant 0 : index
    %34 = vector.load %arg4[%c0_7, %c0_8] : memref<32x1xf32, #tpu.memory_space<vmem>>, vector<32x1xf32>
    %35 = vector.broadcast %34 : vector<32x1xf32> to vector<32x320xf32>
    %36 = arith.addf %33, %35 : vector<32x320xf32>
    %cst_9 = arith.constant 0.000000e+00 : f32
    %37 = vector.broadcast %cst_9 : f32 to vector<32x320xf32>
    %38 = arith.cmpf oge, %36, %37 : vector<32x320xf32>
    %cst_10 = arith.constant 2.000000e-01 : f32
    %39 = vector.broadcast %cst_10 : f32 to vector<32x320xf32>
    %40 = arith.mulf %39, %36 : vector<32x320xf32>
    %41 = arith.select %38, %36, %40 : vector<32x320xi1>, vector<32x320xf32>
    %42 = vector.broadcast %0 : vector<1x320xf32> to vector<32x320xf32>
    %43 = arith.mulf %41, %42 : vector<32x320xf32>
    %44 = tpu.concatenate %1, %43, %1 in 1 : vector<32x42xf32>, vector<32x320xf32>, vector<32x42xf32> -> vector<32x404xf32>
    %45 = vector.extract_strided_slice %44 {offsets = [0, 42], sizes = [32, 320], strides = [1, 1]} : vector<32x404xf32> to vector<32x320xf32>
    %c0_11 = arith.constant 0 : index
    %c0_12 = arith.constant 0 : index
    %46 = vector.load %arg5[%c0_11, %c0_12] : memref<32x800xf32, #tpu.memory_space<vmem>>, vector<32x800xf32>
    %47 = vector.extract_strided_slice %44 {offsets = [0, 0], sizes = [32, 320], strides = [1, 1]} : vector<32x404xf32> to vector<32x320xf32>
    %48 = vector.extract_strided_slice %44 {offsets = [0, 1], sizes = [32, 320], strides = [1, 1]} : vector<32x404xf32> to vector<32x320xf32>
    %49 = vector.extract_strided_slice %44 {offsets = [0, 2], sizes = [32, 320], strides = [1, 1]} : vector<32x404xf32> to vector<32x320xf32>
    %50 = vector.extract_strided_slice %44 {offsets = [0, 3], sizes = [32, 320], strides = [1, 1]} : vector<32x404xf32> to vector<32x320xf32>
    %51 = vector.extract_strided_slice %44 {offsets = [0, 4], sizes = [32, 320], strides = [1, 1]} : vector<32x404xf32> to vector<32x320xf32>
    %52 = vector.extract_strided_slice %44 {offsets = [0, 20], sizes = [32, 320], strides = [1, 1]} : vector<32x404xf32> to vector<32x320xf32>
    %53 = vector.extract_strided_slice %44 {offsets = [0, 21], sizes = [32, 320], strides = [1, 1]} : vector<32x404xf32> to vector<32x320xf32>
    %54 = vector.extract_strided_slice %44 {offsets = [0, 22], sizes = [32, 320], strides = [1, 1]} : vector<32x404xf32> to vector<32x320xf32>
    %55 = vector.extract_strided_slice %44 {offsets = [0, 23], sizes = [32, 320], strides = [1, 1]} : vector<32x404xf32> to vector<32x320xf32>
    %56 = vector.extract_strided_slice %44 {offsets = [0, 24], sizes = [32, 320], strides = [1, 1]} : vector<32x404xf32> to vector<32x320xf32>
    %57 = vector.extract_strided_slice %44 {offsets = [0, 40], sizes = [32, 320], strides = [1, 1]} : vector<32x404xf32> to vector<32x320xf32>
    %58 = vector.extract_strided_slice %44 {offsets = [0, 41], sizes = [32, 320], strides = [1, 1]} : vector<32x404xf32> to vector<32x320xf32>
    %59 = vector.extract_strided_slice %44 {offsets = [0, 42], sizes = [32, 320], strides = [1, 1]} : vector<32x404xf32> to vector<32x320xf32>
    %60 = vector.extract_strided_slice %44 {offsets = [0, 43], sizes = [32, 320], strides = [1, 1]} : vector<32x404xf32> to vector<32x320xf32>
    %61 = vector.extract_strided_slice %44 {offsets = [0, 44], sizes = [32, 320], strides = [1, 1]} : vector<32x404xf32> to vector<32x320xf32>
    %62 = vector.extract_strided_slice %44 {offsets = [0, 60], sizes = [32, 320], strides = [1, 1]} : vector<32x404xf32> to vector<32x320xf32>
    %63 = vector.extract_strided_slice %44 {offsets = [0, 61], sizes = [32, 320], strides = [1, 1]} : vector<32x404xf32> to vector<32x320xf32>
    %64 = vector.extract_strided_slice %44 {offsets = [0, 62], sizes = [32, 320], strides = [1, 1]} : vector<32x404xf32> to vector<32x320xf32>
    %65 = vector.extract_strided_slice %44 {offsets = [0, 63], sizes = [32, 320], strides = [1, 1]} : vector<32x404xf32> to vector<32x320xf32>
    %66 = vector.extract_strided_slice %44 {offsets = [0, 64], sizes = [32, 320], strides = [1, 1]} : vector<32x404xf32> to vector<32x320xf32>
    %67 = vector.extract_strided_slice %44 {offsets = [0, 80], sizes = [32, 320], strides = [1, 1]} : vector<32x404xf32> to vector<32x320xf32>
    %68 = vector.extract_strided_slice %44 {offsets = [0, 81], sizes = [32, 320], strides = [1, 1]} : vector<32x404xf32> to vector<32x320xf32>
    %69 = vector.extract_strided_slice %44 {offsets = [0, 82], sizes = [32, 320], strides = [1, 1]} : vector<32x404xf32> to vector<32x320xf32>
    %70 = vector.extract_strided_slice %44 {offsets = [0, 83], sizes = [32, 320], strides = [1, 1]} : vector<32x404xf32> to vector<32x320xf32>
    %71 = vector.extract_strided_slice %44 {offsets = [0, 84], sizes = [32, 320], strides = [1, 1]} : vector<32x404xf32> to vector<32x320xf32>
    %72 = tpu.concatenate %47, %48, %49, %50, %51, %52, %53, %54, %55, %56, %57, %58, %59, %60, %61, %62 in 0 : vector<32x320xf32>, vector<32x320xf32>, vector<32x320xf32>, vector<32x320xf32>, vector<32x320xf32>, vector<32x320xf32>, vector<32x320xf32>, vector<32x320xf32>, vector<32x320xf32>, vector<32x320xf32>, vector<32x320xf32>, vector<32x320xf32>, vector<32x320xf32>, vector<32x320xf32>, vector<32x320xf32>, vector<32x320xf32> -> vector<512x320xf32>
    %73 = tpu.concatenate %63, %64, %65, %66, %67, %68, %69, %70, %71 in 0 : vector<32x320xf32>, vector<32x320xf32>, vector<32x320xf32>, vector<32x320xf32>, vector<32x320xf32>, vector<32x320xf32>, vector<32x320xf32>, vector<32x320xf32>, vector<32x320xf32> -> vector<288x320xf32>
    %74 = tpu.concatenate %72, %73 in 0 : vector<512x320xf32>, vector<288x320xf32> -> vector<800x320xf32>
    %cst_13 = arith.constant dense<0.000000e+00> : vector<32x320xf32>
    %75 = tpu.matmul %46, %74, %cst_13 {dimension_numbers = #tpu.dot_dimension_numbers<[1], [0], [0], [1], [0, 0, 1, 1], [], []>} : vector<32x800xf32>, vector<800x320xf32>, vector<32x320xf32> -> vector<32x320xf32>
    %c0_14 = arith.constant 0 : index
    %c0_15 = arith.constant 0 : index
    %76 = vector.load %arg6[%c0_14, %c0_15] : memref<32x1xf32, #tpu.memory_space<vmem>>, vector<32x1xf32>
    %77 = vector.broadcast %76 : vector<32x1xf32> to vector<32x320xf32>
    %78 = arith.addf %75, %77 : vector<32x320xf32>
    %79 = arith.addf %78, %45 : vector<32x320xf32>
    %cst_16 = arith.constant 0.000000e+00 : f32
    %80 = vector.broadcast %cst_16 : f32 to vector<32x320xf32>
    %81 = arith.cmpf oge, %79, %80 : vector<32x320xf32>
    %cst_17 = arith.constant 2.000000e-01 : f32
    %82 = vector.broadcast %cst_17 : f32 to vector<32x320xf32>
    %83 = arith.mulf %82, %79 : vector<32x320xf32>
    %84 = arith.select %81, %79, %83 : vector<32x320xi1>, vector<32x320xf32>
    %85 = vector.broadcast %0 : vector<1x320xf32> to vector<32x320xf32>
    %86 = arith.mulf %84, %85 : vector<32x320xf32>
    %87 = tpu.concatenate %1, %86, %1 in 1 : vector<32x42xf32>, vector<32x320xf32>, vector<32x42xf32> -> vector<32x404xf32>
    %88 = vector.extract_strided_slice %87 {offsets = [0, 42], sizes = [32, 320], strides = [1, 1]} : vector<32x404xf32> to vector<32x320xf32>
    %c0_18 = arith.constant 0 : index
    %c0_19 = arith.constant 0 : index
    %89 = vector.load %arg7[%c0_18, %c0_19] : memref<32x800xf32, #tpu.memory_space<vmem>>, vector<32x800xf32>
    %90 = vector.extract_strided_slice %87 {offsets = [0, 0], sizes = [32, 320], strides = [1, 1]} : vector<32x404xf32> to vector<32x320xf32>
    %91 = vector.extract_strided_slice %87 {offsets = [0, 1], sizes = [32, 320], strides = [1, 1]} : vector<32x404xf32> to vector<32x320xf32>
    %92 = vector.extract_strided_slice %87 {offsets = [0, 2], sizes = [32, 320], strides = [1, 1]} : vector<32x404xf32> to vector<32x320xf32>
    %93 = vector.extract_strided_slice %87 {offsets = [0, 3], sizes = [32, 320], strides = [1, 1]} : vector<32x404xf32> to vector<32x320xf32>
    %94 = vector.extract_strided_slice %87 {offsets = [0, 4], sizes = [32, 320], strides = [1, 1]} : vector<32x404xf32> to vector<32x320xf32>
    %95 = vector.extract_strided_slice %87 {offsets = [0, 20], sizes = [32, 320], strides = [1, 1]} : vector<32x404xf32> to vector<32x320xf32>
    %96 = vector.extract_strided_slice %87 {offsets = [0, 21], sizes = [32, 320], strides = [1, 1]} : vector<32x404xf32> to vector<32x320xf32>
    %97 = vector.extract_strided_slice %87 {offsets = [0, 22], sizes = [32, 320], strides = [1, 1]} : vector<32x404xf32> to vector<32x320xf32>
    %98 = vector.extract_strided_slice %87 {offsets = [0, 23], sizes = [32, 320], strides = [1, 1]} : vector<32x404xf32> to vector<32x320xf32>
    %99 = vector.extract_strided_slice %87 {offsets = [0, 24], sizes = [32, 320], strides = [1, 1]} : vector<32x404xf32> to vector<32x320xf32>
    %100 = vector.extract_strided_slice %87 {offsets = [0, 40], sizes = [32, 320], strides = [1, 1]} : vector<32x404xf32> to vector<32x320xf32>
    %101 = vector.extract_strided_slice %87 {offsets = [0, 41], sizes = [32, 320], strides = [1, 1]} : vector<32x404xf32> to vector<32x320xf32>
    %102 = vector.extract_strided_slice %87 {offsets = [0, 42], sizes = [32, 320], strides = [1, 1]} : vector<32x404xf32> to vector<32x320xf32>
    %103 = vector.extract_strided_slice %87 {offsets = [0, 43], sizes = [32, 320], strides = [1, 1]} : vector<32x404xf32> to vector<32x320xf32>
    %104 = vector.extract_strided_slice %87 {offsets = [0, 44], sizes = [32, 320], strides = [1, 1]} : vector<32x404xf32> to vector<32x320xf32>
    %105 = vector.extract_strided_slice %87 {offsets = [0, 60], sizes = [32, 320], strides = [1, 1]} : vector<32x404xf32> to vector<32x320xf32>
    %106 = vector.extract_strided_slice %87 {offsets = [0, 61], sizes = [32, 320], strides = [1, 1]} : vector<32x404xf32> to vector<32x320xf32>
    %107 = vector.extract_strided_slice %87 {offsets = [0, 62], sizes = [32, 320], strides = [1, 1]} : vector<32x404xf32> to vector<32x320xf32>
    %108 = vector.extract_strided_slice %87 {offsets = [0, 63], sizes = [32, 320], strides = [1, 1]} : vector<32x404xf32> to vector<32x320xf32>
    %109 = vector.extract_strided_slice %87 {offsets = [0, 64], sizes = [32, 320], strides = [1, 1]} : vector<32x404xf32> to vector<32x320xf32>
    %110 = vector.extract_strided_slice %87 {offsets = [0, 80], sizes = [32, 320], strides = [1, 1]} : vector<32x404xf32> to vector<32x320xf32>
    %111 = vector.extract_strided_slice %87 {offsets = [0, 81], sizes = [32, 320], strides = [1, 1]} : vector<32x404xf32> to vector<32x320xf32>
    %112 = vector.extract_strided_slice %87 {offsets = [0, 82], sizes = [32, 320], strides = [1, 1]} : vector<32x404xf32> to vector<32x320xf32>
    %113 = vector.extract_strided_slice %87 {offsets = [0, 83], sizes = [32, 320], strides = [1, 1]} : vector<32x404xf32> to vector<32x320xf32>
    %114 = vector.extract_strided_slice %87 {offsets = [0, 84], sizes = [32, 320], strides = [1, 1]} : vector<32x404xf32> to vector<32x320xf32>
    %115 = tpu.concatenate %90, %91, %92, %93, %94, %95, %96, %97, %98, %99, %100, %101, %102, %103, %104, %105 in 0 : vector<32x320xf32>, vector<32x320xf32>, vector<32x320xf32>, vector<32x320xf32>, vector<32x320xf32>, vector<32x320xf32>, vector<32x320xf32>, vector<32x320xf32>, vector<32x320xf32>, vector<32x320xf32>, vector<32x320xf32>, vector<32x320xf32>, vector<32x320xf32>, vector<32x320xf32>, vector<32x320xf32>, vector<32x320xf32> -> vector<512x320xf32>
    %116 = tpu.concatenate %106, %107, %108, %109, %110, %111, %112, %113, %114 in 0 : vector<32x320xf32>, vector<32x320xf32>, vector<32x320xf32>, vector<32x320xf32>, vector<32x320xf32>, vector<32x320xf32>, vector<32x320xf32>, vector<32x320xf32>, vector<32x320xf32> -> vector<288x320xf32>
    %117 = tpu.concatenate %115, %116 in 0 : vector<512x320xf32>, vector<288x320xf32> -> vector<800x320xf32>
    %cst_20 = arith.constant dense<0.000000e+00> : vector<32x320xf32>
    %118 = tpu.matmul %89, %117, %cst_20 {dimension_numbers = #tpu.dot_dimension_numbers<[1], [0], [0], [1], [0, 0, 1, 1], [], []>} : vector<32x800xf32>, vector<800x320xf32>, vector<32x320xf32> -> vector<32x320xf32>
    %c0_21 = arith.constant 0 : index
    %c0_22 = arith.constant 0 : index
    %119 = vector.load %arg8[%c0_21, %c0_22] : memref<32x1xf32, #tpu.memory_space<vmem>>, vector<32x1xf32>
    %120 = vector.broadcast %119 : vector<32x1xf32> to vector<32x320xf32>
    %121 = arith.addf %118, %120 : vector<32x320xf32>
    %122 = arith.addf %121, %88 : vector<32x320xf32>
    %cst_23 = arith.constant 0.000000e+00 : f32
    %123 = vector.broadcast %cst_23 : f32 to vector<32x320xf32>
    %124 = arith.cmpf oge, %122, %123 : vector<32x320xf32>
    %cst_24 = arith.constant 2.000000e-01 : f32
    %125 = vector.broadcast %cst_24 : f32 to vector<32x320xf32>
    %126 = arith.mulf %125, %122 : vector<32x320xf32>
    %127 = arith.select %124, %122, %126 : vector<32x320xi1>, vector<32x320xf32>
    %128 = vector.broadcast %0 : vector<1x320xf32> to vector<32x320xf32>
    %129 = arith.mulf %127, %128 : vector<32x320xf32>
    %130 = tpu.concatenate %1, %129, %1 in 1 : vector<32x42xf32>, vector<32x320xf32>, vector<32x42xf32> -> vector<32x404xf32>
    %c0_25 = arith.constant 0 : index
    %c0_26 = arith.constant 0 : index
    %131 = vector.load %arg9[%c0_25, %c0_26] : memref<8x800xf32, #tpu.memory_space<vmem>>, vector<8x800xf32>
    %132 = vector.extract_strided_slice %130 {offsets = [0, 0], sizes = [32, 320], strides = [1, 1]} : vector<32x404xf32> to vector<32x320xf32>
    %133 = vector.extract_strided_slice %130 {offsets = [0, 1], sizes = [32, 320], strides = [1, 1]} : vector<32x404xf32> to vector<32x320xf32>
    %134 = vector.extract_strided_slice %130 {offsets = [0, 2], sizes = [32, 320], strides = [1, 1]} : vector<32x404xf32> to vector<32x320xf32>
    %135 = vector.extract_strided_slice %130 {offsets = [0, 3], sizes = [32, 320], strides = [1, 1]} : vector<32x404xf32> to vector<32x320xf32>
    %136 = vector.extract_strided_slice %130 {offsets = [0, 4], sizes = [32, 320], strides = [1, 1]} : vector<32x404xf32> to vector<32x320xf32>
    %137 = vector.extract_strided_slice %130 {offsets = [0, 20], sizes = [32, 320], strides = [1, 1]} : vector<32x404xf32> to vector<32x320xf32>
    %138 = vector.extract_strided_slice %130 {offsets = [0, 21], sizes = [32, 320], strides = [1, 1]} : vector<32x404xf32> to vector<32x320xf32>
    %139 = vector.extract_strided_slice %130 {offsets = [0, 22], sizes = [32, 320], strides = [1, 1]} : vector<32x404xf32> to vector<32x320xf32>
    %140 = vector.extract_strided_slice %130 {offsets = [0, 23], sizes = [32, 320], strides = [1, 1]} : vector<32x404xf32> to vector<32x320xf32>
    %141 = vector.extract_strided_slice %130 {offsets = [0, 24], sizes = [32, 320], strides = [1, 1]} : vector<32x404xf32> to vector<32x320xf32>
    %142 = vector.extract_strided_slice %130 {offsets = [0, 40], sizes = [32, 320], strides = [1, 1]} : vector<32x404xf32> to vector<32x320xf32>
    %143 = vector.extract_strided_slice %130 {offsets = [0, 41], sizes = [32, 320], strides = [1, 1]} : vector<32x404xf32> to vector<32x320xf32>
    %144 = vector.extract_strided_slice %130 {offsets = [0, 42], sizes = [32, 320], strides = [1, 1]} : vector<32x404xf32> to vector<32x320xf32>
    %145 = vector.extract_strided_slice %130 {offsets = [0, 43], sizes = [32, 320], strides = [1, 1]} : vector<32x404xf32> to vector<32x320xf32>
    %146 = vector.extract_strided_slice %130 {offsets = [0, 44], sizes = [32, 320], strides = [1, 1]} : vector<32x404xf32> to vector<32x320xf32>
    %147 = vector.extract_strided_slice %130 {offsets = [0, 60], sizes = [32, 320], strides = [1, 1]} : vector<32x404xf32> to vector<32x320xf32>
    %148 = vector.extract_strided_slice %130 {offsets = [0, 61], sizes = [32, 320], strides = [1, 1]} : vector<32x404xf32> to vector<32x320xf32>
    %149 = vector.extract_strided_slice %130 {offsets = [0, 62], sizes = [32, 320], strides = [1, 1]} : vector<32x404xf32> to vector<32x320xf32>
    %150 = vector.extract_strided_slice %130 {offsets = [0, 63], sizes = [32, 320], strides = [1, 1]} : vector<32x404xf32> to vector<32x320xf32>
    %151 = vector.extract_strided_slice %130 {offsets = [0, 64], sizes = [32, 320], strides = [1, 1]} : vector<32x404xf32> to vector<32x320xf32>
    %152 = vector.extract_strided_slice %130 {offsets = [0, 80], sizes = [32, 320], strides = [1, 1]} : vector<32x404xf32> to vector<32x320xf32>
    %153 = vector.extract_strided_slice %130 {offsets = [0, 81], sizes = [32, 320], strides = [1, 1]} : vector<32x404xf32> to vector<32x320xf32>
    %154 = vector.extract_strided_slice %130 {offsets = [0, 82], sizes = [32, 320], strides = [1, 1]} : vector<32x404xf32> to vector<32x320xf32>
    %155 = vector.extract_strided_slice %130 {offsets = [0, 83], sizes = [32, 320], strides = [1, 1]} : vector<32x404xf32> to vector<32x320xf32>
    %156 = vector.extract_strided_slice %130 {offsets = [0, 84], sizes = [32, 320], strides = [1, 1]} : vector<32x404xf32> to vector<32x320xf32>
    %157 = tpu.concatenate %132, %133, %134, %135, %136, %137, %138, %139, %140, %141, %142, %143, %144, %145, %146, %147 in 0 : vector<32x320xf32>, vector<32x320xf32>, vector<32x320xf32>, vector<32x320xf32>, vector<32x320xf32>, vector<32x320xf32>, vector<32x320xf32>, vector<32x320xf32>, vector<32x320xf32>, vector<32x320xf32>, vector<32x320xf32>, vector<32x320xf32>, vector<32x320xf32>, vector<32x320xf32>, vector<32x320xf32>, vector<32x320xf32> -> vector<512x320xf32>
    %158 = tpu.concatenate %148, %149, %150, %151, %152, %153, %154, %155, %156 in 0 : vector<32x320xf32>, vector<32x320xf32>, vector<32x320xf32>, vector<32x320xf32>, vector<32x320xf32>, vector<32x320xf32>, vector<32x320xf32>, vector<32x320xf32>, vector<32x320xf32> -> vector<288x320xf32>
    %159 = tpu.concatenate %157, %158 in 0 : vector<512x320xf32>, vector<288x320xf32> -> vector<800x320xf32>
    %cst_27 = arith.constant dense<0.000000e+00> : vector<8x320xf32>
    %160 = tpu.matmul %131, %159, %cst_27 {dimension_numbers = #tpu.dot_dimension_numbers<[1], [0], [0], [1], [0, 0, 1, 1], [], []>} : vector<8x800xf32>, vector<800x320xf32>, vector<8x320xf32> -> vector<8x320xf32>
    %c0_28 = arith.constant 0 : index
    %c0_29 = arith.constant 0 : index
    %161 = vector.load %arg10[%c0_28, %c0_29] : memref<8x1xf32, #tpu.memory_space<vmem>>, vector<8x1xf32>
    %162 = vector.broadcast %161 : vector<8x1xf32> to vector<8x320xf32>
    %163 = arith.addf %160, %162 : vector<8x320xf32>
    %164 = vector.broadcast %0 : vector<1x320xf32> to vector<8x320xf32>
    %165 = arith.mulf %163, %164 : vector<8x320xf32>
    %cst_30 = arith.constant dense<0.000000e+00> : vector<8xf32>
    %166 = vector.multi_reduction <add>, %165, %cst_30 [1] : vector<8x320xf32> to vector<8xf32>
    %167 = vector.shape_cast %166 : vector<8xf32> to vector<8x1xf32>
    %cst_31 = arith.constant 3.906250e-03 : f32
    %168 = vector.broadcast %cst_31 : f32 to vector<8x1xf32>
    %169 = arith.mulf %167, %168 : vector<8x1xf32>
    %c0_32 = arith.constant 0 : index
    %c0_33 = arith.constant 0 : index
    %170 = vector.load %arg11[%c0_32, %c0_33] : memref<8x4xf32, #tpu.memory_space<vmem>>, vector<8x4xf32>
    %171 = vector.broadcast %169 : vector<8x1xf32> to vector<8x4xf32>
    %172 = arith.mulf %170, %171 : vector<8x4xf32>
    %cst_34 = arith.constant dense<0.000000e+00> : vector<4xf32>
    %173 = vector.multi_reduction <add>, %172, %cst_34 [0] : vector<8x4xf32> to vector<4xf32>
    %174 = vector.shape_cast %173 : vector<4xf32> to vector<1x4xf32>
    %c0_35 = arith.constant 0 : index
    %c0_36 = arith.constant 0 : index
    %175 = vector.load %arg12[%c0_35, %c0_36] : memref<1x4xf32, #tpu.memory_space<vmem>>, vector<1x4xf32>
    %176 = arith.addf %174, %175 : vector<1x4xf32>
    %cst_37 = arith.constant 0.000000e+00 : f32
    %177 = vector.broadcast %cst_37 : f32 to vector<1x4xf32>
    %178 = arith.maximumf %176, %177 : vector<1x4xf32>
    %c0_38 = arith.constant 0 : index
    %c0_39 = arith.constant 0 : index
    %179 = vector.load %arg13[%c0_38, %c0_39] : memref<8x4xf32, #tpu.memory_space<vmem>>, vector<8x4xf32>
    %180 = vector.broadcast %178 : vector<1x4xf32> to vector<8x4xf32>
    %181 = arith.mulf %179, %180 : vector<8x4xf32>
    %cst_40 = arith.constant dense<0.000000e+00> : vector<8xf32>
    %182 = vector.multi_reduction <add>, %181, %cst_40 [1] : vector<8x4xf32> to vector<8xf32>
    %183 = vector.shape_cast %182 : vector<8xf32> to vector<8x1xf32>
    %c0_41 = arith.constant 0 : index
    %c0_42 = arith.constant 0 : index
    %184 = vector.load %arg14[%c0_41, %c0_42] : memref<8x1xf32, #tpu.memory_space<vmem>>, vector<8x1xf32>
    %185 = arith.addf %183, %184 : vector<8x1xf32>
    %186 = arith.negf %185 : vector<8x1xf32>
    %187 = math.exp %186 : vector<8x1xf32>
    %cst_43 = arith.constant 1.000000e+00 : f32
    %188 = vector.broadcast %cst_43 : f32 to vector<8x1xf32>
    %189 = arith.addf %188, %187 : vector<8x1xf32>
    %190 = arith.divf %188, %189 : vector<8x1xf32>
    %191 = vector.broadcast %190 : vector<8x1xf32> to vector<8x320xf32>
    %192 = arith.mulf %163, %191 : vector<8x320xf32>
    %cst_44 = arith.constant 0.000000e+00 : f32
    %193 = vector.broadcast %cst_44 : f32 to vector<8x320xf32>
    %194 = arith.cmpf oge, %192, %193 : vector<8x320xf32>
    %cst_45 = arith.constant 2.000000e-01 : f32
    %195 = vector.broadcast %cst_45 : f32 to vector<8x320xf32>
    %196 = arith.mulf %195, %192 : vector<8x320xf32>
    %197 = arith.select %194, %192, %196 : vector<8x320xi1>, vector<8x320xf32>
    %c0_46 = arith.constant 0 : index
    %c0_47 = arith.constant 0 : index
    %198 = vector.load %arg15[%c0_46, %c0_47] : memref<3x8xf32, #tpu.memory_space<vmem>>, vector<3x8xf32>
    %cst_48 = arith.constant dense<0.000000e+00> : vector<3x320xf32>
    %199 = tpu.matmul %198, %197, %cst_48 {dimension_numbers = #tpu.dot_dimension_numbers<[1], [0], [0], [1], [0, 0, 1, 1], [], []>} : vector<3x8xf32>, vector<8x320xf32>, vector<3x320xf32> -> vector<3x320xf32>
    %c0_49 = arith.constant 0 : index
    %c0_50 = arith.constant 0 : index
    %200 = vector.load %arg16[%c0_49, %c0_50] : memref<3x1xf32, #tpu.memory_space<vmem>>, vector<3x1xf32>
    %201 = vector.broadcast %200 : vector<3x1xf32> to vector<3x320xf32>
    %202 = arith.addf %199, %201 : vector<3x320xf32>
    %c0_51 = arith.constant 0 : index
    %c0_52 = arith.constant 0 : index
    %c0_53 = arith.constant 0 : index
    %203 = vector.load %arg17[%c0_51, %c0_52, %c0_53] : memref<1x3x320xf32, #tpu.memory_space<vmem>>, vector<1x3x320xf32>
    %204 = vector.shape_cast %203 : vector<1x3x320xf32> to vector<3x320xf32>
    %205 = vector.shape_cast %202 : vector<3x320xf32> to vector<1x3x320xf32>
    tpu.vector_store %arg17[%c0_51, %c0_52, %c0_53], %205 {strides = array<i32>} : memref<1x3x320xf32, #tpu.memory_space<vmem>>, vector<1x3x320xf32>,
    return
  }
  func.func @transform_0(%arg0: i32) -> (i32, i32, i32) {
    %c0_i32 = arith.constant 0 : i32
    %c0_i32_0 = arith.constant 0 : i32
    %c0_i32_1 = arith.constant 0 : i32
    return %arg0, %c0_i32, %c0_i32_0 : i32, i32, i32
  }
  func.func @transform_1(%arg0: i32) -> (i32, i32) {
    %c0_i32 = arith.constant 0 : i32
    %c0_i32_0 = arith.constant 0 : i32
    %c0_i32_1 = arith.constant 0 : i32
    return %c0_i32, %c0_i32_0 : i32, i32
  }
  func.func @transform_2(%arg0: i32) -> (i32, i32) {
    %c0_i32 = arith.constant 0 : i32
    %c0_i32_0 = arith.constant 0 : i32
    %c0_i32_1 = arith.constant 0 : i32
    return %c0_i32, %c0_i32_0 : i32, i32
  }
  func.func @transform_3(%arg0: i32) -> (i32, i32) {
    %c0_i32 = arith.constant 0 : i32
    %c0_i32_0 = arith.constant 0 : i32
    %c0_i32_1 = arith.constant 0 : i32
    return %c0_i32, %c0_i32_0 : i32, i32
  }
  func.func @transform_4(%arg0: i32) -> (i32, i32) {
    %c0_i32 = arith.constant 0 : i32
    %c0_i32_0 = arith.constant 0 : i32
    %c0_i32_1 = arith.constant 0 : i32
    return %c0_i32, %c0_i32_0 : i32, i32
  }
  func.func @transform_5(%arg0: i32) -> (i32, i32) {
    %c0_i32 = arith.constant 0 : i32
    %c0_i32_0 = arith.constant 0 : i32
    %c0_i32_1 = arith.constant 0 : i32
    return %c0_i32, %c0_i32_0 : i32, i32
  }
  func.func @transform_6(%arg0: i32) -> (i32, i32) {
    %c0_i32 = arith.constant 0 : i32
    %c0_i32_0 = arith.constant 0 : i32
    %c0_i32_1 = arith.constant 0 : i32
    return %c0_i32, %c0_i32_0 : i32, i32
  }
  func.func @transform_7(%arg0: i32) -> (i32, i32) {
    %c0_i32 = arith.constant 0 : i32
    %c0_i32_0 = arith.constant 0 : i32
    %c0_i32_1 = arith.constant 0 : i32
    return %c0_i32, %c0_i32_0 : i32, i32
  }
  func.func @transform_8(%arg0: i32) -> (i32, i32) {
    %c0_i32 = arith.constant 0 : i32
    %c0_i32_0 = arith.constant 0 : i32
    %c0_i32_1 = arith.constant 0 : i32
    return %c0_i32, %c0_i32_0 : i32, i32
  }
  func.func @transform_9(%arg0: i32) -> (i32, i32) {
    %c0_i32 = arith.constant 0 : i32
    %c0_i32_0 = arith.constant 0 : i32
    %c0_i32_1 = arith.constant 0 : i32
    return %c0_i32, %c0_i32_0 : i32, i32
  }
  func.func @transform_10(%arg0: i32) -> (i32, i32) {
    %c0_i32 = arith.constant 0 : i32
    %c0_i32_0 = arith.constant 0 : i32
    %c0_i32_1 = arith.constant 0 : i32
    return %c0_i32, %c0_i32_0 : i32, i32
  }
  func.func @transform_11(%arg0: i32) -> (i32, i32) {
    %c0_i32 = arith.constant 0 : i32
    %c0_i32_0 = arith.constant 0 : i32
    %c0_i32_1 = arith.constant 0 : i32
    return %c0_i32, %c0_i32_0 : i32, i32
  }
  func.func @transform_12(%arg0: i32) -> (i32, i32) {
    %c0_i32 = arith.constant 0 : i32
    %c0_i32_0 = arith.constant 0 : i32
    %c0_i32_1 = arith.constant 0 : i32
    return %c0_i32, %c0_i32_0 : i32, i32
  }
  func.func @transform_13(%arg0: i32) -> (i32, i32) {
    %c0_i32 = arith.constant 0 : i32
    %c0_i32_0 = arith.constant 0 : i32
    %c0_i32_1 = arith.constant 0 : i32
    return %c0_i32, %c0_i32_0 : i32, i32
  }
  func.func @transform_14(%arg0: i32) -> (i32, i32) {
    %c0_i32 = arith.constant 0 : i32
    %c0_i32_0 = arith.constant 0 : i32
    %c0_i32_1 = arith.constant 0 : i32
    return %c0_i32, %c0_i32_0 : i32, i32
  }
  func.func @transform_15(%arg0: i32) -> (i32, i32) {
    %c0_i32 = arith.constant 0 : i32
    %c0_i32_0 = arith.constant 0 : i32
    %c0_i32_1 = arith.constant 0 : i32
    return %c0_i32, %c0_i32_0 : i32, i32
  }
  func.func @transform_16(%arg0: i32) -> (i32, i32, i32) {
    %c0_i32 = arith.constant 0 : i32
    %c0_i32_0 = arith.constant 0 : i32
    %c0_i32_1 = arith.constant 0 : i32
    return %arg0, %c0_i32, %c0_i32_0 : i32, i32, i32
  }
}

</mosaic_0001>

<llo_original>
// kernel: dsen_forward.1
$region0: #{dsen_forward.1}
  #allocation0 [shape = 'u32[]', space=smem, size = 0x4, offset = 0x4, fixed_abs, tag = 'smem constant byte address 0x4 - core index']
  #allocation1 [shape = 'u32[72,128]{1,0:T(1,128)}', space=vmem, size = 0x9000, scoped, tag = 'internal scratch']
  %s0 = inlined_call_operand.vmem [shape: f32[2,8,404], index: 0, kind: input, shape index: {}]
  %s1 = inlined_call_operand.vmem [shape: f32[1,320], index: 1, kind: input, shape index: {}]
  %s2 = inlined_call_operand.vmem [shape: f32[32,200], index: 2, kind: input, shape index: {}]
  %s3 = inlined_call_operand.vmem [shape: f32[32,1], index: 3, kind: input, shape index: {}]
  %s4 = inlined_call_operand.vmem [shape: f32[32,800], index: 4, kind: input, shape index: {}]
  %s5 = inlined_call_operand.vmem [shape: f32[32,1], index: 5, kind: input, shape index: {}]
  %s6 = inlined_call_operand.vmem [shape: f32[32,800], index: 6, kind: input, shape index: {}]
  %s7 = inlined_call_operand.vmem [shape: f32[32,1], index: 7, kind: input, shape index: {}]
  %s8 = inlined_call_operand.vmem [shape: f32[8,800], index: 8, kind: input, shape index: {}]
  %s9 = inlined_call_operand.vmem [shape: f32[8,1], index: 9, kind: input, shape index: {}]
  %s10 = inlined_call_operand.vmem [shape: f32[8,4], index: 10, kind: input, shape index: {}]
  %s11 = inlined_call_operand.vmem [shape: f32[1,4], index: 11, kind: input, shape index: {}]
  %s12 = inlined_call_operand.vmem [shape: f32[8,4], index: 12, kind: input, shape index: {}]
  %s13 = inlined_call_operand.vmem [shape: f32[8,1], index: 13, kind: input, shape index: {}]
  %s14 = inlined_call_operand.vmem [shape: f32[3,8], index: 14, kind: input, shape index: {}]
  %s15 = inlined_call_operand.vmem [shape: f32[3,1], index: 15, kind: input, shape index: {}]
  %s16 = inlined_call_operand.vmem [shape: f32[2,3,320], index: 16, kind: output, shape index: {}]
  %s17 = sld [smem:[#allocation0]]
  $region97: #{dsen_forward.1} parent=0
    _
  %s19 = ssub.s32 1, %s17
  %s20 = scalar_select 0, %s19, %s17
  loop: start=0, step=1, limit=4
  $region2: #{dsen_forward.1} parent=0 // loop_pre_header
    _
  $region3: #{dsen_forward.1} parent=0 // loop_header
    %s22 = sphi 0, %s26
    %p23 = scmp.ge.s32.totalorder %s22, 4
    %s32 = sphi 0, %s34
    %s35 = sphi 0, %s32
    %s36 = sphi 0, %s35
    %s52 = sphi 0, %s36
    %s56 = sphi 0, %s56
    %s58 = sphi 0, %s56
    %s59 = sphi 0, %s58
    %s73 = sphi 0, %s59
    %s77 = sphi 0, %s77
    %s79 = sphi 0, %s77
    %s80 = sphi 0, %s79
    %s94 = sphi 0, %s80
    %s98 = sphi 0, %s98
    %s100 = sphi 0, %s98
    %s101 = sphi 0, %s100
    %s115 = sphi 0, %s101
    %s119 = sphi 0, %s119
    %s121 = sphi 0, %s119
    %s122 = sphi 0, %s121
    %s136 = sphi 0, %s122
    %s140 = sphi 0, %s140
    %s142 = sphi 0, %s140
    %s143 = sphi 0, %s142
    %s157 = sphi 0, %s143
    %s161 = sphi 0, %s161
    %s163 = sphi 0, %s161
    %s164 = sphi 0, %s163
    %s178 = sphi 0, %s164
    %s182 = sphi 0, %s182
    %s184 = sphi 0, %s182
    %s185 = sphi 0, %s184
    %s199 = sphi 0, %s185
    %s203 = sphi 0, %s203
    %s205 = sphi 0, %s203
    %s206 = sphi 0, %s205
    %s220 = sphi 0, %s206
    %s224 = sphi 0, %s224
    %s226 = sphi 0, %s224
    %s227 = sphi 0, %s226
    %s241 = sphi 0, %s227
    %s245 = sphi 0, %s245
    %s247 = sphi 0, %s245
    %s248 = sphi 0, %s247
    %s262 = sphi 0, %s248
    %s266 = sphi 0, %s266
    %s268 = sphi 0, %s266
    %s269 = sphi 0, %s268
    %s283 = sphi 0, %s269
    %s287 = sphi 0, %s287
    %s289 = sphi 0, %s287
    %s290 = sphi 0, %s289
    %s304 = sphi 0, %s290
    %s308 = sphi 0, %s308
    %s310 = sphi 0, %s308
    %s311 = sphi 0, %s310
    %s325 = sphi 0, %s311
    %s329 = sphi 0, %s329
    %s331 = sphi 0, %s329
    %s332 = sphi 0, %s331
    %s346 = sphi 0, %s332
    %s350 = sphi 0, %s350
    %s352 = sphi 0, %s350
    %s353 = sphi 0, %s352
    %s367 = sphi 0, %s353
    %s373 = sphi 0, %s375
    %s376 = sphi 0, %s373
    %s377 = sphi 0, %s376
    %s393 = sphi 0, %s377
  $region4: #{dsen_forward.1} parent=0 // loop_header_branch
    %25 = sbr.rel (%p23) target = $region8
  $region5: #{dsen_forward.1} parent=0 // loop_body
    %s27 = ssub.s32 %s22, 1
    %s28 = ssub.s32 %s22, 2
    %s29 = sadd.s32 %s22, 1
    %s30 = ssub.s32 %s22, %s29
    %p31 = scmp.eq.s32.totalorder %s30, 0
    %s33 = sadd.s32 %s32, 1
    %s34 = scalar_select %p31, %s32, %s33
    %p37 = pneg %p31
    %p38 = scmp.eq.s32.totalorder %s22, 1
    %p39 = por %p37, %p38
    %p40 = scmp.ne.s32.totalorder %s32, %s35
    %p41 = scmp.eq.s32.totalorder %s22, 0
    %p42 = por %p40, %p41
    %p43 = scmp.ne.s32.totalorder %s32, %s35
    %p44 = scmp.eq.s32.totalorder %s27, 1
    %p45 = por %p43, %p44
    %p46 = scmp.ne.s32.totalorder %s35, %s36
    %p47 = scmp.eq.s32.totalorder %s27, 0
    %p48 = por %p46, %p47
    %p49 = scmp.ne.s32.totalorder %s35, %s36
    %p50 = scmp.eq.s32.totalorder %s28, 1
    %p51 = por %p49, %p50
    %p53 = scmp.ne.s32.totalorder %s36, %s52
    %p54 = scmp.eq.s32.totalorder %s28, 0
    %p55 = por %p53, %p54
    %s57 = sadd.s32 %s56, 1
    %p60 = scmp.eq.s32.totalorder %s22, 1
    %p61 = scmp.ne.s32.totalorder %s56, %s58
    %p62 = scmp.eq.s32.totalorder %s22, 0
    %p63 = por %p61, %p62
    %p64 = scmp.ne.s32.totalorder %s56, %s58
    %p65 = scmp.eq.s32.totalorder %s27, 1
    %p66 = por %p64, %p65
    %p67 = scmp.ne.s32.totalorder %s58, %s59
    %p68 = scmp.eq.s32.totalorder %s27, 0
    %p69 = por %p67, %p68
    %p70 = scmp.ne.s32.totalorder %s58, %s59
    %p71 = scmp.eq.s32.totalorder %s28, 1
    %p72 = por %p70, %p71
    %p74 = scmp.ne.s32.totalorder %s59, %s73
    %p75 = scmp.eq.s32.totalorder %s28, 0
    %p76 = por %p74, %p75
    %s78 = sadd.s32 %s77, 1
    %p81 = scmp.eq.s32.totalorder %s22, 1
    %p82 = scmp.ne.s32.totalorder %s77, %s79
    %p83 = scmp.eq.s32.totalorder %s22, 0
    %p84 = por %p82, %p83
    %p85 = scmp.ne.s32.totalorder %s77, %s79
    %p86 = scmp.eq.s32.totalorder %s27, 1
    %p87 = por %p85, %p86
    %p88 = scmp.ne.s32.totalorder %s79, %s80
    %p89 = scmp.eq.s32.totalorder %s27, 0
    %p90 = por %p88, %p89
    %p91 = scmp.ne.s32.totalorder %s79, %s80
    %p92 = scmp.eq.s32.totalorder %s28, 1
    %p93 = por %p91, %p92
    %p95 = scmp.ne.s32.totalorder %s80, %s94
    %p96 = scmp.eq.s32.totalorder %s28, 0
    %p97 = por %p95, %p96
    %s99 = sadd.s32 %s98, 1
    %p102 = scmp.eq.s32.totalorder %s22, 1
    %p103 = scmp.ne.s32.totalorder %s98, %s100
    %p104 = scmp.eq.s32.totalorder %s22, 0
    %p105 = por %p103, %p104
    %p106 = scmp.ne.s32.totalorder %s98, %s100
    %p107 = scmp.eq.s32.totalorder %s27, 1
    %p108 = por %p106, %p107
    %p109 = scmp.ne.s32.totalorder %s100, %s101
    %p110 = scmp.eq.s32.totalorder %s27, 0
    %p111 = por %p109, %p110
    %p112 = scmp.ne.s32.totalorder %s100, %s101
    %p113 = scmp.eq.s32.totalorder %s28, 1
    %p114 = por %p112, %p113
    %p116 = scmp.ne.s32.totalorder %s101, %s115
    %p117 = scmp.eq.s32.totalorder %s28, 0
    %p118 = por %p116, %p117
    %s120 = sadd.s32 %s119, 1
    %p123 = scmp.eq.s32.totalorder %s22, 1
    %p124 = scmp.ne.s32.totalorder %s119, %s121
    %p125 = scmp.eq.s32.totalorder %s22, 0
    %p126 = por %p124, %p125
    %p127 = scmp.ne.s32.totalorder %s119, %s121
    %p128 = scmp.eq.s32.totalorder %s27, 1
    %p129 = por %p127, %p128
    %p130 = scmp.ne.s32.totalorder %s121, %s122
    %p131 = scmp.eq.s32.totalorder %s27, 0
    %p132 = por %p130, %p131
    %p133 = scmp.ne.s32.totalorder %s121, %s122
    %p134 = scmp.eq.s32.totalorder %s28, 1
    %p135 = por %p133, %p134
    %p137 = scmp.ne.s32.totalorder %s122, %s136
    %p138 = scmp.eq.s32.totalorder %s28, 0
    %p139 = por %p137, %p138
    %s141 = sadd.s32 %s140, 1
    %p144 = scmp.eq.s32.totalorder %s22, 1
    %p145 = scmp.ne.s32.totalorder %s140, %s142
    %p146 = scmp.eq.s32.totalorder %s22, 0
    %p147 = por %p145, %p146
    %p148 = scmp.ne.s32.totalorder %s140, %s142
    %p149 = scmp.eq.s32.totalorder %s27, 1
    %p150 = por %p148, %p149
    %p151 = scmp.ne.s32.totalorder %s142, %s143
    %p152 = scmp.eq.s32.totalorder %s27, 0
    %p153 = por %p151, %p152
    %p154 = scmp.ne.s32.totalorder %s142, %s143
    %p155 = scmp.eq.s32.totalorder %s28, 1
    %p156 = por %p154, %p155
    %p158 = scmp.ne.s32.totalorder %s143, %s157
    %p159 = scmp.eq.s32.totalorder %s28, 0
    %p160 = por %p158, %p159
    %s162 = sadd.s32 %s161, 1
    %p165 = scmp.eq.s32.totalorder %s22, 1
    %p166 = scmp.ne.s32.totalorder %s161, %s163
    %p167 = scmp.eq.s32.totalorder %s22, 0
    %p168 = por %p166, %p167
    %p169 = scmp.ne.s32.totalorder %s161, %s163
    %p170 = scmp.eq.s32.totalorder %s27, 1
    %p171 = por %p169, %p170
    %p172 = scmp.ne.s32.totalorder %s163, %s164
    %p173 = scmp.eq.s32.totalorder %s27, 0
    %p174 = por %p172, %p173
    %p175 = scmp.ne.s32.totalorder %s163, %s164
    %p176 = scmp.eq.s32.totalorder %s28, 1
    %p177 = por %p175, %p176
    %p179 = scmp.ne.s32.totalorder %s164, %s178
    %p180 = scmp.eq.s32.totalorder %s28, 0
    %p181 = por %p179, %p180
    %s183 = sadd.s32 %s182, 1
    %p186 = scmp.eq.s32.totalorder %s22, 1
    %p187 = scmp.ne.s32.totalorder %s182, %s184
    %p188 = scmp.eq.s32.totalorder %s22, 0
    %p189 = por %p187, %p188
    %p190 = scmp.ne.s32.totalorder %s182, %s184
    %p191 = scmp.eq.s32.totalorder %s27, 1
    %p192 = por %p190, %p191
    %p193 = scmp.ne.s32.totalorder %s184, %s185
    %p194 = scmp.eq.s32.totalorder %s27, 0
    %p195 = por %p193, %p194
    %p196 = scmp.ne.s32.totalorder %s184, %s185
    %p197 = scmp.eq.s32.totalorder %s28, 1
    %p198 = por %p196, %p197
    %p200 = scmp.ne.s32.totalorder %s185, %s199
    %p201 = scmp.eq.s32.totalorder %s28, 0
    %p202 = por %p200, %p201
    %s204 = sadd.s32 %s203, 1
    %p207 = scmp.eq.s32.totalorder %s22, 1
    %p208 = scmp.ne.s32.totalorder %s203, %s205
    %p209 = scmp.eq.s32.totalorder %s22, 0
    %p210 = por %p208, %p209
    %p211 = scmp.ne.s32.totalorder %s203, %s205
    %p212 = scmp.eq.s32.totalorder %s27, 1
    %p213 = por %p211, %p212
    %p214 = scmp.ne.s32.totalorder %s205, %s206
    %p215 = scmp.eq.s32.totalorder %s27, 0
    %p216 = por %p214, %p215
    %p217 = scmp.ne.s32.totalorder %s205, %s206
    %p218 = scmp.eq.s32.totalorder %s28, 1
    %p219 = por %p217, %p218
    %p221 = scmp.ne.s32.totalorder %s206, %s220
    %p222 = scmp.eq.s32.totalorder %s28, 0
    %p223 = por %p221, %p222
    %s225 = sadd.s32 %s224, 1
    %p228 = scmp.eq.s32.totalorder %s22, 1
    %p229 = scmp.ne.s32.totalorder %s224, %s226
    %p230 = scmp.eq.s32.totalorder %s22, 0
    %p231 = por %p229, %p230
    %p232 = scmp.ne.s32.totalorder %s224, %s226
    %p233 = scmp.eq.s32.totalorder %s27, 1
    %p234 = por %p232, %p233
    %p235 = scmp.ne.s32.totalorder %s226, %s227
    %p236 = scmp.eq.s32.totalorder %s27, 0
    %p237 = por %p235, %p236
    %p238 = scmp.ne.s32.totalorder %s226, %s227
    %p239 = scmp.eq.s32.totalorder %s28, 1
    %p240 = por %p238, %p239
    %p242 = scmp.ne.s32.totalorder %s227, %s241
    %p243 = scmp.eq.s32.totalorder %s28, 0
    %p244 = por %p242, %p243
    %s246 = sadd.s32 %s245, 1
    %p249 = scmp.eq.s32.totalorder %s22, 1
    %p250 = scmp.ne.s32.totalorder %s245, %s247
    %p251 = scmp.eq.s32.totalorder %s22, 0
    %p252 = por %p250, %p251
    %p253 = scmp.ne.s32.totalorder %s245, %s247
    %p254 = scmp.eq.s32.totalorder %s27, 1
    %p255 = por %p253, %p254
    %p256 = scmp.ne.s32.totalorder %s247, %s248
    %p257 = scmp.eq.s32.totalorder %s27, 0
    %p258 = por %p256, %p257
    %p259 = scmp.ne.s32.totalorder %s247, %s248
    %p260 = scmp.eq.s32.totalorder %s28, 1
    %p261 = por %p259, %p260
    %p263 = scmp.ne.s32.totalorder %s248, %s262
    %p264 = scmp.eq.s32.totalorder %s28, 0
    %p265 = por %p263, %p264
    %s267 = sadd.s32 %s266, 1
    %p270 = scmp.eq.s32.totalorder %s22, 1
    %p271 = scmp.ne.s32.totalorder %s266, %s268
    %p272 = scmp.eq.s32.totalorder %s22, 0
    %p273 = por %p271, %p272
    %p274 = scmp.ne.s32.totalorder %s266, %s268
    %p275 = scmp.eq.s32.totalorder %s27, 1
    %p276 = por %p274, %p275
    %p277 = scmp.ne.s32.totalorder %s268, %s269
    %p278 = scmp.eq.s32.totalorder %s27, 0
    %p279 = por %p277, %p278
    %p280 = scmp.ne.s32.totalorder %s268, %s269
    %p281 = scmp.eq.s32.totalorder %s28, 1
    %p282 = por %p280, %p281
    %p284 = scmp.ne.s32.totalorder %s269, %s283
    %p285 = scmp.eq.s32.totalorder %s28, 0
    %p286 = por %p284, %p285
    %s288 = sadd.s32 %s287, 1
    %p291 = scmp.eq.s32.totalorder %s22, 1
    %p292 = scmp.ne.s32.totalorder %s287, %s289
    %p293 = scmp.eq.s32.totalorder %s22, 0
    %p294 = por %p292, %p293
    %p295 = scmp.ne.s32.totalorder %s287, %s289
    %p296 = scmp.eq.s32.totalorder %s27, 1
    %p297 = por %p295, %p296
    %p298 = scmp.ne.s32.totalorder %s289, %s290
    %p299 = scmp.eq.s32.totalorder %s27, 0
    %p300 = por %p298, %p299
    %p301 = scmp.ne.s32.totalorder %s289, %s290
    %p302 = scmp.eq.s32.totalorder %s28, 1
    %p303 = por %p301, %p302
    %p305 = scmp.ne.s32.totalorder %s290, %s304
    %p306 = scmp.eq.s32.totalorder %s28, 0
    %p307 = por %p305, %p306
    %s309 = sadd.s32 %s308, 1
    %p312 = scmp.eq.s32.totalorder %s22, 1
    %p313 = scmp.ne.s32.totalorder %s308, %s310
    %p314 = scmp.eq.s32.totalorder %s22, 0
    %p315 = por %p313, %p314
    %p316 = scmp.ne.s32.totalorder %s308, %s310
    %p317 = scmp.eq.s32.totalorder %s27, 1
    %p318 = por %p316, %p317
    %p319 = scmp.ne.s32.totalorder %s310, %s311
    %p320 = scmp.eq.s32.totalorder %s27, 0
    %p321 = por %p319, %p320
    %p322 = scmp.ne.s32.totalorder %s310, %s311
    %p323 = scmp.eq.s32.totalorder %s28, 1
    %p324 = por %p322, %p323
    %p326 = scmp.ne.s32.totalorder %s311, %s325
    %p327 = scmp.eq.s32.totalorder %s28, 0
    %p328 = por %p326, %p327
    %s330 = sadd.s32 %s329, 1
    %p333 = scmp.eq.s32.totalorder %s22, 1
    %p334 = scmp.ne.s32.totalorder %s329, %s331
    %p335 = scmp.eq.s32.totalorder %s22, 0
    %p336 = por %p334, %p335
    %p337 = scmp.ne.s32.totalorder %s329, %s331
    %p338 = scmp.eq.s32.totalorder %s27, 1
    %p339 = por %p337, %p338
    %p340 = scmp.ne.s32.totalorder %s331, %s332
    %p341 = scmp.eq.s32.totalorder %s27, 0
    %p342 = por %p340, %p341
    %p343 = scmp.ne.s32.totalorder %s331, %s332
    %p344 = scmp.eq.s32.totalorder %s28, 1
    %p345 = por %p343, %p344
    %p347 = scmp.ne.s32.totalorder %s332, %s346
    %p348 = scmp.eq.s32.totalorder %s28, 0
    %p349 = por %p347, %p348
    %s351 = sadd.s32 %s350, 1
    %p354 = scmp.eq.s32.totalorder %s22, 1
    %p355 = scmp.ne.s32.totalorder %s350, %s352
    %p356 = scmp.eq.s32.totalorder %s22, 0
    %p357 = por %p355, %p356
    %p358 = scmp.ne.s32.totalorder %s350, %s352
    %p359 = scmp.eq.s32.totalorder %s27, 1
    %p360 = por %p358, %p359
    %p361 = scmp.ne.s32.totalorder %s352, %s353
    %p362 = scmp.eq.s32.totalorder %s27, 0
    %p363 = por %p361, %p362
    %p364 = scmp.ne.s32.totalorder %s352, %s353
    %p365 = scmp.eq.s32.totalorder %s28, 1
    %p366 = por %p364, %p365
    %p368 = scmp.ne.s32.totalorder %s353, %s367
    %p369 = scmp.eq.s32.totalorder %s28, 0
    %p370 = por %p368, %p369
    %s371 = ssub.s32 %s22, %s29
    %p372 = scmp.eq.s32.totalorder %s371, 0
    %s374 = sadd.s32 %s373, 1
    %s375 = scalar_select %p372, %s373, %s374
    %p378 = pneg %p372
    %p379 = scmp.eq.s32.totalorder %s22, 1
    %p380 = por %p378, %p379
    %p381 = scmp.ne.s32.totalorder %s373, %s376
    %p382 = scmp.eq.s32.totalorder %s22, 0
    %p383 = por %p381, %p382
    %p384 = scmp.ne.s32.totalorder %s373, %s376
    %p385 = scmp.eq.s32.totalorder %s27, 1
    %p386 = por %p384, %p385
    %p387 = scmp.ne.s32.totalorder %s376, %s377
    %p388 = scmp.eq.s32.totalorder %s27, 0
    %p389 = por %p387, %p388
    %p390 = scmp.ne.s32.totalorder %s376, %s377
    %p391 = scmp.eq.s32.totalorder %s28, 1
    %p392 = por %p390, %p391
    %p394 = scmp.ne.s32.totalorder %s377, %s393
    %p395 = scmp.eq.s32.totalorder %s28, 0
    %p396 = por %p394, %p395
    %p397 = scmp.le.s32.totalorder 1, %s22
    %p398 = scmp.lt.s32.totalorder %s22, 3
    %p399 = pnand %p397, %p398
    %p400 = pneg %p399
    // Predicated region
    $region9: #{dsen_forward.1} parent=5 // pred_check
      _
    $region10: #{dsen_forward.1} parent=5 // pred_check_branch
      %402 = sbr.rel (%p399) target = $region12
    $region11: #{dsen_forward.1} parent=5 // pred_region
      %s403 = ssub.s32 %s22, 1
      // Predicated region
      $region13: #{dsen_forward.1} parent=11 // pred_check
        %p404 = pneg %p69
      $region14: #{dsen_forward.1} parent=11 // pred_check_branch
        %406 = sbr.rel (%p404) target = $region16
      $region15: #{dsen_forward.1} parent=11 // pred_region
        _
      $region16: #{dsen_forward.1} parent=11 // pred_fallthru
        _
      // Predicated region
      $region17: #{dsen_forward.1} parent=11 // pred_check
        %p407 = pneg %p90
      $region18: #{dsen_forward.1} parent=11 // pred_check_branch
        %409 = sbr.rel (%p407) target = $region20
      $region19: #{dsen_forward.1} parent=11 // pred_region
        _
      $region20: #{dsen_forward.1} parent=11 // pred_fallthru
        _
      // Predicated region
      $region21: #{dsen_forward.1} parent=11 // pred_check
        %p410 = pneg %p111
      $region22: #{dsen_forward.1} parent=11 // pred_check_branch
        %412 = sbr.rel (%p410) target = $region24
      $region23: #{dsen_forward.1} parent=11 // pred_region
        _
      $region24: #{dsen_forward.1} parent=11 // pred_fallthru
        _
      // Predicated region
      $region25: #{dsen_forward.1} parent=11 // pred_check
        %p413 = pneg %p132
      $region26: #{dsen_forward.1} parent=11 // pred_check_branch
        %415 = sbr.rel (%p413) target = $region28
      $region27: #{dsen_forward.1} parent=11 // pred_region
        _
      $region28: #{dsen_forward.1} parent=11 // pred_fallthru
        _
      // Predicated region
      $region29: #{dsen_forward.1} parent=11 // pred_check
        %p416 = pneg %p153
      $region30: #{dsen_forward.1} parent=11 // pred_check_branch
        %418 = sbr.rel (%p416) target = $region32
      $region31: #{dsen_forward.1} parent=11 // pred_region
        _
      $region32: #{dsen_forward.1} parent=11 // pred_fallthru
        _
      // Predicated region
      $region33: #{dsen_forward.1} parent=11 // pred_check
        %p419 = pneg %p174
      $region34: #{dsen_forward.1} parent=11 // pred_check_branch
        %421 = sbr.rel (%p419) target = $region36
      $region35: #{dsen_forward.1} parent=11 // pred_region
        _
      $region36: #{dsen_forward.1} parent=11 // pred_fallthru
        _
      // Predicated region
      $region37: #{dsen_forward.1} parent=11 // pred_check
        %p422 = pneg %p195
      $region38: #{dsen_forward.1} parent=11 // pred_check_branch
        %424 = sbr.rel (%p422) target = $region40
      $region39: #{dsen_forward.1} parent=11 // pred_region
        _
      $region40: #{dsen_forward.1} parent=11 // pred_fallthru
        _
      // Predicated region
      $region41: #{dsen_forward.1} parent=11 // pred_check
        %p425 = pneg %p216
      $region42: #{dsen_forward.1} parent=11 // pred_check_branch
        %427 = sbr.rel (%p425) target = $region44
      $region43: #{dsen_forward.1} parent=11 // pred_region
        _
      $region44: #{dsen_forward.1} parent=11 // pred_fallthru
        _
      // Predicated region
      $region45: #{dsen_forward.1} parent=11 // pred_check
        %p428 = pneg %p237
      $region46: #{dsen_forward.1} parent=11 // pred_check_branch
        %430 = sbr.rel (%p428) target = $region48
      $region47: #{dsen_forward.1} parent=11 // pred_region
        _
      $region48: #{dsen_forward.1} parent=11 // pred_fallthru
        _
      // Predicated region
      $region49: #{dsen_forward.1} parent=11 // pred_check
        %p431 = pneg %p258
      $region50: #{dsen_forward.1} parent=11 // pred_check_branch
        %433 = sbr.rel (%p431) target = $region52
      $region51: #{dsen_forward.1} parent=11 // pred_region
        _
      $region52: #{dsen_forward.1} parent=11 // pred_fallthru
        _
      // Predicated region
      $region53: #{dsen_forward.1} parent=11 // pred_check
        %p434 = pneg %p279
      $region54: #{dsen_forward.1} parent=11 // pred_check_branch
        %436 = sbr.rel (%p434) target = $region56
      $region55: #{dsen_forward.1} parent=11 // pred_region
        _
      $region56: #{dsen_forward.1} parent=11 // pred_fallthru
        _
      // Predicated region
      $region57: #{dsen_forward.1} parent=11 // pred_check
        %p437 = pneg %p300
      $region58: #{dsen_forward.1} parent=11 // pred_check_branch
        %439 = sbr.rel (%p437) target = $region60
      $region59: #{dsen_forward.1} parent=11 // pred_region
        _
      $region60: #{dsen_forward.1} parent=11 // pred_fallthru
        _
      // Predicated region
      $region61: #{dsen_forward.1} parent=11 // pred_check
        %p440 = pneg %p321
      $region62: #{dsen_forward.1} parent=11 // pred_check_branch
        %442 = sbr.rel (%p440) target = $region64
      $region63: #{dsen_forward.1} parent=11 // pred_region
        _
      $region64: #{dsen_forward.1} parent=11 // pred_fallthru
        _
      // Predicated region
      $region65: #{dsen_forward.1} parent=11 // pred_check
        %p443 = pneg %p342
      $region66: #{dsen_forward.1} parent=11 // pred_check_branch
        %445 = sbr.rel (%p443) target = $region68
      $region67: #{dsen_forward.1} parent=11 // pred_region
        _
      $region68: #{dsen_forward.1} parent=11 // pred_fallthru
        _
      // Predicated region
      $region69: #{dsen_forward.1} parent=11 // pred_check
        %p446 = pneg %p363
      $region70: #{dsen_forward.1} parent=11 // pred_check_branch
        %448 = sbr.rel (%p446) target = $region72
      $region71: #{dsen_forward.1} parent=11 // pred_region
        _
      $region72: #{dsen_forward.1} parent=11 // pred_fallthru
        _
    $region12: #{dsen_forward.1} parent=5 // pred_fallthru
      _
    %p449 = scmp.lt.s32.totalorder %s22, 2
    // Predicated region
    $region73: #{dsen_forward.1} parent=5 // pred_check
      %p450 = pneg %p449
    $region74: #{dsen_forward.1} parent=5 // pred_check_branch
      %452 = sbr.rel (%p450) target = $region76
    $region75: #{dsen_forward.1} parent=5 // pred_region
      // Predicated region
      $region77: #{dsen_forward.1} parent=75 // pred_check
        %p453 = pneg %p42
      $region78: #{dsen_forward.1} parent=75 // pred_check_branch
        %455 = sbr.rel (%p453) target = $region80
      $region79: #{dsen_forward.1} parent=75 // pred_region
        %p456 = scmp.lt.s32.totalorder %s22, 1
        %s457 = scalar_select %p456, %s22, 1
        %s458 = smul.addr %s457, 4
        %s459 = smul.addr %s458, 8
        %s460 = scalar_lea.vmem %s0, %s459
      $region80: #{dsen_forward.1} parent=75 // pred_fallthru
        _
    $region76: #{dsen_forward.1} parent=5 // pred_fallthru
      _
    %p461 = scmp.le.s32.totalorder 1, %s22
    %p462 = scmp.lt.s32.totalorder %s22, 3
    %p463 = pnand %p461, %p462
    %p464 = pneg %p463
    // Predicated region
    $region81: #{dsen_forward.1} parent=5 // pred_check
      _
    $region82: #{dsen_forward.1} parent=5 // pred_check_branch
      %466 = sbr.rel (%p463) target = $region84
    $region83: #{dsen_forward.1} parent=5 // pred_region
      %s467 = ssub.s32 %s22, 1
      %p468 = scmp.lt.s32.totalorder %s27, 1
      %s469 = scalar_select %p468, %s27, 1
      %s470 = smul.addr %s469, 4
      %s471 = smul.addr %s470, 8
      %s472 = scalar_lea.vmem %s0, %s471
      %p473 = pneg %p48
      %p474 = pneg %p45
      %p475 = pneg %p69
      %p476 = pneg %p66
      %p477 = pneg %p90
      %p478 = pneg %p87
      %p479 = pneg %p111
      %p480 = pneg %p108
      %p481 = pneg %p132
      %p482 = pneg %p129
      %p483 = pneg %p153
      %p484 = pneg %p150
      %p485 = pneg %p174
      %p486 = pneg %p171
      %p487 = pneg %p195
      %p488 = pneg %p192
      %p489 = pneg %p216
      %p490 = pneg %p213
      %p491 = pneg %p237
      %p492 = pneg %p234
      %p493 = pneg %p258
      %p494 = pneg %p255
      %p495 = pneg %p279
      %p496 = pneg %p276
      %p497 = pneg %p300
      %p498 = pneg %p297
      %p499 = pneg %p321
      %p500 = pneg %p318
      %p501 = pneg %p342
      %p502 = pneg %p339
      %p503 = pneg %p363
      %p504 = pneg %p360
      %p505 = pneg %p389
      %p506 = pneg %p386
      %p507 = scmp.lt.s32.totalorder %s27, 1
      %s508 = scalar_select %p507, %s27, 1
      %s509 = smul.addr %s508, 3
      %s510 = smul.addr %s509, 4
      %s511 = scalar_lea.vmem %s16, %s510
      %p512 = scmp.lt.s32.totalorder %s27, 1
      %s513 = scalar_select %p512, %s27, 1
      %s514 = smul.addr %s513, 4
      %s515 = smul.addr %s514, 8
      %s516 = scalar_lea.vmem %s0, %s515
      %p517 = scmp.lt.s32.totalorder %s27, 1
      %s518 = scalar_select %p517, %s27, 1
      %s519 = smul.addr %s518, 3
      %s520 = smul.addr %s519, 4
      %s521 = scalar_lea.vmem %s16, %s520
      %v522 = vld [vmem:[%s1] sm:$0x7]
      %v523 = vld [vmem:[%s516] sm:$0xff]
      %v524 = vld [vmem:[%s516 + $0x8] sm:$0xff]
      %v525 = vld [vmem:[%s516 + $0x10] sm:$0xff]
      %v526 = vld [vmem:[%s516 + $0x18] sm:$0xff]
      %v527 = vld [vmem:[%s2] sm:$0xff]
      %v528 = vld [vmem:[%s2 + $0x8] sm:$0xff]
      %v529 = vld [vmem:[%s2 + $0x10] sm:$0xff]
      %v530 = vld [vmem:[%s2 + $0x18] sm:$0xff]
      %v531 = vld [vmem:[%s2 + $0x20] sm:$0xff]
      %v532 = vld [vmem:[%s2 + $0x28] sm:$0xff]
      %v533 = vld [vmem:[%s2 + $0x30] sm:$0xff]
      %v534 = vld [vmem:[%s2 + $0x38] sm:$0xff]
      %538 = vrot.lane.b32.xlu0 %v523, 127
      %v539 = vpop.permute.xlu0 %538
      %540 = vrot.lane.b32.xlu0 %v524, 127
      %v541 = vpop.permute.xlu0 %540
      %542 = vrot.lane.b32.xlu0 %v525, 127
      %v543 = vpop.permute.xlu0 %542
      %vm544 = vcmask 1039360
      %v545 = vsel %vm544, %v539, %v541
      %v546 = vsel %vm544, %v541, %v543
      %550 = vrot.lane.b32.xlu0 %v523, 126
      %v551 = vpop.permute.xlu0 %550
      %552 = vrot.lane.b32.xlu0 %v524, 126
      %v553 = vpop.permute.xlu0 %552
      %554 = vrot.lane.b32.xlu0 %v525, 126
      %v555 = vpop.permute.xlu0 %554
      %vm556 = vcmask 1031168
      %v557 = vsel %vm556, %v551, %v553
      %v558 = vsel %vm556, %v553, %v555
      %562 = vrot.lane.b32.xlu0 %v523, 125
      %v563 = vpop.permute.xlu0 %562
      %564 = vrot.lane.b32.xlu0 %v524, 125
      %v565 = vpop.permute.xlu0 %564
      %566 = vrot.lane.b32.xlu0 %v525, 125
      %v567 = vpop.permute.xlu0 %566
      %vm568 = vcmask 1022976
      %v569 = vsel %vm568, %v563, %v565
      %v570 = vsel %vm568, %v565, %v567
      %574 = vrot.lane.b32.xlu0 %v523, 124
      %v575 = vpop.permute.xlu0 %574
      %576 = vrot.lane.b32.xlu0 %v524, 124
      %v577 = vpop.permute.xlu0 %576
      %578 = vrot.lane.b32.xlu0 %v525, 124
      %v579 = vpop.permute.xlu0 %578
      %vm580 = vcmask 1014784
      %v581 = vsel %vm580, %v575, %v577
      %v582 = vsel %vm580, %v577, %v579
      %586 = vrot.lane.b32.xlu0 %v523, 108
      %v587 = vpop.permute.xlu0 %586
      %588 = vrot.lane.b32.xlu0 %v524, 108
      %v589 = vpop.permute.xlu0 %588
      %590 = vrot.lane.b32.xlu0 %v525, 108
      %v591 = vpop.permute.xlu0 %590
      %vm592 = vcmask 883712
      %v593 = vsel %vm592, %v587, %v589
      %v594 = vsel %vm592, %v589, %v591
      %598 = vrot.lane.b32.xlu0 %v523, 107
      %v599 = vpop.permute.xlu0 %598
      %600 = vrot.lane.b32.xlu0 %v524, 107
      %v601 = vpop.permute.xlu0 %600
      %602 = vrot.lane.b32.xlu0 %v525, 107
      %v603 = vpop.permute.xlu0 %602
      %vm604 = vcmask 875520
      %v605 = vsel %vm604, %v599, %v601
      %v606 = vsel %vm604, %v601, %v603
      %610 = vrot.lane.b32.xlu0 %v523, 106
      %v611 = vpop.permute.xlu0 %610
      %612 = vrot.lane.b32.xlu0 %v524, 106
      %v613 = vpop.permute.xlu0 %612
      %614 = vrot.lane.b32.xlu0 %v525, 106
      %v615 = vpop.permute.xlu0 %614
      %vm616 = vcmask 867328
      %v617 = vsel %vm616, %v611, %v613
      %v618 = vsel %vm616, %v613, %v615
      %622 = vrot.lane.b32.xlu0 %v523, 105
      %v623 = vpop.permute.xlu0 %622
      %624 = vrot.lane.b32.xlu0 %v524, 105
      %v625 = vpop.permute.xlu0 %624
      %626 = vrot.lane.b32.xlu0 %v525, 105
      %v627 = vpop.permute.xlu0 %626
      %vm628 = vcmask 859136
      %v629 = vsel %vm628, %v623, %v625
      %v630 = vsel %vm628, %v625, %v627
      %634 = vrot.lane.b32.xlu0 %v523, 104
      %v635 = vpop.permute.xlu0 %634
      %636 = vrot.lane.b32.xlu0 %v524, 104
      %v637 = vpop.permute.xlu0 %636
      %638 = vrot.lane.b32.xlu0 %v525, 104
      %v639 = vpop.permute.xlu0 %638
      %vm640 = vcmask 850944
      %v641 = vsel %vm640, %v635, %v637
      %v642 = vsel %vm640, %v637, %v639
      %646 = vrot.lane.b32.xlu0 %v523, 88
      %v647 = vpop.permute.xlu0 %646
      %648 = vrot.lane.b32.xlu0 %v524, 88
      %v649 = vpop.permute.xlu0 %648
      %650 = vrot.lane.b32.xlu0 %v525, 88
      %v651 = vpop.permute.xlu0 %650
      %vm652 = vcmask 719872
      %v653 = vsel %vm652, %v647, %v649
      %v654 = vsel %vm652, %v649, %v651
      %658 = vrot.lane.b32.xlu0 %v523, 87
      %v659 = vpop.permute.xlu0 %658
      %660 = vrot.lane.b32.xlu0 %v524, 87
      %v661 = vpop.permute.xlu0 %660
      %662 = vrot.lane.b32.xlu0 %v525, 87
      %v663 = vpop.permute.xlu0 %662
      %vm664 = vcmask 711680
      %v665 = vsel %vm664, %v659, %v661
      %v666 = vsel %vm664, %v661, %v663
      %670 = vrot.lane.b32.xlu0 %v523, 86
      %v671 = vpop.permute.xlu0 %670
      %672 = vrot.lane.b32.xlu0 %v524, 86
      %v673 = vpop.permute.xlu0 %672
      %674 = vrot.lane.b32.xlu0 %v525, 86
      %v675 = vpop.permute.xlu0 %674
      %vm676 = vcmask 703488
      %v677 = vsel %vm676, %v671, %v673
      %v678 = vsel %vm676, %v673, %v675
      %682 = vrot.lane.b32.xlu0 %v523, 85
      %v683 = vpop.permute.xlu0 %682
      %684 = vrot.lane.b32.xlu0 %v524, 85
      %v685 = vpop.permute.xlu0 %684
      %686 = vrot.lane.b32.xlu0 %v525, 85
      %v687 = vpop.permute.xlu0 %686
      %vm688 = vcmask 695296
      %v689 = vsel %vm688, %v683, %v685
      %v690 = vsel %vm688, %v685, %v687
      %694 = vrot.lane.b32.xlu0 %v523, 84
      %v695 = vpop.permute.xlu0 %694
      %696 = vrot.lane.b32.xlu0 %v524, 84
      %v697 = vpop.permute.xlu0 %696
      %698 = vrot.lane.b32.xlu0 %v525, 84
      %v699 = vpop.permute.xlu0 %698
      %vm700 = vcmask 687104
      %v701 = vsel %vm700, %v695, %v697
      %v702 = vsel %vm700, %v697, %v699
      %706 = vrot.lane.b32.xlu0 %v523, 68
      %v707 = vpop.permute.xlu0 %706
      %708 = vrot.lane.b32.xlu0 %v524, 68
      %v709 = vpop.permute.xlu0 %708
      %710 = vrot.lane.b32.xlu0 %v525, 68
      %v711 = vpop.permute.xlu0 %710
      %vm712 = vcmask 556032
      %v713 = vsel %vm712, %v707, %v709
      %v714 = vsel %vm712, %v709, %v711
      %719 = vrot.lane.b32.xlu0 %v523, 109
      %v720 = vpop.permute.xlu0 %719
      %721 = vrot.lane.b32.xlu0 %v524, 109
      %v722 = vpop.permute.xlu0 %721
      %723 = vrot.lane.b32.xlu0 %v525, 109
      %v724 = vpop.permute.xlu0 %723
      %725 = vrot.lane.b32.xlu0 %v526, 109
      %v726 = vpop.permute.xlu0 %725
      %vm727 = vcmask 891904
      %v728 = vsel %vm727, %v720, %v722
      %v729 = vsel %vm727, %v722, %v724
      %v730 = vsel %vm727, %v724, %v726
      %731 = vrot.lane.b32.xlu0 %v526, 108
      %v732 = vpop.permute.xlu0 %731
      %v733 = vsel %vm592, %v591, %v732
      %734 = vrot.lane.b32.xlu0 %v526, 107
      %v735 = vpop.permute.xlu0 %734
      %v736 = vsel %vm604, %v603, %v735
      %737 = vrot.lane.b32.xlu0 %v526, 106
      %v738 = vpop.permute.xlu0 %737
      %v739 = vsel %vm616, %v615, %v738
      %740 = vrot.lane.b32.xlu0 %v526, 105
      %v741 = vpop.permute.xlu0 %740
      %v742 = vsel %vm628, %v627, %v741
      %743 = vrot.lane.b32.xlu0 %v523, 67
      %v744 = vpop.permute.xlu0 %743
      %745 = vrot.lane.b32.xlu0 %v524, 67
      %v746 = vpop.permute.xlu0 %745
      %747 = vrot.lane.b32.xlu0 %v525, 67
      %v748 = vpop.permute.xlu0 %747
      %749 = vrot.lane.b32.xlu0 %v545, 67
      %v750 = vpop.permute.xlu0 %749
      %751 = vrot.lane.b32.xlu0 %v546, 67
      %v752 = vpop.permute.xlu0 %751
      %753 = vrot.lane.b32.xlu0 %v543, 67
      %v754 = vpop.permute.xlu0 %753
      %755 = vrot.lane.b32.xlu0 %v557, 67
      %v756 = vpop.permute.xlu0 %755
      %757 = vrot.lane.b32.xlu0 %v558, 67
      %v758 = vpop.permute.xlu0 %757
      %759 = vrot.lane.b32.xlu0 %v555, 67
      %v760 = vpop.permute.xlu0 %759
      %761 = vrot.lane.b32.xlu0 %v569, 67
      %v762 = vpop.permute.xlu0 %761
      %763 = vrot.lane.b32.xlu0 %v570, 67
      %v764 = vpop.permute.xlu0 %763
      %765 = vrot.lane.b32.xlu0 %v567, 67
      %v766 = vpop.permute.xlu0 %765
      %767 = vrot.lane.b32.xlu0 %v728, 67
      %v768 = vpop.permute.xlu0 %767
      %769 = vrot.lane.b32.xlu0 %v729, 67
      %v770 = vpop.permute.xlu0 %769
      %771 = vrot.lane.b32.xlu0 %v730, 67
      %v772 = vpop.permute.xlu0 %771
      %773 = vrot.lane.b32.xlu0 %v593, 67
      %v774 = vpop.permute.xlu0 %773
      %775 = vrot.lane.b32.xlu0 %v594, 67
      %v776 = vpop.permute.xlu0 %775
      %777 = vrot.lane.b32.xlu0 %v733, 67
      %v778 = vpop.permute.xlu0 %777
      %779 = vrot.lane.b32.xlu0 %v605, 67
      %v780 = vpop.permute.xlu0 %779
      %781 = vrot.lane.b32.xlu0 %v606, 67
      %v782 = vpop.permute.xlu0 %781
      %783 = vrot.lane.b32.xlu0 %v736, 67
      %v784 = vpop.permute.xlu0 %783
      %785 = vrot.lane.b32.xlu0 %v617, 67
      %v786 = vpop.permute.xlu0 %785
      %787 = vrot.lane.b32.xlu0 %v618, 67
      %v788 = vpop.permute.xlu0 %787
      %789 = vrot.lane.b32.xlu0 %v739, 67
      %v790 = vpop.permute.xlu0 %789
      %791 = vrot.lane.b32.xlu0 %v629, 67
      %v792 = vpop.permute.xlu0 %791
      %793 = vrot.lane.b32.xlu0 %v630, 67
      %v794 = vpop.permute.xlu0 %793
      %795 = vrot.lane.b32.xlu0 %v742, 67
      %v796 = vpop.permute.xlu0 %795
      %vm797 = vcmask 547840
      %v798 = vsel %vm797, %v744, %v746
      %v799 = vsel %vm797, %v746, %v748
      %v800 = vsel %vm797, %v750, %v752
      %v801 = vsel %vm797, %v752, %v754
      %v802 = vsel %vm797, %v756, %v758
      %v803 = vsel %vm797, %v758, %v760
      %v804 = vsel %vm797, %v762, %v764
      %v805 = vsel %vm797, %v764, %v766
      %v806 = vsel %vm797, %v768, %v770
      %v807 = vsel %vm797, %v770, %v772
      %v808 = vsel %vm797, %v774, %v776
      %v809 = vsel %vm797, %v776, %v778
      %v810 = vsel %vm797, %v780, %v782
      %v811 = vsel %vm797, %v782, %v784
      %v812 = vsel %vm797, %v786, %v788
      %v813 = vsel %vm797, %v788, %v790
      %v814 = vsel %vm797, %v792, %v794
      %v815 = vsel %vm797, %v794, %v796
      %v843 = vld [vmem:[%s3] sm:$0xff]
      %v844 = vld [vmem:[%s3 + $0x8] sm:$0xff]
      %v845 = vld [vmem:[%s3 + $0x10] sm:$0xff]
      %v846 = vld [vmem:[%s3 + $0x18] sm:$0xff]
      %848 = vset.pattern.permute.xlu0 0
      %849 = vperm.xlu0 %848, %v843
      %v850 = vpop.permute.xlu0 %849
      %853 = vset.pattern.permute.xlu0 0
      %854 = vperm.xlu0 %853, %v844
      %v855 = vpop.permute.xlu0 %854
      %858 = vset.pattern.permute.xlu0 0
      %859 = vperm.xlu0 %858, %v845
      %v860 = vpop.permute.xlu0 %859
      %863 = vset.pattern.permute.xlu0 0
      %864 = vperm.xlu0 %863, %v846
      %v865 = vpop.permute.xlu0 %864
      %vm867 = vcmask 588800
      %v869 = vsel %vm867, %v528, 0
      %v872 = vsel %vm867, %v530, 0
      %v875 = vsel %vm867, %v532, 0
      %v878 = vsel %vm867, %v534, 0
      %880 = vmatpush.msra.mxu0 %v713
      %881 = vmatpush.msra.mxu0 %v701
      %882 = vmatpush.msra.mxu0 %v689
      %883 = vmatpush.msra.mxu0 %v677
      %884 = vmatpush.msra.mxu0 %v665
      %885 = vmatpush.msra.mxu0 %v653
      %886 = vmatpush.msra.mxu0 %v641
      %887 = vmatpush.msra.mxu0 %v629
      %888 = vmatpush.msra.mxu0 %v617
      %889 = vmatpush.msra.mxu0 %v605
      %890 = vmatpush.msra.mxu0 %v593
      %891 = vmatpush.msra.mxu0 %v581
      %892 = vmatpush.msra.mxu0 %v569
      %893 = vmatpush.msra.mxu0 %v557
      %894 = vmatpush.msra.mxu0 %v545
      %895 = vmatpush.msra.mxu0 %v523
      %896 = vmatmul.f32.gmra.mxu0 %v527
      %v897 = vpop.f32.mrf.mxu0
      %v898 = vadd.f32 %v850, %v897
      %899 = vmatmul.f32.gmra.mxu0 %v529
      %v900 = vpop.f32.mrf.mxu0
      %v901 = vadd.f32 %v855, %v900
      %902 = vmatmul.f32.gmra.mxu0 %v531
      %v903 = vpop.f32.mrf.mxu0
      %v904 = vadd.f32 %v860, %v903
      %905 = vmatmul.f32.gmra.mxu0 %v533
      %v906 = vpop.f32.mrf.mxu0
      %v907 = vadd.f32 %v865, %v906
      %908 = vdwg.mxu0
      %909 = vmatpush.msra.mxu0 0.0
      %910 = vmatpush.msra.mxu0 0.0
      %911 = vmatpush.msra.mxu0 0.0
      %912 = vmatpush.msra.mxu0 0.0
      %913 = vmatpush.msra.mxu0 0.0
      %914 = vmatpush.msra.mxu0 0.0
      %915 = vmatpush.msra.mxu0 0.0
      %916 = vmatpush.msra.mxu0 %v814
      %917 = vmatpush.msra.mxu0 %v812
      %918 = vmatpush.msra.mxu0 %v810
      %919 = vmatpush.msra.mxu0 %v808
      %920 = vmatpush.msra.mxu0 %v806
      %921 = vmatpush.msra.mxu0 %v804
      %922 = vmatpush.msra.mxu0 %v802
      %923 = vmatpush.msra.mxu0 %v800
      %924 = vmatpush.msra.mxu0 %v798
      %925 = vmatmul.f32.gmra.mxu0 %v869
      %v926 = vpop.f32.mrf.mxu0
      %v927 = vadd.f32 %v898, %v926
      %928 = vmatmul.f32.gmra.mxu0 %v872
      %v929 = vpop.f32.mrf.mxu0
      %v930 = vadd.f32 %v901, %v929
      %931 = vmatmul.f32.gmra.mxu0 %v875
      %v932 = vpop.f32.mrf.mxu0
      %v933 = vadd.f32 %v904, %v932
      %934 = vmatmul.f32.gmra.mxu0 %v878
      %v935 = vpop.f32.mrf.mxu0
      %v936 = vadd.f32 %v907, %v935
      %937 = vdwg.mxu0
      %938 = vmatpush.msra.mxu0 %v714
      %939 = vmatpush.msra.mxu0 %v702
      %940 = vmatpush.msra.mxu0 %v690
      %941 = vmatpush.msra.mxu0 %v678
      %942 = vmatpush.msra.mxu0 %v666
      %943 = vmatpush.msra.mxu0 %v654
      %944 = vmatpush.msra.mxu0 %v642
      %945 = vmatpush.msra.mxu0 %v630
      %946 = vmatpush.msra.mxu0 %v618
      %947 = vmatpush.msra.mxu0 %v606
      %948 = vmatpush.msra.mxu0 %v594
      %949 = vmatpush.msra.mxu0 %v582
      %950 = vmatpush.msra.mxu0 %v570
      %951 = vmatpush.msra.mxu0 %v558
      %952 = vmatpush.msra.mxu0 %v546
      %953 = vmatpush.msra.mxu0 %v524
      %954 = vmatmul.f32.gmra.mxu0 %v527
      %v955 = vpop.f32.mrf.mxu0
      %v956 = vadd.f32 %v850, %v955
      %957 = vmatmul.f32.gmra.mxu0 %v529
      %v958 = vpop.f32.mrf.mxu0
      %v959 = vadd.f32 %v855, %v958
      %960 = vmatmul.f32.gmra.mxu0 %v531
      %v961 = vpop.f32.mrf.mxu0
      %v962 = vadd.f32 %v860, %v961
      %963 = vmatmul.f32.gmra.mxu0 %v533
      %v964 = vpop.f32.mrf.mxu0
      %v965 = vadd.f32 %v865, %v964
      %966 = vdwg.mxu0
      %967 = vmatpush.msra.mxu0 0.0
      %968 = vmatpush.msra.mxu0 0.0
      %969 = vmatpush.msra.mxu0 0.0
      %970 = vmatpush.msra.mxu0 0.0
      %971 = vmatpush.msra.mxu0 0.0
      %972 = vmatpush.msra.mxu0 0.0
      %973 = vmatpush.msra.mxu0 0.0
      %974 = vmatpush.msra.mxu0 %v815
      %975 = vmatpush.msra.mxu0 %v813
      %976 = vmatpush.msra.mxu0 %v811
      %977 = vmatpush.msra.mxu0 %v809
      %978 = vmatpush.msra.mxu0 %v807
      %979 = vmatpush.msra.mxu0 %v805
      %980 = vmatpush.msra.mxu0 %v803
      %981 = vmatpush.msra.mxu0 %v801
      %982 = vmatpush.msra.mxu0 %v799
      %983 = vmatmul.f32.gmra.mxu0 %v869
      %v984 = vpop.f32.mrf.mxu0
      %v985 = vadd.f32 %v956, %v984
      %986 = vmatmul.f32.gmra.mxu0 %v872
      %v987 = vpop.f32.mrf.mxu0
      %v988 = vadd.f32 %v959, %v987
      %989 = vmatmul.f32.gmra.mxu0 %v875
      %v990 = vpop.f32.mrf.mxu0
      %v991 = vadd.f32 %v962, %v990
      %992 = vmatmul.f32.gmra.mxu0 %v878
      %v993 = vpop.f32.mrf.mxu0
      %v994 = vadd.f32 %v965, %v993
      %995 = vdwg.mxu0
      %996 = vmatpush.msra.mxu0 %v711
      %997 = vmatpush.msra.mxu0 %v699
      %998 = vmatpush.msra.mxu0 %v687
      %999 = vmatpush.msra.mxu0 %v675
      %1000 = vmatpush.msra.mxu0 %v663
      %1001 = vmatpush.msra.mxu0 %v651
      %1002 = vmatpush.msra.mxu0 %v639
      %1003 = vmatpush.msra.mxu0 %v627
      %1004 = vmatpush.msra.mxu0 %v615
      %1005 = vmatpush.msra.mxu0 %v603
      %1006 = vmatpush.msra.mxu0 %v591
      %1007 = vmatpush.msra.mxu0 %v579
      %1008 = vmatpush.msra.mxu0 %v567
      %1009 = vmatpush.msra.mxu0 %v555
      %1010 = vmatpush.msra.mxu0 %v543
      %1011 = vmatpush.msra.mxu0 %v525
      %1012 = vmatmul.f32.gmra.mxu0 %v527
      %v1013 = vpop.f32.mrf.mxu0
      %v1014 = vadd.f32 %v850, %v1013
      %1015 = vmatmul.f32.gmra.mxu0 %v529
      %v1016 = vpop.f32.mrf.mxu0
      %v1017 = vadd.f32 %v855, %v1016
      %1018 = vmatmul.f32.gmra.mxu0 %v531
      %v1019 = vpop.f32.mrf.mxu0
      %v1020 = vadd.f32 %v860, %v1019
      %1021 = vmatmul.f32.gmra.mxu0 %v533
      %v1022 = vpop.f32.mrf.mxu0
      %v1023 = vadd.f32 %v865, %v1022
      %1024 = vdwg.mxu0
      %1025 = vmatpush.msra.mxu0 0.0
      %1026 = vmatpush.msra.mxu0 0.0
      %1027 = vmatpush.msra.mxu0 0.0
      %1028 = vmatpush.msra.mxu0 0.0
      %1029 = vmatpush.msra.mxu0 0.0
      %1030 = vmatpush.msra.mxu0 0.0
      %1031 = vmatpush.msra.mxu0 0.0
      %1032 = vmatpush.msra.mxu0 %v796
      %1033 = vmatpush.msra.mxu0 %v790
      %1034 = vmatpush.msra.mxu0 %v784
      %1035 = vmatpush.msra.mxu0 %v778
      %1036 = vmatpush.msra.mxu0 %v772
      %1037 = vmatpush.msra.mxu0 %v766
      %1038 = vmatpush.msra.mxu0 %v760
      %1039 = vmatpush.msra.mxu0 %v754
      %1040 = vmatpush.msra.mxu0 %v748
      %1041 = vmatmul.f32.gmra.mxu0 %v869
      %v1042 = vpop.f32.mrf.mxu0
      %v1043 = vadd.f32 %v1014, %v1042
      %1044 = vmatmul.f32.gmra.mxu0 %v872
      %v1045 = vpop.f32.mrf.mxu0
      %v1046 = vadd.f32 %v1017, %v1045
      %1047 = vmatmul.f32.gmra.mxu0 %v875
      %v1048 = vpop.f32.mrf.mxu0
      %v1049 = vadd.f32 %v1020, %v1048
      %1050 = vmatmul.f32.gmra.mxu0 %v878
      %v1051 = vpop.f32.mrf.mxu0
      %v1052 = vadd.f32 %v1023, %v1051
      %1053 = vdwg.mxu0
      %vm1054 = vcmp.ge.f32.partialorder %v927, 0.0
      %vm1055 = vcmp.ge.f32.partialorder %v985, 0.0
      %vm1056 = vcmp.ge.f32.partialorder %v1043, 0.0
      %vm1057 = vcmp.ge.f32.partialorder %v930, 0.0
      %vm1058 = vcmp.ge.f32.partialorder %v988, 0.0
      %vm1059 = vcmp.ge.f32.partialorder %v1046, 0.0
      %vm1060 = vcmp.ge.f32.partialorder %v933, 0.0
      %vm1061 = vcmp.ge.f32.partialorder %v991, 0.0
      %vm1062 = vcmp.ge.f32.partialorder %v1049, 0.0
      %vm1063 = vcmp.ge.f32.partialorder %v936, 0.0
      %vm1064 = vcmp.ge.f32.partialorder %v994, 0.0
      %vm1065 = vcmp.ge.f32.partialorder %v1052, 0.0
      %v1066 = vmul.f32 %v927, 0.2
      %v1067 = vmul.f32 %v985, 0.2
      %v1068 = vmul.f32 %v1043, 0.2
      %v1069 = vmul.f32 %v930, 0.2
      %v1070 = vmul.f32 %v988, 0.2
      %v1071 = vmul.f32 %v1046, 0.2
      %v1072 = vmul.f32 %v933, 0.2
      %v1073 = vmul.f32 %v991, 0.2
      %v1074 = vmul.f32 %v1049, 0.2
      %v1075 = vmul.f32 %v936, 0.2
      %v1076 = vmul.f32 %v994, 0.2
      %v1077 = vmul.f32 %v1052, 0.2
      %v1078 = vsel %vm1054, %v927, %v1066
      %v1079 = vsel %vm1055, %v985, %v1067
      %v1080 = vsel %vm1056, %v1043, %v1068
      %v1081 = vsel %vm1057, %v930, %v1069
      %v1082 = vsel %vm1058, %v988, %v1070
      %v1083 = vsel %vm1059, %v1046, %v1071
      %v1084 = vsel %vm1060, %v933, %v1072
      %v1085 = vsel %vm1061, %v991, %v1073
      %v1086 = vsel %vm1062, %v1049, %v1074
      %v1087 = vsel %vm1063, %v936, %v1075
      %v1088 = vsel %vm1064, %v994, %v1076
      %v1089 = vsel %vm1065, %v1052, %v1077
      %v1091 = vperm.slane %v522, 0
      %v1092 = vperm.slane %v522, 1
      %v1093 = vperm.slane %v522, 2
      %v1097 = vmul.f32 %v1078, %v1091
      %v1098 = vmul.f32 %v1079, %v1092
      %v1099 = vmul.f32 %v1080, %v1093
      %v1100 = vmul.f32 %v1081, %v1091
      %v1101 = vmul.f32 %v1082, %v1092
      %v1102 = vmul.f32 %v1083, %v1093
      %v1103 = vmul.f32 %v1084, %v1091
      %v1104 = vmul.f32 %v1085, %v1092
      %v1105 = vmul.f32 %v1086, %v1093
      %v1106 = vmul.f32 %v1087, %v1091
      %v1107 = vmul.f32 %v1088, %v1092
      %v1108 = vmul.f32 %v1089, %v1093
      %1121 = vrot.lane.b32.xlu0 %v1097, 42
      %v1122 = vpop.permute.xlu0 %1121
      %1123 = vrot.lane.b32.xlu0 %v1098, 42
      %v1124 = vpop.permute.xlu0 %1123
      %1125 = vrot.lane.b32.xlu0 %v1099, 42
      %v1126 = vpop.permute.xlu0 %1125
      %1127 = vrot.lane.b32.xlu0 %v1100, 42
      %v1128 = vpop.permute.xlu0 %1127
      %1129 = vrot.lane.b32.xlu0 %v1101, 42
      %v1130 = vpop.permute.xlu0 %1129
      %1131 = vrot.lane.b32.xlu0 %v1102, 42
      %v1132 = vpop.permute.xlu0 %1131
      %1133 = vrot.lane.b32.xlu0 %v1103, 42
      %v1134 = vpop.permute.xlu0 %1133
      %1135 = vrot.lane.b32.xlu0 %v1104, 42
      %v1136 = vpop.permute.xlu0 %1135
      %1137 = vrot.lane.b32.xlu0 %v1105, 42
      %v1138 = vpop.permute.xlu0 %1137
      %1139 = vrot.lane.b32.xlu0 %v1106, 42
      %v1140 = vpop.permute.xlu0 %1139
      %1141 = vrot.lane.b32.xlu0 %v1107, 42
      %v1142 = vpop.permute.xlu0 %1141
      %1143 = vrot.lane.b32.xlu0 %v1108, 42
      %v1144 = vpop.permute.xlu0 %1143
      %vm1145 = vcmask 343040
      %v1146 = vsel %vm1145, %v1122, %v1124
      %v1147 = vsel %vm1145, %v1124, %v1126
      %v1148 = vsel %vm1145, %v1128, %v1130
      %v1149 = vsel %vm1145, %v1130, %v1132
      %v1150 = vsel %vm1145, %v1134, %v1136
      %v1151 = vsel %vm1145, %v1136, %v1138
      %v1152 = vsel %vm1145, %v1140, %v1142
      %v1153 = vsel %vm1145, %v1142, %v1144
      %v1166 = vsel %vm1145, 0.0, %v1122
      %v1167 = vsel %vm1145, 0.0, %v1128
      %v1168 = vsel %vm1145, 0.0, %v1134
      %v1169 = vsel %vm1145, 0.0, %v1140
      %v1170 = vsel %vm616, %v1147, 0.0
      %v1171 = vsel %vm616, %v1149, 0.0
      %v1172 = vsel %vm616, %v1151, 0.0
      %v1173 = vsel %vm616, %v1153, 0.0
      %v1174 = vld [vmem:[%s4] sm:$0xff]
      %v1175 = vld [vmem:[%s4 + $0x8] sm:$0xff]
      %v1176 = vld [vmem:[%s4 + $0x10] sm:$0xff]
      %v1177 = vld [vmem:[%s4 + $0x18] sm:$0xff]
      %v1178 = vld [vmem:[%s4 + $0x20] sm:$0xff]
      %v1179 = vld [vmem:[%s4 + $0x28] sm:$0xff]
      %v1180 = vld [vmem:[%s4 + $0x30] sm:$0xff]
      %v1181 = vld [vmem:[%s4 + $0x38] sm:$0xff]
      %v1182 = vld [vmem:[%s4 + $0x40] sm:$0xff]
      %v1183 = vld [vmem:[%s4 + $0x48] sm:$0xff]
      %v1184 = vld [vmem:[%s4 + $0x50] sm:$0xff]
      %v1185 = vld [vmem:[%s4 + $0x58] sm:$0xff]
      %v1186 = vld [vmem:[%s4 + $0x60] sm:$0xff]
      %v1187 = vld [vmem:[%s4 + $0x68] sm:$0xff]
      %v1188 = vld [vmem:[%s4 + $0x70] sm:$0xff]
      %v1189 = vld [vmem:[%s4 + $0x78] sm:$0xff]
      %v1190 = vld [vmem:[%s4 + $0x80] sm:$0xff]
      %v1191 = vld [vmem:[%s4 + $0x88] sm:$0xff]
      %v1192 = vld [vmem:[%s4 + $0x90] sm:$0xff]
      %v1193 = vld [vmem:[%s4 + $0x98] sm:$0xff]
      %v1194 = vld [vmem:[%s4 + $0xa0] sm:$0xff]
      %v1195 = vld [vmem:[%s4 + $0xa8] sm:$0xff]
      %v1196 = vld [vmem:[%s4 + $0xb0] sm:$0xff]
      %v1197 = vld [vmem:[%s4 + $0xb8] sm:$0xff]
      %v1198 = vld [vmem:[%s4 + $0xc0] sm:$0xff]
      %v1199 = vld [vmem:[%s4 + $0xc8] sm:$0xff]
      %v1200 = vld [vmem:[%s4 + $0xd0] sm:$0xff]
      %v1201 = vld [vmem:[%s4 + $0xd8] sm:$0xff]
      %1210 = vrot.lane.b32.xlu0 %v1166, 127
      %v1211 = vpop.permute.xlu0 %1210
      %1212 = vrot.lane.b32.xlu0 %v1146, 127
      %v1213 = vpop.permute.xlu0 %1212
      %1214 = vrot.lane.b32.xlu0 %v1170, 127
      %v1215 = vpop.permute.xlu0 %1214
      %1216 = vrot.lane.b32.xlu0 %v1167, 127
      %v1217 = vpop.permute.xlu0 %1216
      %1218 = vrot.lane.b32.xlu0 %v1148, 127
      %v1219 = vpop.permute.xlu0 %1218
      %1220 = vrot.lane.b32.xlu0 %v1171, 127
      %v1221 = vpop.permute.xlu0 %1220
      %1222 = vrot.lane.b32.xlu0 %v1168, 127
      %v1223 = vpop.permute.xlu0 %1222
      %1224 = vrot.lane.b32.xlu0 %v1150, 127
      %v1225 = vpop.permute.xlu0 %1224
      %1226 = vrot.lane.b32.xlu0 %v1172, 127
      %v1227 = vpop.permute.xlu0 %1226
      %1228 = vrot.lane.b32.xlu0 %v1169, 127
      %v1229 = vpop.permute.xlu0 %1228
      %1230 = vrot.lane.b32.xlu0 %v1152, 127
      %v1231 = vpop.permute.xlu0 %1230
      %1232 = vrot.lane.b32.xlu0 %v1173, 127
      %v1233 = vpop.permute.xlu0 %1232
      %v1234 = vsel %vm544, %v1211, %v1213
      %v1235 = vsel %vm544, %v1213, %v1215
      %v1236 = vsel %vm544, %v1217, %v1219
      %v1237 = vsel %vm544, %v1219, %v1221
      %v1238 = vsel %vm544, %v1223, %v1225
      %v1239 = vsel %vm544, %v1225, %v1227
      %v1240 = vsel %vm544, %v1229, %v1231
      %v1241 = vsel %vm544, %v1231, %v1233
      %1254 = vrot.lane.b32.xlu0 %v1166, 126
      %v1255 = vpop.permute.xlu0 %1254
      %1256 = vrot.lane.b32.xlu0 %v1146, 126
      %v1257 = vpop.permute.xlu0 %1256
      %1258 = vrot.lane.b32.xlu0 %v1170, 126
      %v1259 = vpop.permute.xlu0 %1258
      %1260 = vrot.lane.b32.xlu0 %v1167, 126
      %v1261 = vpop.permute.xlu0 %1260
      %1262 = vrot.lane.b32.xlu0 %v1148, 126
      %v1263 = vpop.permute.xlu0 %1262
      %1264 = vrot.lane.b32.xlu0 %v1171, 126
      %v1265 = vpop.permute.xlu0 %1264
      %1266 = vrot.lane.b32.xlu0 %v1168, 126
      %v1267 = vpop.permute.xlu0 %1266
      %1268 = vrot.lane.b32.xlu0 %v1150, 126
      %v1269 = vpop.permute.xlu0 %1268
      %1270 = vrot.lane.b32.xlu0 %v1172, 126
      %v1271 = vpop.permute.xlu0 %1270
      %1272 = vrot.lane.b32.xlu0 %v1169, 126
      %v1273 = vpop.permute.xlu0 %1272
      %1274 = vrot.lane.b32.xlu0 %v1152, 126
      %v1275 = vpop.permute.xlu0 %1274
      %1276 = vrot.lane.b32.xlu0 %v1173, 126
      %v1277 = vpop.permute.xlu0 %1276
      %v1278 = vsel %vm556, %v1255, %v1257
      %v1279 = vsel %vm556, %v1257, %v1259
      %v1280 = vsel %vm556, %v1261, %v1263
      %v1281 = vsel %vm556, %v1263, %v1265
      %v1282 = vsel %vm556, %v1267, %v1269
      %v1283 = vsel %vm556, %v1269, %v1271
      %v1284 = vsel %vm556, %v1273, %v1275
      %v1285 = vsel %vm556, %v1275, %v1277
      %1298 = vrot.lane.b32.xlu0 %v1166, 125
      %v1299 = vpop.permute.xlu0 %1298
      %1300 = vrot.lane.b32.xlu0 %v1146, 125
      %v1301 = vpop.permute.xlu0 %1300
      %1302 = vrot.lane.b32.xlu0 %v1170, 125
      %v1303 = vpop.permute.xlu0 %1302
      %1304 = vrot.lane.b32.xlu0 %v1167, 125
      %v1305 = vpop.permute.xlu0 %1304
      %1306 = vrot.lane.b32.xlu0 %v1148, 125
      %v1307 = vpop.permute.xlu0 %1306
      %1308 = vrot.lane.b32.xlu0 %v1171, 125
      %v1309 = vpop.permute.xlu0 %1308
      %1310 = vrot.lane.b32.xlu0 %v1168, 125
      %v1311 = vpop.permute.xlu0 %1310
      %1312 = vrot.lane.b32.xlu0 %v1150, 125
      %v1313 = vpop.permute.xlu0 %1312
      %1314 = vrot.lane.b32.xlu0 %v1172, 125
      %v1315 = vpop.permute.xlu0 %1314
      %1316 = vrot.lane.b32.xlu0 %v1169, 125
      %v1317 = vpop.permute.xlu0 %1316
      %1318 = vrot.lane.b32.xlu0 %v1152, 125
      %v1319 = vpop.permute.xlu0 %1318
      %1320 = vrot.lane.b32.xlu0 %v1173, 125
      %v1321 = vpop.permute.xlu0 %1320
      %v1322 = vsel %vm568, %v1299, %v1301
      %v1323 = vsel %vm568, %v1301, %v1303
      %v1324 = vsel %vm568, %v1305, %v1307
      %v1325 = vsel %vm568, %v1307, %v1309
      %v1326 = vsel %vm568, %v1311, %v1313
      %v1327 = vsel %vm568, %v1313, %v1315
      %v1328 = vsel %vm568, %v1317, %v1319
      %v1329 = vsel %vm568, %v1319, %v1321
      %1342 = vrot.lane.b32.xlu0 %v1166, 124
      %v1343 = vpop.permute.xlu0 %1342
      %1344 = vrot.lane.b32.xlu0 %v1146, 124
      %v1345 = vpop.permute.xlu0 %1344
      %1346 = vrot.lane.b32.xlu0 %v1170, 124
      %v1347 = vpop.permute.xlu0 %1346
      %1348 = vrot.lane.b32.xlu0 %v1167, 124
      %v1349 = vpop.permute.xlu0 %1348
      %1350 = vrot.lane.b32.xlu0 %v1148, 124
      %v1351 = vpop.permute.xlu0 %1350
      %1352 = vrot.lane.b32.xlu0 %v1171, 124
      %v1353 = vpop.permute.xlu0 %1352
      %1354 = vrot.lane.b32.xlu0 %v1168, 124
      %v1355 = vpop.permute.xlu0 %1354
      %1356 = vrot.lane.b32.xlu0 %v1150, 124
      %v1357 = vpop.permute.xlu0 %1356
      %1358 = vrot.lane.b32.xlu0 %v1172, 124
      %v1359 = vpop.permute.xlu0 %1358
      %1360 = vrot.lane.b32.xlu0 %v1169, 124
      %v1361 = vpop.permute.xlu0 %1360
      %1362 = vrot.lane.b32.xlu0 %v1152, 124
      %v1363 = vpop.permute.xlu0 %1362
      %1364 = vrot.lane.b32.xlu0 %v1173, 124
      %v1365 = vpop.permute.xlu0 %1364
      %v1366 = vsel %vm580, %v1343, %v1345
      %v1367 = vsel %vm580, %v1345, %v1347
      %v1368 = vsel %vm580, %v1349, %v1351
      %v1369 = vsel %vm580, %v1351, %v1353
      %v1370 = vsel %vm580, %v1355, %v1357
      %v1371 = vsel %vm580, %v1357, %v1359
      %v1372 = vsel %vm580, %v1361, %v1363
      %v1373 = vsel %vm580, %v1363, %v1365
      %1386 = vrot.lane.b32.xlu0 %v1166, 108
      %v1387 = vpop.permute.xlu0 %1386
      %1388 = vrot.lane.b32.xlu0 %v1146, 108
      %v1389 = vpop.permute.xlu0 %1388
      %1390 = vrot.lane.b32.xlu0 %v1170, 108
      %v1391 = vpop.permute.xlu0 %1390
      %1392 = vrot.lane.b32.xlu0 %v1167, 108
      %v1393 = vpop.permute.xlu0 %1392
      %1394 = vrot.lane.b32.xlu0 %v1148, 108
      %v1395 = vpop.permute.xlu0 %1394
      %1396 = vrot.lane.b32.xlu0 %v1171, 108
      %v1397 = vpop.permute.xlu0 %1396
      %1398 = vrot.lane.b32.xlu0 %v1168, 108
      %v1399 = vpop.permute.xlu0 %1398
      %1400 = vrot.lane.b32.xlu0 %v1150, 108
      %v1401 = vpop.permute.xlu0 %1400
      %1402 = vrot.lane.b32.xlu0 %v1172, 108
      %v1403 = vpop.permute.xlu0 %1402
      %1404 = vrot.lane.b32.xlu0 %v1169, 108
      %v1405 = vpop.permute.xlu0 %1404
      %1406 = vrot.lane.b32.xlu0 %v1152, 108
      %v1407 = vpop.permute.xlu0 %1406
      %1408 = vrot.lane.b32.xlu0 %v1173, 108
      %v1409 = vpop.permute.xlu0 %1408
      %v1410 = vsel %vm592, %v1387, %v1389
      %v1411 = vsel %vm592, %v1389, %v1391
      %v1412 = vsel %vm592, %v1393, %v1395
      %v1413 = vsel %vm592, %v1395, %v1397
      %v1414 = vsel %vm592, %v1399, %v1401
      %v1415 = vsel %vm592, %v1401, %v1403
      %v1416 = vsel %vm592, %v1405, %v1407
      %v1417 = vsel %vm592, %v1407, %v1409
      %1430 = vrot.lane.b32.xlu0 %v1166, 107
      %v1431 = vpop.permute.xlu0 %1430
      %1432 = vrot.lane.b32.xlu0 %v1146, 107
      %v1433 = vpop.permute.xlu0 %1432
      %1434 = vrot.lane.b32.xlu0 %v1170, 107
      %v1435 = vpop.permute.xlu0 %1434
      %1436 = vrot.lane.b32.xlu0 %v1167, 107
      %v1437 = vpop.permute.xlu0 %1436
      %1438 = vrot.lane.b32.xlu0 %v1148, 107
      %v1439 = vpop.permute.xlu0 %1438
      %1440 = vrot.lane.b32.xlu0 %v1171, 107
      %v1441 = vpop.permute.xlu0 %1440
      %1442 = vrot.lane.b32.xlu0 %v1168, 107
      %v1443 = vpop.permute.xlu0 %1442
      %1444 = vrot.lane.b32.xlu0 %v1150, 107
      %v1445 = vpop.permute.xlu0 %1444
      %1446 = vrot.lane.b32.xlu0 %v1172, 107
      %v1447 = vpop.permute.xlu0 %1446
      %1448 = vrot.lane.b32.xlu0 %v1169, 107
      %v1449 = vpop.permute.xlu0 %1448
      %1450 = vrot.lane.b32.xlu0 %v1152, 107
      %v1451 = vpop.permute.xlu0 %1450
      %1452 = vrot.lane.b32.xlu0 %v1173, 107
      %v1453 = vpop.permute.xlu0 %1452
      %v1454 = vsel %vm604, %v1431, %v1433
      %v1455 = vsel %vm604, %v1433, %v1435
      %v1456 = vsel %vm604, %v1437, %v1439
      %v1457 = vsel %vm604, %v1439, %v1441
      %v1458 = vsel %vm604, %v1443, %v1445
      %v1459 = vsel %vm604, %v1445, %v1447
      %v1460 = vsel %vm604, %v1449, %v1451
      %v1461 = vsel %vm604, %v1451, %v1453
      %1474 = vrot.lane.b32.xlu0 %v1166, 106
      %v1475 = vpop.permute.xlu0 %1474
      %1476 = vrot.lane.b32.xlu0 %v1146, 106
      %v1477 = vpop.permute.xlu0 %1476
      %1478 = vrot.lane.b32.xlu0 %v1170, 106
      %v1479 = vpop.permute.xlu0 %1478
      %1480 = vrot.lane.b32.xlu0 %v1167, 106
      %v1481 = vpop.permute.xlu0 %1480
      %1482 = vrot.lane.b32.xlu0 %v1148, 106
      %v1483 = vpop.permute.xlu0 %1482
      %1484 = vrot.lane.b32.xlu0 %v1171, 106
      %v1485 = vpop.permute.xlu0 %1484
      %1486 = vrot.lane.b32.xlu0 %v1168, 106
      %v1487 = vpop.permute.xlu0 %1486
      %1488 = vrot.lane.b32.xlu0 %v1150, 106
      %v1489 = vpop.permute.xlu0 %1488
      %1490 = vrot.lane.b32.xlu0 %v1172, 106
      %v1491 = vpop.permute.xlu0 %1490
      %1492 = vrot.lane.b32.xlu0 %v1169, 106
      %v1493 = vpop.permute.xlu0 %1492
      %1494 = vrot.lane.b32.xlu0 %v1152, 106
      %v1495 = vpop.permute.xlu0 %1494
      %1496 = vrot.lane.b32.xlu0 %v1173, 106
      %v1497 = vpop.permute.xlu0 %1496
      %v1498 = vsel %vm616, %v1475, %v1477
      %v1499 = vsel %vm616, %v1477, %v1479
      %v1500 = vsel %vm616, %v1481, %v1483
      %v1501 = vsel %vm616, %v1483, %v1485
      %v1502 = vsel %vm616, %v1487, %v1489
      %v1503 = vsel %vm616, %v1489, %v1491
      %v1504 = vsel %vm616, %v1493, %v1495
      %v1505 = vsel %vm616, %v1495, %v1497
      %1518 = vrot.lane.b32.xlu0 %v1166, 105
      %v1519 = vpop.permute.xlu0 %1518
      %1520 = vrot.lane.b32.xlu0 %v1146, 105
      %v1521 = vpop.permute.xlu0 %1520
      %1522 = vrot.lane.b32.xlu0 %v1170, 105
      %v1523 = vpop.permute.xlu0 %1522
      %1524 = vrot.lane.b32.xlu0 %v1167, 105
      %v1525 = vpop.permute.xlu0 %1524
      %1526 = vrot.lane.b32.xlu0 %v1148, 105
      %v1527 = vpop.permute.xlu0 %1526
      %1528 = vrot.lane.b32.xlu0 %v1171, 105
      %v1529 = vpop.permute.xlu0 %1528
      %1530 = vrot.lane.b32.xlu0 %v1168, 105
      %v1531 = vpop.permute.xlu0 %1530
      %1532 = vrot.lane.b32.xlu0 %v1150, 105
      %v1533 = vpop.permute.xlu0 %1532
      %1534 = vrot.lane.b32.xlu0 %v1172, 105
      %v1535 = vpop.permute.xlu0 %1534
      %1536 = vrot.lane.b32.xlu0 %v1169, 105
      %v1537 = vpop.permute.xlu0 %1536
      %1538 = vrot.lane.b32.xlu0 %v1152, 105
      %v1539 = vpop.permute.xlu0 %1538
      %1540 = vrot.lane.b32.xlu0 %v1173, 105
      %v1541 = vpop.permute.xlu0 %1540
      %v1542 = vsel %vm628, %v1519, %v1521
      %v1543 = vsel %vm628, %v1521, %v1523
      %v1544 = vsel %vm628, %v1525, %v1527
      %v1545 = vsel %vm628, %v1527, %v1529
      %v1546 = vsel %vm628, %v1531, %v1533
      %v1547 = vsel %vm628, %v1533, %v1535
      %v1548 = vsel %vm628, %v1537, %v1539
      %v1549 = vsel %vm628, %v1539, %v1541
      %1562 = vrot.lane.b32.xlu0 %v1166, 104
      %v1563 = vpop.permute.xlu0 %1562
      %1564 = vrot.lane.b32.xlu0 %v1146, 104
      %v1565 = vpop.permute.xlu0 %1564
      %1566 = vrot.lane.b32.xlu0 %v1170, 104
      %v1567 = vpop.permute.xlu0 %1566
      %1568 = vrot.lane.b32.xlu0 %v1167, 104
      %v1569 = vpop.permute.xlu0 %1568
      %1570 = vrot.lane.b32.xlu0 %v1148, 104
      %v1571 = vpop.permute.xlu0 %1570
      %1572 = vrot.lane.b32.xlu0 %v1171, 104
      %v1573 = vpop.permute.xlu0 %1572
      %1574 = vrot.lane.b32.xlu0 %v1168, 104
      %v1575 = vpop.permute.xlu0 %1574
      %1576 = vrot.lane.b32.xlu0 %v1150, 104
      %v1577 = vpop.permute.xlu0 %1576
      %1578 = vrot.lane.b32.xlu0 %v1172, 104
      %v1579 = vpop.permute.xlu0 %1578
      %1580 = vrot.lane.b32.xlu0 %v1169, 104
      %v1581 = vpop.permute.xlu0 %1580
      %1582 = vrot.lane.b32.xlu0 %v1152, 104
      %v1583 = vpop.permute.xlu0 %1582
      %1584 = vrot.lane.b32.xlu0 %v1173, 104
      %v1585 = vpop.permute.xlu0 %1584
      %v1586 = vsel %vm640, %v1563, %v1565
      %v1587 = vsel %vm640, %v1565, %v1567
      %v1588 = vsel %vm640, %v1569, %v1571
      %v1589 = vsel %vm640, %v1571, %v1573
      %v1590 = vsel %vm640, %v1575, %v1577
      %v1591 = vsel %vm640, %v1577, %v1579
      %v1592 = vsel %vm640, %v1581, %v1583
      %v1593 = vsel %vm640, %v1583, %v1585
      %1606 = vrot.lane.b32.xlu0 %v1166, 88
      %v1607 = vpop.permute.xlu0 %1606
      %1608 = vrot.lane.b32.xlu0 %v1146, 88
      %v1609 = vpop.permute.xlu0 %1608
      %1610 = vrot.lane.b32.xlu0 %v1170, 88
      %v1611 = vpop.permute.xlu0 %1610
      %1612 = vrot.lane.b32.xlu0 %v1167, 88
      %v1613 = vpop.permute.xlu0 %1612
      %1614 = vrot.lane.b32.xlu0 %v1148, 88
      %v1615 = vpop.permute.xlu0 %1614
      %1616 = vrot.lane.b32.xlu0 %v1171, 88
      %v1617 = vpop.permute.xlu0 %1616
      %1618 = vrot.lane.b32.xlu0 %v1168, 88
      %v1619 = vpop.permute.xlu0 %1618
      %1620 = vrot.lane.b32.xlu0 %v1150, 88
      %v1621 = vpop.permute.xlu0 %1620
      %1622 = vrot.lane.b32.xlu0 %v1172, 88
      %v1623 = vpop.permute.xlu0 %1622
      %1624 = vrot.lane.b32.xlu0 %v1169, 88
      %v1625 = vpop.permute.xlu0 %1624
      %1626 = vrot.lane.b32.xlu0 %v1152, 88
      %v1627 = vpop.permute.xlu0 %1626
      %1628 = vrot.lane.b32.xlu0 %v1173, 88
      %v1629 = vpop.permute.xlu0 %1628
      %v1630 = vsel %vm652, %v1607, %v1609
      %v1631 = vsel %vm652, %v1609, %v1611
      %v1632 = vsel %vm652, %v1613, %v1615
      %v1633 = vsel %vm652, %v1615, %v1617
      %v1634 = vsel %vm652, %v1619, %v1621
      %v1635 = vsel %vm652, %v1621, %v1623
      %v1636 = vsel %vm652, %v1625, %v1627
      %v1637 = vsel %vm652, %v1627, %v1629
      %1650 = vrot.lane.b32.xlu0 %v1166, 87
      %v1651 = vpop.permute.xlu0 %1650
      %1652 = vrot.lane.b32.xlu0 %v1146, 87
      %v1653 = vpop.permute.xlu0 %1652
      %1654 = vrot.lane.b32.xlu0 %v1170, 87
      %v1655 = vpop.permute.xlu0 %1654
      %1656 = vrot.lane.b32.xlu0 %v1167, 87
      %v1657 = vpop.permute.xlu0 %1656
      %1658 = vrot.lane.b32.xlu0 %v1148, 87
      %v1659 = vpop.permute.xlu0 %1658
      %1660 = vrot.lane.b32.xlu0 %v1171, 87
      %v1661 = vpop.permute.xlu0 %1660
      %1662 = vrot.lane.b32.xlu0 %v1168, 87
      %v1663 = vpop.permute.xlu0 %1662
      %1664 = vrot.lane.b32.xlu0 %v1150, 87
      %v1665 = vpop.permute.xlu0 %1664
      %1666 = vrot.lane.b32.xlu0 %v1172, 87
      %v1667 = vpop.permute.xlu0 %1666
      %1668 = vrot.lane.b32.xlu0 %v1169, 87
      %v1669 = vpop.permute.xlu0 %1668
      %1670 = vrot.lane.b32.xlu0 %v1152, 87
      %v1671 = vpop.permute.xlu0 %1670
      %1672 = vrot.lane.b32.xlu0 %v1173, 87
      %v1673 = vpop.permute.xlu0 %1672
      %v1674 = vsel %vm664, %v1651, %v1653
      %v1675 = vsel %vm664, %v1653, %v1655
      %v1676 = vsel %vm664, %v1657, %v1659
      %v1677 = vsel %vm664, %v1659, %v1661
      %v1678 = vsel %vm664, %v1663, %v1665
      %v1679 = vsel %vm664, %v1665, %v1667
      %v1680 = vsel %vm664, %v1669, %v1671
      %v1681 = vsel %vm664, %v1671, %v1673
      %1694 = vrot.lane.b32.xlu0 %v1166, 86
      %v1695 = vpop.permute.xlu0 %1694
      %1696 = vrot.lane.b32.xlu0 %v1146, 86
      %v1697 = vpop.permute.xlu0 %1696
      %1698 = vrot.lane.b32.xlu0 %v1170, 86
      %v1699 = vpop.permute.xlu0 %1698
      %1700 = vrot.lane.b32.xlu0 %v1167, 86
      %v1701 = vpop.permute.xlu0 %1700
      %1702 = vrot.lane.b32.xlu0 %v1148, 86
      %v1703 = vpop.permute.xlu0 %1702
      %1704 = vrot.lane.b32.xlu0 %v1171, 86
      %v1705 = vpop.permute.xlu0 %1704
      %1706 = vrot.lane.b32.xlu0 %v1168, 86
      %v1707 = vpop.permute.xlu0 %1706
      %1708 = vrot.lane.b32.xlu0 %v1150, 86
      %v1709 = vpop.permute.xlu0 %1708
      %1710 = vrot.lane.b32.xlu0 %v1172, 86
      %v1711 = vpop.permute.xlu0 %1710
      %1712 = vrot.lane.b32.xlu0 %v1169, 86
      %v1713 = vpop.permute.xlu0 %1712
      %1714 = vrot.lane.b32.xlu0 %v1152, 86
      %v1715 = vpop.permute.xlu0 %1714
      %1716 = vrot.lane.b32.xlu0 %v1173, 86
      %v1717 = vpop.permute.xlu0 %1716
      %v1718 = vsel %vm676, %v1695, %v1697
      %v1719 = vsel %vm676, %v1697, %v1699
      %v1720 = vsel %vm676, %v1701, %v1703
      %v1721 = vsel %vm676, %v1703, %v1705
      %v1722 = vsel %vm676, %v1707, %v1709
      %v1723 = vsel %vm676, %v1709, %v1711
      %v1724 = vsel %vm676, %v1713, %v1715
      %v1725 = vsel %vm676, %v1715, %v1717
      %1738 = vrot.lane.b32.xlu0 %v1166, 85
      %v1739 = vpop.permute.xlu0 %1738
      %1740 = vrot.lane.b32.xlu0 %v1146, 85
      %v1741 = vpop.permute.xlu0 %1740
      %1742 = vrot.lane.b32.xlu0 %v1170, 85
      %v1743 = vpop.permute.xlu0 %1742
      %1744 = vrot.lane.b32.xlu0 %v1167, 85
      %v1745 = vpop.permute.xlu0 %1744
      %1746 = vrot.lane.b32.xlu0 %v1148, 85
      %v1747 = vpop.permute.xlu0 %1746
      %1748 = vrot.lane.b32.xlu0 %v1171, 85
      %v1749 = vpop.permute.xlu0 %1748
      %1750 = vrot.lane.b32.xlu0 %v1168, 85
      %v1751 = vpop.permute.xlu0 %1750
      %1752 = vrot.lane.b32.xlu0 %v1150, 85
      %v1753 = vpop.permute.xlu0 %1752
      %1754 = vrot.lane.b32.xlu0 %v1172, 85
      %v1755 = vpop.permute.xlu0 %1754
      %1756 = vrot.lane.b32.xlu0 %v1169, 85
      %v1757 = vpop.permute.xlu0 %1756
      %1758 = vrot.lane.b32.xlu0 %v1152, 85
      %v1759 = vpop.permute.xlu0 %1758
      %1760 = vrot.lane.b32.xlu0 %v1173, 85
      %v1761 = vpop.permute.xlu0 %1760
      %v1762 = vsel %vm688, %v1739, %v1741
      %v1763 = vsel %vm688, %v1741, %v1743
      %v1764 = vsel %vm688, %v1745, %v1747
      %v1765 = vsel %vm688, %v1747, %v1749
      %v1766 = vsel %vm688, %v1751, %v1753
      %v1767 = vsel %vm688, %v1753, %v1755
      %v1768 = vsel %vm688, %v1757, %v1759
      %v1769 = vsel %vm688, %v1759, %v1761
      %1782 = vrot.lane.b32.xlu0 %v1166, 84
      %v1783 = vpop.permute.xlu0 %1782
      %1784 = vrot.lane.b32.xlu0 %v1146, 84
      %v1785 = vpop.permute.xlu0 %1784
      %1786 = vrot.lane.b32.xlu0 %v1170, 84
      %v1787 = vpop.permute.xlu0 %1786
      %1788 = vrot.lane.b32.xlu0 %v1167, 84
      %v1789 = vpop.permute.xlu0 %1788
      %1790 = vrot.lane.b32.xlu0 %v1148, 84
      %v1791 = vpop.permute.xlu0 %1790
      %1792 = vrot.lane.b32.xlu0 %v1171, 84
      %v1793 = vpop.permute.xlu0 %1792
      %1794 = vrot.lane.b32.xlu0 %v1168, 84
      %v1795 = vpop.permute.xlu0 %1794
      %1796 = vrot.lane.b32.xlu0 %v1150, 84
      %v1797 = vpop.permute.xlu0 %1796
      %1798 = vrot.lane.b32.xlu0 %v1172, 84
      %v1799 = vpop.permute.xlu0 %1798
      %1800 = vrot.lane.b32.xlu0 %v1169, 84
      %v1801 = vpop.permute.xlu0 %1800
      %1802 = vrot.lane.b32.xlu0 %v1152, 84
      %v1803 = vpop.permute.xlu0 %1802
      %1804 = vrot.lane.b32.xlu0 %v1173, 84
      %v1805 = vpop.permute.xlu0 %1804
      %v1806 = vsel %vm700, %v1783, %v1785
      %v1807 = vsel %vm700, %v1785, %v1787
      %v1808 = vsel %vm700, %v1789, %v1791
      %v1809 = vsel %vm700, %v1791, %v1793
      %v1810 = vsel %vm700, %v1795, %v1797
      %v1811 = vsel %vm700, %v1797, %v1799
      %v1812 = vsel %vm700, %v1801, %v1803
      %v1813 = vsel %vm700, %v1803, %v1805
      %1826 = vrot.lane.b32.xlu0 %v1166, 68
      %v1827 = vpop.permute.xlu0 %1826
      %1828 = vrot.lane.b32.xlu0 %v1146, 68
      %v1829 = vpop.permute.xlu0 %1828
      %1830 = vrot.lane.b32.xlu0 %v1170, 68
      %v1831 = vpop.permute.xlu0 %1830
      %1832 = vrot.lane.b32.xlu0 %v1167, 68
      %v1833 = vpop.permute.xlu0 %1832
      %1834 = vrot.lane.b32.xlu0 %v1148, 68
      %v1835 = vpop.permute.xlu0 %1834
      %1836 = vrot.lane.b32.xlu0 %v1171, 68
      %v1837 = vpop.permute.xlu0 %1836
      %1838 = vrot.lane.b32.xlu0 %v1168, 68
      %v1839 = vpop.permute.xlu0 %1838
      %1840 = vrot.lane.b32.xlu0 %v1150, 68
      %v1841 = vpop.permute.xlu0 %1840
      %1842 = vrot.lane.b32.xlu0 %v1172, 68
      %v1843 = vpop.permute.xlu0 %1842
      %1844 = vrot.lane.b32.xlu0 %v1169, 68
      %v1845 = vpop.permute.xlu0 %1844
      %1846 = vrot.lane.b32.xlu0 %v1152, 68
      %v1847 = vpop.permute.xlu0 %1846
      %1848 = vrot.lane.b32.xlu0 %v1173, 68
      %v1849 = vpop.permute.xlu0 %1848
      %v1850 = vsel %vm712, %v1827, %v1829
      %v1851 = vsel %vm712, %v1829, %v1831
      %v1852 = vsel %vm712, %v1833, %v1835
      %v1853 = vsel %vm712, %v1835, %v1837
      %v1854 = vsel %vm712, %v1839, %v1841
      %v1855 = vsel %vm712, %v1841, %v1843
      %v1856 = vsel %vm712, %v1845, %v1847
      %v1857 = vsel %vm712, %v1847, %v1849
      %1871 = vrot.lane.b32.xlu0 %v1166, 109
      %v1872 = vpop.permute.xlu0 %1871
      %1873 = vrot.lane.b32.xlu0 %v1146, 109
      %v1874 = vpop.permute.xlu0 %1873
      %1875 = vrot.lane.b32.xlu0 %v1170, 109
      %v1876 = vpop.permute.xlu0 %1875
      %1877 = vrot.lane.b32.xlu0 0.0, 109
      %v1878 = vpop.permute.xlu0 %1877
      %1879 = vrot.lane.b32.xlu0 %v1167, 109
      %v1880 = vpop.permute.xlu0 %1879
      %1881 = vrot.lane.b32.xlu0 %v1148, 109
      %v1882 = vpop.permute.xlu0 %1881
      %1883 = vrot.lane.b32.xlu0 %v1171, 109
      %v1884 = vpop.permute.xlu0 %1883
      %1885 = vrot.lane.b32.xlu0 %v1168, 109
      %v1886 = vpop.permute.xlu0 %1885
      %1887 = vrot.lane.b32.xlu0 %v1150, 109
      %v1888 = vpop.permute.xlu0 %1887
      %1889 = vrot.lane.b32.xlu0 %v1172, 109
      %v1890 = vpop.permute.xlu0 %1889
      %1891 = vrot.lane.b32.xlu0 %v1169, 109
      %v1892 = vpop.permute.xlu0 %1891
      %1893 = vrot.lane.b32.xlu0 %v1152, 109
      %v1894 = vpop.permute.xlu0 %1893
      %1895 = vrot.lane.b32.xlu0 %v1173, 109
      %v1896 = vpop.permute.xlu0 %1895
      %v1897 = vsel %vm727, %v1872, %v1874
      %v1898 = vsel %vm727, %v1874, %v1876
      %v1899 = vsel %vm727, %v1876, %v1878
      %v1900 = vsel %vm727, %v1880, %v1882
      %v1901 = vsel %vm727, %v1882, %v1884
      %v1902 = vsel %vm727, %v1884, %v1878
      %v1903 = vsel %vm727, %v1886, %v1888
      %v1904 = vsel %vm727, %v1888, %v1890
      %v1905 = vsel %vm727, %v1890, %v1878
      %v1906 = vsel %vm727, %v1892, %v1894
      %v1907 = vsel %vm727, %v1894, %v1896
      %v1908 = vsel %vm727, %v1896, %v1878
      %1909 = vrot.lane.b32.xlu0 0.0, 108
      %v1910 = vpop.permute.xlu0 %1909
      %v1911 = vsel %vm592, %v1391, %v1910
      %v1912 = vsel %vm592, %v1397, %v1910
      %v1913 = vsel %vm592, %v1403, %v1910
      %v1914 = vsel %vm592, %v1409, %v1910
      %1915 = vrot.lane.b32.xlu0 0.0, 107
      %v1916 = vpop.permute.xlu0 %1915
      %v1917 = vsel %vm604, %v1435, %v1916
      %v1918 = vsel %vm604, %v1441, %v1916
      %v1919 = vsel %vm604, %v1447, %v1916
      %v1920 = vsel %vm604, %v1453, %v1916
      %1921 = vrot.lane.b32.xlu0 0.0, 106
      %v1922 = vpop.permute.xlu0 %1921
      %v1923 = vsel %vm616, %v1479, %v1922
      %v1924 = vsel %vm616, %v1485, %v1922
      %v1925 = vsel %vm616, %v1491, %v1922
      %v1926 = vsel %vm616, %v1497, %v1922
      %1927 = vrot.lane.b32.xlu0 0.0, 105
      %v1928 = vpop.permute.xlu0 %1927
      %v1929 = vsel %vm628, %v1523, %v1928
      %v1930 = vsel %vm628, %v1529, %v1928
      %v1931 = vsel %vm628, %v1535, %v1928
      %v1932 = vsel %vm628, %v1541, %v1928
      %1933 = vrot.lane.b32.xlu0 %v1166, 67
      %v1934 = vpop.permute.xlu0 %1933
      %1935 = vrot.lane.b32.xlu0 %v1146, 67
      %v1936 = vpop.permute.xlu0 %1935
      %1937 = vrot.lane.b32.xlu0 %v1170, 67
      %v1938 = vpop.permute.xlu0 %1937
      %1939 = vrot.lane.b32.xlu0 %v1167, 67
      %v1940 = vpop.permute.xlu0 %1939
      %1941 = vrot.lane.b32.xlu0 %v1148, 67
      %v1942 = vpop.permute.xlu0 %1941
      %1943 = vrot.lane.b32.xlu0 %v1171, 67
      %v1944 = vpop.permute.xlu0 %1943
      %1945 = vrot.lane.b32.xlu0 %v1168, 67
      %v1946 = vpop.permute.xlu0 %1945
      %1947 = vrot.lane.b32.xlu0 %v1150, 67
      %v1948 = vpop.permute.xlu0 %1947
      %1949 = vrot.lane.b32.xlu0 %v1172, 67
      %v1950 = vpop.permute.xlu0 %1949
      %1951 = vrot.lane.b32.xlu0 %v1169, 67
      %v1952 = vpop.permute.xlu0 %1951
      %1953 = vrot.lane.b32.xlu0 %v1152, 67
      %v1954 = vpop.permute.xlu0 %1953
      %1955 = vrot.lane.b32.xlu0 %v1173, 67
      %v1956 = vpop.permute.xlu0 %1955
      %1957 = vrot.lane.b32.xlu0 %v1234, 67
      %v1958 = vpop.permute.xlu0 %1957
      %1959 = vrot.lane.b32.xlu0 %v1235, 67
      %v1960 = vpop.permute.xlu0 %1959
      %1961 = vrot.lane.b32.xlu0 %v1215, 67
      %v1962 = vpop.permute.xlu0 %1961
      %1963 = vrot.lane.b32.xlu0 %v1236, 67
      %v1964 = vpop.permute.xlu0 %1963
      %1965 = vrot.lane.b32.xlu0 %v1237, 67
      %v1966 = vpop.permute.xlu0 %1965
      %1967 = vrot.lane.b32.xlu0 %v1221, 67
      %v1968 = vpop.permute.xlu0 %1967
      %1969 = vrot.lane.b32.xlu0 %v1238, 67
      %v1970 = vpop.permute.xlu0 %1969
      %1971 = vrot.lane.b32.xlu0 %v1239, 67
      %v1972 = vpop.permute.xlu0 %1971
      %1973 = vrot.lane.b32.xlu0 %v1227, 67
      %v1974 = vpop.permute.xlu0 %1973
      %1975 = vrot.lane.b32.xlu0 %v1240, 67
      %v1976 = vpop.permute.xlu0 %1975
      %1977 = vrot.lane.b32.xlu0 %v1241, 67
      %v1978 = vpop.permute.xlu0 %1977
      %1979 = vrot.lane.b32.xlu0 %v1233, 67
      %v1980 = vpop.permute.xlu0 %1979
      %1981 = vrot.lane.b32.xlu0 %v1278, 67
      %v1982 = vpop.permute.xlu0 %1981
      %1983 = vrot.lane.b32.xlu0 %v1279, 67
      %v1984 = vpop.permute.xlu0 %1983
      %1985 = vrot.lane.b32.xlu0 %v1259, 67
      %v1986 = vpop.permute.xlu0 %1985
      %1987 = vrot.lane.b32.xlu0 %v1280, 67
      %v1988 = vpop.permute.xlu0 %1987
      %1989 = vrot.lane.b32.xlu0 %v1281, 67
      %v1990 = vpop.permute.xlu0 %1989
      %1991 = vrot.lane.b32.xlu0 %v1265, 67
      %v1992 = vpop.permute.xlu0 %1991
      %1993 = vrot.lane.b32.xlu0 %v1282, 67
      %v1994 = vpop.permute.xlu0 %1993
      %1995 = vrot.lane.b32.xlu0 %v1283, 67
      %v1996 = vpop.permute.xlu0 %1995
      %1997 = vrot.lane.b32.xlu0 %v1271, 67
      %v1998 = vpop.permute.xlu0 %1997
      %1999 = vrot.lane.b32.xlu0 %v1284, 67
      %v2000 = vpop.permute.xlu0 %1999
      %2001 = vrot.lane.b32.xlu0 %v1285, 67
      %v2002 = vpop.permute.xlu0 %2001
      %2003 = vrot.lane.b32.xlu0 %v1277, 67
      %v2004 = vpop.permute.xlu0 %2003
      %2005 = vrot.lane.b32.xlu0 %v1322, 67
      %v2006 = vpop.permute.xlu0 %2005
      %2007 = vrot.lane.b32.xlu0 %v1323, 67
      %v2008 = vpop.permute.xlu0 %2007
      %2009 = vrot.lane.b32.xlu0 %v1303, 67
      %v2010 = vpop.permute.xlu0 %2009
      %2011 = vrot.lane.b32.xlu0 %v1324, 67
      %v2012 = vpop.permute.xlu0 %2011
      %2013 = vrot.lane.b32.xlu0 %v1325, 67
      %v2014 = vpop.permute.xlu0 %2013
      %2015 = vrot.lane.b32.xlu0 %v1309, 67
      %v2016 = vpop.permute.xlu0 %2015
      %2017 = vrot.lane.b32.xlu0 %v1326, 67
      %v2018 = vpop.permute.xlu0 %2017
      %2019 = vrot.lane.b32.xlu0 %v1327, 67
      %v2020 = vpop.permute.xlu0 %2019
      %2021 = vrot.lane.b32.xlu0 %v1315, 67
      %v2022 = vpop.permute.xlu0 %2021
      %2023 = vrot.lane.b32.xlu0 %v1328, 67
      %v2024 = vpop.permute.xlu0 %2023
      %2025 = vrot.lane.b32.xlu0 %v1329, 67
      %v2026 = vpop.permute.xlu0 %2025
      %2027 = vrot.lane.b32.xlu0 %v1321, 67
      %v2028 = vpop.permute.xlu0 %2027
      %2029 = vrot.lane.b32.xlu0 %v1897, 67
      %v2030 = vpop.permute.xlu0 %2029
      %2031 = vrot.lane.b32.xlu0 %v1898, 67
      %v2032 = vpop.permute.xlu0 %2031
      %2033 = vrot.lane.b32.xlu0 %v1899, 67
      %v2034 = vpop.permute.xlu0 %2033
      %2035 = vrot.lane.b32.xlu0 %v1900, 67
      %v2036 = vpop.permute.xlu0 %2035
      %2037 = vrot.lane.b32.xlu0 %v1901, 67
      %v2038 = vpop.permute.xlu0 %2037
      %2039 = vrot.lane.b32.xlu0 %v1902, 67
      %v2040 = vpop.permute.xlu0 %2039
      %2041 = vrot.lane.b32.xlu0 %v1903, 67
      %v2042 = vpop.permute.xlu0 %2041
      %2043 = vrot.lane.b32.xlu0 %v1904, 67
      %v2044 = vpop.permute.xlu0 %2043
      %2045 = vrot.lane.b32.xlu0 %v1905, 67
      %v2046 = vpop.permute.xlu0 %2045
      %2047 = vrot.lane.b32.xlu0 %v1906, 67
      %v2048 = vpop.permute.xlu0 %2047
      %2049 = vrot.lane.b32.xlu0 %v1907, 67
      %v2050 = vpop.permute.xlu0 %2049
      %2051 = vrot.lane.b32.xlu0 %v1908, 67
      %v2052 = vpop.permute.xlu0 %2051
      %2053 = vrot.lane.b32.xlu0 %v1410, 67
      %v2054 = vpop.permute.xlu0 %2053
      %2055 = vrot.lane.b32.xlu0 %v1411, 67
      %v2056 = vpop.permute.xlu0 %2055
      %2057 = vrot.lane.b32.xlu0 %v1911, 67
      %v2058 = vpop.permute.xlu0 %2057
      %2059 = vrot.lane.b32.xlu0 %v1412, 67
      %v2060 = vpop.permute.xlu0 %2059
      %2061 = vrot.lane.b32.xlu0 %v1413, 67
      %v2062 = vpop.permute.xlu0 %2061
      %2063 = vrot.lane.b32.xlu0 %v1912, 67
      %v2064 = vpop.permute.xlu0 %2063
      %2065 = vrot.lane.b32.xlu0 %v1414, 67
      %v2066 = vpop.permute.xlu0 %2065
      %2067 = vrot.lane.b32.xlu0 %v1415, 67
      %v2068 = vpop.permute.xlu0 %2067
      %2069 = vrot.lane.b32.xlu0 %v1913, 67
      %v2070 = vpop.permute.xlu0 %2069
      %2071 = vrot.lane.b32.xlu0 %v1416, 67
      %v2072 = vpop.permute.xlu0 %2071
      %2073 = vrot.lane.b32.xlu0 %v1417, 67
      %v2074 = vpop.permute.xlu0 %2073
      %2075 = vrot.lane.b32.xlu0 %v1914, 67
      %v2076 = vpop.permute.xlu0 %2075
      %2077 = vrot.lane.b32.xlu0 %v1454, 67
      %v2078 = vpop.permute.xlu0 %2077
      %2079 = vrot.lane.b32.xlu0 %v1455, 67
      %v2080 = vpop.permute.xlu0 %2079
      %2081 = vrot.lane.b32.xlu0 %v1917, 67
      %v2082 = vpop.permute.xlu0 %2081
      %2083 = vrot.lane.b32.xlu0 %v1456, 67
      %v2084 = vpop.permute.xlu0 %2083
      %2085 = vrot.lane.b32.xlu0 %v1457, 67
      %v2086 = vpop.permute.xlu0 %2085
      %2087 = vrot.lane.b32.xlu0 %v1918, 67
      %v2088 = vpop.permute.xlu0 %2087
      %2089 = vrot.lane.b32.xlu0 %v1458, 67
      %v2090 = vpop.permute.xlu0 %2089
      %2091 = vrot.lane.b32.xlu0 %v1459, 67
      %v2092 = vpop.permute.xlu0 %2091
      %2093 = vrot.lane.b32.xlu0 %v1919, 67
      %v2094 = vpop.permute.xlu0 %2093
      %2095 = vrot.lane.b32.xlu0 %v1460, 67
      %v2096 = vpop.permute.xlu0 %2095
      %2097 = vrot.lane.b32.xlu0 %v1461, 67
      %v2098 = vpop.permute.xlu0 %2097
      %2099 = vrot.lane.b32.xlu0 %v1920, 67
      %v2100 = vpop.permute.xlu0 %2099
      %2101 = vrot.lane.b32.xlu0 %v1498, 67
      %v2102 = vpop.permute.xlu0 %2101
      %2103 = vrot.lane.b32.xlu0 %v1499, 67
      %v2104 = vpop.permute.xlu0 %2103
      %2105 = vrot.lane.b32.xlu0 %v1923, 67
      %v2106 = vpop.permute.xlu0 %2105
      %2107 = vrot.lane.b32.xlu0 %v1500, 67
      %v2108 = vpop.permute.xlu0 %2107
      %2109 = vrot.lane.b32.xlu0 %v1501, 67
      %v2110 = vpop.permute.xlu0 %2109
      %2111 = vrot.lane.b32.xlu0 %v1924, 67
      %v2112 = vpop.permute.xlu0 %2111
      %2113 = vrot.lane.b32.xlu0 %v1502, 67
      %v2114 = vpop.permute.xlu0 %2113
      %2115 = vrot.lane.b32.xlu0 %v1503, 67
      %v2116 = vpop.permute.xlu0 %2115
      %2117 = vrot.lane.b32.xlu0 %v1925, 67
      %v2118 = vpop.permute.xlu0 %2117
      %2119 = vrot.lane.b32.xlu0 %v1504, 67
      %v2120 = vpop.permute.xlu0 %2119
      %2121 = vrot.lane.b32.xlu0 %v1505, 67
      %v2122 = vpop.permute.xlu0 %2121
      %2123 = vrot.lane.b32.xlu0 %v1926, 67
      %v2124 = vpop.permute.xlu0 %2123
      %2125 = vrot.lane.b32.xlu0 %v1542, 67
      %v2126 = vpop.permute.xlu0 %2125
      %2127 = vrot.lane.b32.xlu0 %v1543, 67
      %v2128 = vpop.permute.xlu0 %2127
      %2129 = vrot.lane.b32.xlu0 %v1929, 67
      %v2130 = vpop.permute.xlu0 %2129
      %2131 = vrot.lane.b32.xlu0 %v1544, 67
      %v2132 = vpop.permute.xlu0 %2131
      %2133 = vrot.lane.b32.xlu0 %v1545, 67
      %v2134 = vpop.permute.xlu0 %2133
      %2135 = vrot.lane.b32.xlu0 %v1930, 67
      %v2136 = vpop.permute.xlu0 %2135
      %2137 = vrot.lane.b32.xlu0 %v1546, 67
      %v2138 = vpop.permute.xlu0 %2137
      %2139 = vrot.lane.b32.xlu0 %v1547, 67
      %v2140 = vpop.permute.xlu0 %2139
      %2141 = vrot.lane.b32.xlu0 %v1931, 67
      %v2142 = vpop.permute.xlu0 %2141
      %2143 = vrot.lane.b32.xlu0 %v1548, 67
      %v2144 = vpop.permute.xlu0 %2143
      %2145 = vrot.lane.b32.xlu0 %v1549, 67
      %v2146 = vpop.permute.xlu0 %2145
      %2147 = vrot.lane.b32.xlu0 %v1932, 67
      %v2148 = vpop.permute.xlu0 %2147
      %v2149 = vsel %vm797, %v1934, %v1936
      %v2150 = vsel %vm797, %v1936, %v1938
      %v2151 = vsel %vm797, %v1940, %v1942
      %v2152 = vsel %vm797, %v1942, %v1944
      %v2153 = vsel %vm797, %v1946, %v1948
      %v2154 = vsel %vm797, %v1948, %v1950
      %v2155 = vsel %vm797, %v1952, %v1954
      %v2156 = vsel %vm797, %v1954, %v1956
      %v2157 = vsel %vm797, %v1958, %v1960
      %v2158 = vsel %vm797, %v1960, %v1962
      %v2159 = vsel %vm797, %v1964, %v1966
      %v2160 = vsel %vm797, %v1966, %v1968
      %v2161 = vsel %vm797, %v1970, %v1972
      %v2162 = vsel %vm797, %v1972, %v1974
      %v2163 = vsel %vm797, %v1976, %v1978
      %v2164 = vsel %vm797, %v1978, %v1980
      %v2165 = vsel %vm797, %v1982, %v1984
      %v2166 = vsel %vm797, %v1984, %v1986
      %v2167 = vsel %vm797, %v1988, %v1990
      %v2168 = vsel %vm797, %v1990, %v1992
      %v2169 = vsel %vm797, %v1994, %v1996
      %v2170 = vsel %vm797, %v1996, %v1998
      %v2171 = vsel %vm797, %v2000, %v2002
      %v2172 = vsel %vm797, %v2002, %v2004
      %v2173 = vsel %vm797, %v2006, %v2008
      %v2174 = vsel %vm797, %v2008, %v2010
      %v2175 = vsel %vm797, %v2012, %v2014
      %v2176 = vsel %vm797, %v2014, %v2016
      %v2177 = vsel %vm797, %v2018, %v2020
      %v2178 = vsel %vm797, %v2020, %v2022
      %v2179 = vsel %vm797, %v2024, %v2026
      %v2180 = vsel %vm797, %v2026, %v2028
      %v2181 = vsel %vm797, %v2030, %v2032
      %v2182 = vsel %vm797, %v2032, %v2034
      %v2183 = vsel %vm797, %v2036, %v2038
      %v2184 = vsel %vm797, %v2038, %v2040
      %v2185 = vsel %vm797, %v2042, %v2044
      %v2186 = vsel %vm797, %v2044, %v2046
      %v2187 = vsel %vm797, %v2048, %v2050
      %v2188 = vsel %vm797, %v2050, %v2052
      %v2189 = vsel %vm797, %v2054, %v2056
      %v2190 = vsel %vm797, %v2056, %v2058
      %v2191 = vsel %vm797, %v2060, %v2062
      %v2192 = vsel %vm797, %v2062, %v2064
      %v2193 = vsel %vm797, %v2066, %v2068
      %v2194 = vsel %vm797, %v2068, %v2070
      %v2195 = vsel %vm797, %v2072, %v2074
      %v2196 = vsel %vm797, %v2074, %v2076
      %v2197 = vsel %vm797, %v2078, %v2080
      %v2198 = vsel %vm797, %v2080, %v2082
      %v2199 = vsel %vm797, %v2084, %v2086
      %v2200 = vsel %vm797, %v2086, %v2088
      %v2201 = vsel %vm797, %v2090, %v2092
      %v2202 = vsel %vm797, %v2092, %v2094
      %v2203 = vsel %vm797, %v2096, %v2098
      %v2204 = vsel %vm797, %v2098, %v2100
      %v2205 = vsel %vm797, %v2102, %v2104
      %v2206 = vsel %vm797, %v2104, %v2106
      %v2207 = vsel %vm797, %v2108, %v2110
      %v2208 = vsel %vm797, %v2110, %v2112
      %v2209 = vsel %vm797, %v2114, %v2116
      %v2210 = vsel %vm797, %v2116, %v2118
      %v2211 = vsel %vm797, %v2120, %v2122
      %v2212 = vsel %vm797, %v2122, %v2124
      %v2213 = vsel %vm797, %v2126, %v2128
      %v2214 = vsel %vm797, %v2128, %v2130
      %v2215 = vsel %vm797, %v2132, %v2134
      %v2216 = vsel %vm797, %v2134, %v2136
      %v2217 = vsel %vm797, %v2138, %v2140
      %v2218 = vsel %vm797, %v2140, %v2142
      %v2219 = vsel %vm797, %v2144, %v2146
      %v2220 = vsel %vm797, %v2146, %v2148
      %v2329 = vld [vmem:[%s5] sm:$0xff]
      %v2330 = vld [vmem:[%s5 + $0x8] sm:$0xff]
      %v2331 = vld [vmem:[%s5 + $0x10] sm:$0xff]
      %v2332 = vld [vmem:[%s5 + $0x18] sm:$0xff]
      %2334 = vset.pattern.permute.xlu0 0
      %2335 = vperm.xlu0 %2334, %v2329
      %v2336 = vpop.permute.xlu0 %2335
      %2339 = vset.pattern.permute.xlu0 0
      %2340 = vperm.xlu0 %2339, %v2330
      %v2341 = vpop.permute.xlu0 %2340
      %2344 = vset.pattern.permute.xlu0 0
      %2345 = vperm.xlu0 %2344, %v2331
      %v2346 = vpop.permute.xlu0 %2345
      %2349 = vset.pattern.permute.xlu0 0
      %2350 = vperm.xlu0 %2349, %v2332
      %v2351 = vpop.permute.xlu0 %2350
      %vm2353 = vcmask 261120
      %v2355 = vsel %vm2353, %v1180, 0
      %v2358 = vsel %vm2353, %v1187, 0
      %v2361 = vsel %vm2353, %v1194, 0
      %v2364 = vsel %vm2353, %v1201, 0
      %2366 = vmatpush.msra.mxu0 %v1328
      %2367 = vmatpush.msra.mxu0 %v1326
      %2368 = vmatpush.msra.mxu0 %v1324
      %2369 = vmatpush.msra.mxu0 %v1322
      %2370 = vmatpush.msra.mxu0 %v1284
      %2371 = vmatpush.msra.mxu0 %v1282
      %2372 = vmatpush.msra.mxu0 %v1280
      %2373 = vmatpush.msra.mxu0 %v1278
      %2374 = vmatpush.msra.mxu0 %v1240
      %2375 = vmatpush.msra.mxu0 %v1238
      %2376 = vmatpush.msra.mxu0 %v1236
      %2377 = vmatpush.msra.mxu0 %v1234
      %2378 = vmatpush.msra.mxu0 %v1169
      %2379 = vmatpush.msra.mxu0 %v1168
      %2380 = vmatpush.msra.mxu0 %v1167
      %2381 = vmatpush.msra.mxu0 %v1166
      %2382 = vmatmul.f32.gmra.mxu0 %v1174
      %v2383 = vpop.f32.mrf.mxu0
      %v2384 = vadd.f32 %v2336, %v2383
      %2385 = vmatmul.f32.gmra.mxu0 %v1181
      %v2386 = vpop.f32.mrf.mxu0
      %v2387 = vadd.f32 %v2341, %v2386
      %2388 = vmatmul.f32.gmra.mxu0 %v1188
      %v2389 = vpop.f32.mrf.mxu0
      %v2390 = vadd.f32 %v2346, %v2389
      %2391 = vmatmul.f32.gmra.mxu0 %v1195
      %v2392 = vpop.f32.mrf.mxu0
      %v2393 = vadd.f32 %v2351, %v2392
      %2394 = vdwg.mxu0
      %2395 = vmatpush.msra.mxu0 %v1504
      %2396 = vmatpush.msra.mxu0 %v1502
      %2397 = vmatpush.msra.mxu0 %v1500
      %2398 = vmatpush.msra.mxu0 %v1498
      %2399 = vmatpush.msra.mxu0 %v1460
      %2400 = vmatpush.msra.mxu0 %v1458
      %2401 = vmatpush.msra.mxu0 %v1456
      %2402 = vmatpush.msra.mxu0 %v1454
      %2403 = vmatpush.msra.mxu0 %v1416
      %2404 = vmatpush.msra.mxu0 %v1414
      %2405 = vmatpush.msra.mxu0 %v1412
      %2406 = vmatpush.msra.mxu0 %v1410
      %2407 = vmatpush.msra.mxu0 %v1372
      %2408 = vmatpush.msra.mxu0 %v1370
      %2409 = vmatpush.msra.mxu0 %v1368
      %2410 = vmatpush.msra.mxu0 %v1366
      %2411 = vmatmul.f32.gmra.mxu0 %v1175
      %v2412 = vpop.f32.mrf.mxu0
      %v2413 = vadd.f32 %v2384, %v2412
      %2414 = vmatmul.f32.gmra.mxu0 %v1182
      %v2415 = vpop.f32.mrf.mxu0
      %v2416 = vadd.f32 %v2387, %v2415
      %2417 = vmatmul.f32.gmra.mxu0 %v1189
      %v2418 = vpop.f32.mrf.mxu0
      %v2419 = vadd.f32 %v2390, %v2418
      %2420 = vmatmul.f32.gmra.mxu0 %v1196
      %v2421 = vpop.f32.mrf.mxu0
      %v2422 = vadd.f32 %v2393, %v2421
      %2423 = vdwg.mxu0
      %2424 = vmatpush.msra.mxu0 %v1680
      %2425 = vmatpush.msra.mxu0 %v1678
      %2426 = vmatpush.msra.mxu0 %v1676
      %2427 = vmatpush.msra.mxu0 %v1674
      %2428 = vmatpush.msra.mxu0 %v1636
      %2429 = vmatpush.msra.mxu0 %v1634
      %2430 = vmatpush.msra.mxu0 %v1632
      %2431 = vmatpush.msra.mxu0 %v1630
      %2432 = vmatpush.msra.mxu0 %v1592
      %2433 = vmatpush.msra.mxu0 %v1590
      %2434 = vmatpush.msra.mxu0 %v1588
      %2435 = vmatpush.msra.mxu0 %v1586
      %2436 = vmatpush.msra.mxu0 %v1548
      %2437 = vmatpush.msra.mxu0 %v1546
      %2438 = vmatpush.msra.mxu0 %v1544
      %2439 = vmatpush.msra.mxu0 %v1542
      %2440 = vmatmul.f32.gmra.mxu0 %v1176
      %v2441 = vpop.f32.mrf.mxu0
      %v2442 = vadd.f32 %v2413, %v2441
      %2443 = vmatmul.f32.gmra.mxu0 %v1183
      %v2444 = vpop.f32.mrf.mxu0
      %v2445 = vadd.f32 %v2416, %v2444
      %2446 = vmatmul.f32.gmra.mxu0 %v1190
      %v2447 = vpop.f32.mrf.mxu0
      %v2448 = vadd.f32 %v2419, %v2447
      %2449 = vmatmul.f32.gmra.mxu0 %v1197
      %v2450 = vpop.f32.mrf.mxu0
      %v2451 = vadd.f32 %v2422, %v2450
      %2452 = vdwg.mxu0
      %2453 = vmatpush.msra.mxu0 %v1856
      %2454 = vmatpush.msra.mxu0 %v1854
      %2455 = vmatpush.msra.mxu0 %v1852
      %2456 = vmatpush.msra.mxu0 %v1850
      %2457 = vmatpush.msra.mxu0 %v1812
      %2458 = vmatpush.msra.mxu0 %v1810
      %2459 = vmatpush.msra.mxu0 %v1808
      %2460 = vmatpush.msra.mxu0 %v1806
      %2461 = vmatpush.msra.mxu0 %v1768
      %2462 = vmatpush.msra.mxu0 %v1766
      %2463 = vmatpush.msra.mxu0 %v1764
      %2464 = vmatpush.msra.mxu0 %v1762
      %2465 = vmatpush.msra.mxu0 %v1724
      %2466 = vmatpush.msra.mxu0 %v1722
      %2467 = vmatpush.msra.mxu0 %v1720
      %2468 = vmatpush.msra.mxu0 %v1718
      %2469 = vmatmul.f32.gmra.mxu0 %v1177
      %v2470 = vpop.f32.mrf.mxu0
      %v2471 = vadd.f32 %v2442, %v2470
      %2472 = vmatmul.f32.gmra.mxu0 %v1184
      %v2473 = vpop.f32.mrf.mxu0
      %v2474 = vadd.f32 %v2445, %v2473
      %2475 = vmatmul.f32.gmra.mxu0 %v1191
      %v2476 = vpop.f32.mrf.mxu0
      %v2477 = vadd.f32 %v2448, %v2476
      %2478 = vmatmul.f32.gmra.mxu0 %v1198
      %v2479 = vpop.f32.mrf.mxu0
      %v2480 = vadd.f32 %v2451, %v2479
      %2481 = vdwg.mxu0
      %2482 = vmatpush.msra.mxu0 %v2179
      %2483 = vmatpush.msra.mxu0 %v2177
      %2484 = vmatpush.msra.mxu0 %v2175
      %2485 = vmatpush.msra.mxu0 %v2173
      %2486 = vmatpush.msra.mxu0 %v2171
      %2487 = vmatpush.msra.mxu0 %v2169
      %2488 = vmatpush.msra.mxu0 %v2167
      %2489 = vmatpush.msra.mxu0 %v2165
      %2490 = vmatpush.msra.mxu0 %v2163
      %2491 = vmatpush.msra.mxu0 %v2161
      %2492 = vmatpush.msra.mxu0 %v2159
      %2493 = vmatpush.msra.mxu0 %v2157
      %2494 = vmatpush.msra.mxu0 %v2155
      %2495 = vmatpush.msra.mxu0 %v2153
      %2496 = vmatpush.msra.mxu0 %v2151
      %2497 = vmatpush.msra.mxu0 %v2149
      %2498 = vmatmul.f32.gmra.mxu0 %v1178
      %v2499 = vpop.f32.mrf.mxu0
      %v2500 = vadd.f32 %v2471, %v2499
      %2501 = vmatmul.f32.gmra.mxu0 %v1185
      %v2502 = vpop.f32.mrf.mxu0
      %v2503 = vadd.f32 %v2474, %v2502
      %2504 = vmatmul.f32.gmra.mxu0 %v1192
      %v2505 = vpop.f32.mrf.mxu0
      %v2506 = vadd.f32 %v2477, %v2505
      %2507 = vmatmul.f32.gmra.mxu0 %v1199
      %v2508 = vpop.f32.mrf.mxu0
      %v2509 = vadd.f32 %v2480, %v2508
      %2510 = vdwg.mxu0
      %2511 = vmatpush.msra.mxu0 %v2211
      %2512 = vmatpush.msra.mxu0 %v2209
      %2513 = vmatpush.msra.mxu0 %v2207
      %2514 = vmatpush.msra.mxu0 %v2205
      %2515 = vmatpush.msra.mxu0 %v2203
      %2516 = vmatpush.msra.mxu0 %v2201
      %2517 = vmatpush.msra.mxu0 %v2199
      %2518 = vmatpush.msra.mxu0 %v2197
      %2519 = vmatpush.msra.mxu0 %v2195
      %2520 = vmatpush.msra.mxu0 %v2193
      %2521 = vmatpush.msra.mxu0 %v2191
      %2522 = vmatpush.msra.mxu0 %v2189
      %2523 = vmatpush.msra.mxu0 %v2187
      %2524 = vmatpush.msra.mxu0 %v2185
      %2525 = vmatpush.msra.mxu0 %v2183
      %2526 = vmatpush.msra.mxu0 %v2181
      %2527 = vmatmul.f32.gmra.mxu0 %v1179
      %v2528 = vpop.f32.mrf.mxu0
      %v2529 = vadd.f32 %v2500, %v2528
      %2530 = vmatmul.f32.gmra.mxu0 %v1186
      %v2531 = vpop.f32.mrf.mxu0
      %v2532 = vadd.f32 %v2503, %v2531
      %2533 = vmatmul.f32.gmra.mxu0 %v1193
      %v2534 = vpop.f32.mrf.mxu0
      %v2535 = vadd.f32 %v2506, %v2534
      %2536 = vmatmul.f32.gmra.mxu0 %v1200
      %v2537 = vpop.f32.mrf.mxu0
      %v2538 = vadd.f32 %v2509, %v2537
      %2539 = vdwg.mxu0
      %2540 = vmatpush.msra.mxu0 0.0
      %2541 = vmatpush.msra.mxu0 0.0
      %2542 = vmatpush.msra.mxu0 0.0
      %2543 = vmatpush.msra.mxu0 0.0
      %2544 = vmatpush.msra.mxu0 0.0
      %2545 = vmatpush.msra.mxu0 0.0
      %2546 = vmatpush.msra.mxu0 0.0
      %2547 = vmatpush.msra.mxu0 0.0
      %2548 = vmatpush.msra.mxu0 0.0
      %2549 = vmatpush.msra.mxu0 0.0
      %2550 = vmatpush.msra.mxu0 0.0
      %2551 = vmatpush.msra.mxu0 0.0
      %2552 = vmatpush.msra.mxu0 %v2219
      %2553 = vmatpush.msra.mxu0 %v2217
      %2554 = vmatpush.msra.mxu0 %v2215
      %2555 = vmatpush.msra.mxu0 %v2213
      %2556 = vmatmul.f32.gmra.mxu0 %v2355
      %v2557 = vpop.f32.mrf.mxu0
      %v2558 = vadd.f32 %v2529, %v2557
      %2559 = vmatmul.f32.gmra.mxu0 %v2358
      %v2560 = vpop.f32.mrf.mxu0
      %v2561 = vadd.f32 %v2532, %v2560
      %2562 = vmatmul.f32.gmra.mxu0 %v2361
      %v2563 = vpop.f32.mrf.mxu0
      %v2564 = vadd.f32 %v2535, %v2563
      %2565 = vmatmul.f32.gmra.mxu0 %v2364
      %v2566 = vpop.f32.mrf.mxu0
      %v2567 = vadd.f32 %v2538, %v2566
      %2568 = vdwg.mxu0
      %2569 = vmatpush.msra.mxu0 %v1329
      %2570 = vmatpush.msra.mxu0 %v1327
      %2571 = vmatpush.msra.mxu0 %v1325
      %2572 = vmatpush.msra.mxu0 %v1323
      %2573 = vmatpush.msra.mxu0 %v1285
      %2574 = vmatpush.msra.mxu0 %v1283
      %2575 = vmatpush.msra.mxu0 %v1281
      %2576 = vmatpush.msra.mxu0 %v1279
      %2577 = vmatpush.msra.mxu0 %v1241
      %2578 = vmatpush.msra.mxu0 %v1239
      %2579 = vmatpush.msra.mxu0 %v1237
      %2580 = vmatpush.msra.mxu0 %v1235
      %2581 = vmatpush.msra.mxu0 %v1152
      %2582 = vmatpush.msra.mxu0 %v1150
      %2583 = vmatpush.msra.mxu0 %v1148
      %2584 = vmatpush.msra.mxu0 %v1146
      %2585 = vmatmul.f32.gmra.mxu0 %v1174
      %v2586 = vpop.f32.mrf.mxu0
      %v2587 = vadd.f32 %v2336, %v2586
      %2588 = vmatmul.f32.gmra.mxu0 %v1181
      %v2589 = vpop.f32.mrf.mxu0
      %v2590 = vadd.f32 %v2341, %v2589
      %2591 = vmatmul.f32.gmra.mxu0 %v1188
      %v2592 = vpop.f32.mrf.mxu0
      %v2593 = vadd.f32 %v2346, %v2592
      %2594 = vmatmul.f32.gmra.mxu0 %v1195
      %v2595 = vpop.f32.mrf.mxu0
      %v2596 = vadd.f32 %v2351, %v2595
      %2597 = vdwg.mxu0
      %2598 = vmatpush.msra.mxu0 %v1505
      %2599 = vmatpush.msra.mxu0 %v1503
      %2600 = vmatpush.msra.mxu0 %v1501
      %2601 = vmatpush.msra.mxu0 %v1499
      %2602 = vmatpush.msra.mxu0 %v1461
      %2603 = vmatpush.msra.mxu0 %v1459
      %2604 = vmatpush.msra.mxu0 %v1457
      %2605 = vmatpush.msra.mxu0 %v1455
      %2606 = vmatpush.msra.mxu0 %v1417
      %2607 = vmatpush.msra.mxu0 %v1415
      %2608 = vmatpush.msra.mxu0 %v1413
      %2609 = vmatpush.msra.mxu0 %v1411
      %2610 = vmatpush.msra.mxu0 %v1373
      %2611 = vmatpush.msra.mxu0 %v1371
      %2612 = vmatpush.msra.mxu0 %v1369
      %2613 = vmatpush.msra.mxu0 %v1367
      %2614 = vmatmul.f32.gmra.mxu0 %v1175
      %v2615 = vpop.f32.mrf.mxu0
      %v2616 = vadd.f32 %v2587, %v2615
      %2617 = vmatmul.f32.gmra.mxu0 %v1182
      %v2618 = vpop.f32.mrf.mxu0
      %v2619 = vadd.f32 %v2590, %v2618
      %2620 = vmatmul.f32.gmra.mxu0 %v1189
      %v2621 = vpop.f32.mrf.mxu0
      %v2622 = vadd.f32 %v2593, %v2621
      %2623 = vmatmul.f32.gmra.mxu0 %v1196
      %v2624 = vpop.f32.mrf.mxu0
      %v2625 = vadd.f32 %v2596, %v2624
      %2626 = vdwg.mxu0
      %2627 = vmatpush.msra.mxu0 %v1681
      %2628 = vmatpush.msra.mxu0 %v1679
      %2629 = vmatpush.msra.mxu0 %v1677
      %2630 = vmatpush.msra.mxu0 %v1675
      %2631 = vmatpush.msra.mxu0 %v1637
      %2632 = vmatpush.msra.mxu0 %v1635
      %2633 = vmatpush.msra.mxu0 %v1633
      %2634 = vmatpush.msra.mxu0 %v1631
      %2635 = vmatpush.msra.mxu0 %v1593
      %2636 = vmatpush.msra.mxu0 %v1591
      %2637 = vmatpush.msra.mxu0 %v1589
      %2638 = vmatpush.msra.mxu0 %v1587
      %2639 = vmatpush.msra.mxu0 %v1549
      %2640 = vmatpush.msra.mxu0 %v1547
      %2641 = vmatpush.msra.mxu0 %v1545
      %2642 = vmatpush.msra.mxu0 %v1543
      %2643 = vmatmul.f32.gmra.mxu0 %v1176
      %v2644 = vpop.f32.mrf.mxu0
      %v2645 = vadd.f32 %v2616, %v2644
      %2646 = vmatmul.f32.gmra.mxu0 %v1183
      %v2647 = vpop.f32.mrf.mxu0
      %v2648 = vadd.f32 %v2619, %v2647
      %2649 = vmatmul.f32.gmra.mxu0 %v1190
      %v2650 = vpop.f32.mrf.mxu0
      %v2651 = vadd.f32 %v2622, %v2650
      %2652 = vmatmul.f32.gmra.mxu0 %v1197
      %v2653 = vpop.f32.mrf.mxu0
      %v2654 = vadd.f32 %v2625, %v2653
      %2655 = vdwg.mxu0
      %2656 = vmatpush.msra.mxu0 %v1857
      %2657 = vmatpush.msra.mxu0 %v1855
      %2658 = vmatpush.msra.mxu0 %v1853
      %2659 = vmatpush.msra.mxu0 %v1851
      %2660 = vmatpush.msra.mxu0 %v1813
      %2661 = vmatpush.msra.mxu0 %v1811
      %2662 = vmatpush.msra.mxu0 %v1809
      %2663 = vmatpush.msra.mxu0 %v1807
      %2664 = vmatpush.msra.mxu0 %v1769
      %2665 = vmatpush.msra.mxu0 %v1767
      %2666 = vmatpush.msra.mxu0 %v1765
      %2667 = vmatpush.msra.mxu0 %v1763
      %2668 = vmatpush.msra.mxu0 %v1725
      %2669 = vmatpush.msra.mxu0 %v1723
      %2670 = vmatpush.msra.mxu0 %v1721
      %2671 = vmatpush.msra.mxu0 %v1719
      %2672 = vmatmul.f32.gmra.mxu0 %v1177
      %v2673 = vpop.f32.mrf.mxu0
      %v2674 = vadd.f32 %v2645, %v2673
      %2675 = vmatmul.f32.gmra.mxu0 %v1184
      %v2676 = vpop.f32.mrf.mxu0
      %v2677 = vadd.f32 %v2648, %v2676
      %2678 = vmatmul.f32.gmra.mxu0 %v1191
      %v2679 = vpop.f32.mrf.mxu0
      %v2680 = vadd.f32 %v2651, %v2679
      %2681 = vmatmul.f32.gmra.mxu0 %v1198
      %v2682 = vpop.f32.mrf.mxu0
      %v2683 = vadd.f32 %v2654, %v2682
      %2684 = vdwg.mxu0
      %2685 = vmatpush.msra.mxu0 %v2180
      %2686 = vmatpush.msra.mxu0 %v2178
      %2687 = vmatpush.msra.mxu0 %v2176
      %2688 = vmatpush.msra.mxu0 %v2174
      %2689 = vmatpush.msra.mxu0 %v2172
      %2690 = vmatpush.msra.mxu0 %v2170
      %2691 = vmatpush.msra.mxu0 %v2168
      %2692 = vmatpush.msra.mxu0 %v2166
      %2693 = vmatpush.msra.mxu0 %v2164
      %2694 = vmatpush.msra.mxu0 %v2162
      %2695 = vmatpush.msra.mxu0 %v2160
      %2696 = vmatpush.msra.mxu0 %v2158
      %2697 = vmatpush.msra.mxu0 %v2156
      %2698 = vmatpush.msra.mxu0 %v2154
      %2699 = vmatpush.msra.mxu0 %v2152
      %2700 = vmatpush.msra.mxu0 %v2150
      %2701 = vmatmul.f32.gmra.mxu0 %v1178
      %v2702 = vpop.f32.mrf.mxu0
      %v2703 = vadd.f32 %v2674, %v2702
      %2704 = vmatmul.f32.gmra.mxu0 %v1185
      %v2705 = vpop.f32.mrf.mxu0
      %v2706 = vadd.f32 %v2677, %v2705
      %2707 = vmatmul.f32.gmra.mxu0 %v1192
      %v2708 = vpop.f32.mrf.mxu0
      %v2709 = vadd.f32 %v2680, %v2708
      %2710 = vmatmul.f32.gmra.mxu0 %v1199
      %v2711 = vpop.f32.mrf.mxu0
      %v2712 = vadd.f32 %v2683, %v2711
      %2713 = vdwg.mxu0
      %2714 = vmatpush.msra.mxu0 %v2212
      %2715 = vmatpush.msra.mxu0 %v2210
      %2716 = vmatpush.msra.mxu0 %v2208
      %2717 = vmatpush.msra.mxu0 %v2206
      %2718 = vmatpush.msra.mxu0 %v2204
      %2719 = vmatpush.msra.mxu0 %v2202
      %2720 = vmatpush.msra.mxu0 %v2200
      %2721 = vmatpush.msra.mxu0 %v2198
      %2722 = vmatpush.msra.mxu0 %v2196
      %2723 = vmatpush.msra.mxu0 %v2194
      %2724 = vmatpush.msra.mxu0 %v2192
      %2725 = vmatpush.msra.mxu0 %v2190
      %2726 = vmatpush.msra.mxu0 %v2188
      %2727 = vmatpush.msra.mxu0 %v2186
      %2728 = vmatpush.msra.mxu0 %v2184
      %2729 = vmatpush.msra.mxu0 %v2182
      %2730 = vmatmul.f32.gmra.mxu0 %v1179
      %v2731 = vpop.f32.mrf.mxu0
      %v2732 = vadd.f32 %v2703, %v2731
      %2733 = vmatmul.f32.gmra.mxu0 %v1186
      %v2734 = vpop.f32.mrf.mxu0
      %v2735 = vadd.f32 %v2706, %v2734
      %2736 = vmatmul.f32.gmra.mxu0 %v1193
      %v2737 = vpop.f32.mrf.mxu0
      %v2738 = vadd.f32 %v2709, %v2737
      %2739 = vmatmul.f32.gmra.mxu0 %v1200
      %v2740 = vpop.f32.mrf.mxu0
      %v2741 = vadd.f32 %v2712, %v2740
      %2742 = vdwg.mxu0
      %2743 = vmatpush.msra.mxu0 0.0
      %2744 = vmatpush.msra.mxu0 0.0
      %2745 = vmatpush.msra.mxu0 0.0
      %2746 = vmatpush.msra.mxu0 0.0
      %2747 = vmatpush.msra.mxu0 0.0
      %2748 = vmatpush.msra.mxu0 0.0
      %2749 = vmatpush.msra.mxu0 0.0
      %2750 = vmatpush.msra.mxu0 0.0
      %2751 = vmatpush.msra.mxu0 0.0
      %2752 = vmatpush.msra.mxu0 0.0
      %2753 = vmatpush.msra.mxu0 0.0
      %2754 = vmatpush.msra.mxu0 0.0
      %2755 = vmatpush.msra.mxu0 %v2220
      %2756 = vmatpush.msra.mxu0 %v2218
      %2757 = vmatpush.msra.mxu0 %v2216
      %2758 = vmatpush.msra.mxu0 %v2214
      %2759 = vmatmul.f32.gmra.mxu0 %v2355
      %v2760 = vpop.f32.mrf.mxu0
      %v2761 = vadd.f32 %v2732, %v2760
      %2762 = vmatmul.f32.gmra.mxu0 %v2358
      %v2763 = vpop.f32.mrf.mxu0
      %v2764 = vadd.f32 %v2735, %v2763
      %2765 = vmatmul.f32.gmra.mxu0 %v2361
      %v2766 = vpop.f32.mrf.mxu0
      %v2767 = vadd.f32 %v2738, %v2766
      %2768 = vmatmul.f32.gmra.mxu0 %v2364
      %v2769 = vpop.f32.mrf.mxu0
      %v2770 = vadd.f32 %v2741, %v2769
      %2771 = vdwg.mxu0
      %2772 = vmatpush.msra.mxu0 %v1321
      %2773 = vmatpush.msra.mxu0 %v1315
      %2774 = vmatpush.msra.mxu0 %v1309
      %2775 = vmatpush.msra.mxu0 %v1303
      %2776 = vmatpush.msra.mxu0 %v1277
      %2777 = vmatpush.msra.mxu0 %v1271
      %2778 = vmatpush.msra.mxu0 %v1265
      %2779 = vmatpush.msra.mxu0 %v1259
      %2780 = vmatpush.msra.mxu0 %v1233
      %2781 = vmatpush.msra.mxu0 %v1227
      %2782 = vmatpush.msra.mxu0 %v1221
      %2783 = vmatpush.msra.mxu0 %v1215
      %2784 = vmatpush.msra.mxu0 %v1173
      %2785 = vmatpush.msra.mxu0 %v1172
      %2786 = vmatpush.msra.mxu0 %v1171
      %2787 = vmatpush.msra.mxu0 %v1170
      %2788 = vmatmul.f32.gmra.mxu0 %v1174
      %v2789 = vpop.f32.mrf.mxu0
      %v2790 = vadd.f32 %v2336, %v2789
      %2791 = vmatmul.f32.gmra.mxu0 %v1181
      %v2792 = vpop.f32.mrf.mxu0
      %v2793 = vadd.f32 %v2341, %v2792
      %2794 = vmatmul.f32.gmra.mxu0 %v1188
      %v2795 = vpop.f32.mrf.mxu0
      %v2796 = vadd.f32 %v2346, %v2795
      %2797 = vmatmul.f32.gmra.mxu0 %v1195
      %v2798 = vpop.f32.mrf.mxu0
      %v2799 = vadd.f32 %v2351, %v2798
      %2800 = vdwg.mxu0
      %2801 = vmatpush.msra.mxu0 %v1497
      %2802 = vmatpush.msra.mxu0 %v1491
      %2803 = vmatpush.msra.mxu0 %v1485
      %2804 = vmatpush.msra.mxu0 %v1479
      %2805 = vmatpush.msra.mxu0 %v1453
      %2806 = vmatpush.msra.mxu0 %v1447
      %2807 = vmatpush.msra.mxu0 %v1441
      %2808 = vmatpush.msra.mxu0 %v1435
      %2809 = vmatpush.msra.mxu0 %v1409
      %2810 = vmatpush.msra.mxu0 %v1403
      %2811 = vmatpush.msra.mxu0 %v1397
      %2812 = vmatpush.msra.mxu0 %v1391
      %2813 = vmatpush.msra.mxu0 %v1365
      %2814 = vmatpush.msra.mxu0 %v1359
      %2815 = vmatpush.msra.mxu0 %v1353
      %2816 = vmatpush.msra.mxu0 %v1347
      %2817 = vmatmul.f32.gmra.mxu0 %v1175
      %v2818 = vpop.f32.mrf.mxu0
      %v2819 = vadd.f32 %v2790, %v2818
      %2820 = vmatmul.f32.gmra.mxu0 %v1182
      %v2821 = vpop.f32.mrf.mxu0
      %v2822 = vadd.f32 %v2793, %v2821
      %2823 = vmatmul.f32.gmra.mxu0 %v1189
      %v2824 = vpop.f32.mrf.mxu0
      %v2825 = vadd.f32 %v2796, %v2824
      %2826 = vmatmul.f32.gmra.mxu0 %v1196
      %v2827 = vpop.f32.mrf.mxu0
      %v2828 = vadd.f32 %v2799, %v2827
      %2829 = vdwg.mxu0
      %2830 = vmatpush.msra.mxu0 %v1673
      %2831 = vmatpush.msra.mxu0 %v1667
      %2832 = vmatpush.msra.mxu0 %v1661
      %2833 = vmatpush.msra.mxu0 %v1655
      %2834 = vmatpush.msra.mxu0 %v1629
      %2835 = vmatpush.msra.mxu0 %v1623
      %2836 = vmatpush.msra.mxu0 %v1617
      %2837 = vmatpush.msra.mxu0 %v1611
      %2838 = vmatpush.msra.mxu0 %v1585
      %2839 = vmatpush.msra.mxu0 %v1579
      %2840 = vmatpush.msra.mxu0 %v1573
      %2841 = vmatpush.msra.mxu0 %v1567
      %2842 = vmatpush.msra.mxu0 %v1541
      %2843 = vmatpush.msra.mxu0 %v1535
      %2844 = vmatpush.msra.mxu0 %v1529
      %2845 = vmatpush.msra.mxu0 %v1523
      %2846 = vmatmul.f32.gmra.mxu0 %v1176
      %v2847 = vpop.f32.mrf.mxu0
      %v2848 = vadd.f32 %v2819, %v2847
      %2849 = vmatmul.f32.gmra.mxu0 %v1183
      %v2850 = vpop.f32.mrf.mxu0
      %v2851 = vadd.f32 %v2822, %v2850
      %2852 = vmatmul.f32.gmra.mxu0 %v1190
      %v2853 = vpop.f32.mrf.mxu0
      %v2854 = vadd.f32 %v2825, %v2853
      %2855 = vmatmul.f32.gmra.mxu0 %v1197
      %v2856 = vpop.f32.mrf.mxu0
      %v2857 = vadd.f32 %v2828, %v2856
      %2858 = vdwg.mxu0
      %2859 = vmatpush.msra.mxu0 %v1849
      %2860 = vmatpush.msra.mxu0 %v1843
      %2861 = vmatpush.msra.mxu0 %v1837
      %2862 = vmatpush.msra.mxu0 %v1831
      %2863 = vmatpush.msra.mxu0 %v1805
      %2864 = vmatpush.msra.mxu0 %v1799
      %2865 = vmatpush.msra.mxu0 %v1793
      %2866 = vmatpush.msra.mxu0 %v1787
      %2867 = vmatpush.msra.mxu0 %v1761
      %2868 = vmatpush.msra.mxu0 %v1755
      %2869 = vmatpush.msra.mxu0 %v1749
      %2870 = vmatpush.msra.mxu0 %v1743
      %2871 = vmatpush.msra.mxu0 %v1717
      %2872 = vmatpush.msra.mxu0 %v1711
      %2873 = vmatpush.msra.mxu0 %v1705
      %2874 = vmatpush.msra.mxu0 %v1699
      %2875 = vmatmul.f32.gmra.mxu0 %v1177
      %v2876 = vpop.f32.mrf.mxu0
      %v2877 = vadd.f32 %v2848, %v2876
      %2878 = vmatmul.f32.gmra.mxu0 %v1184
      %v2879 = vpop.f32.mrf.mxu0
      %v2880 = vadd.f32 %v2851, %v2879
      %2881 = vmatmul.f32.gmra.mxu0 %v1191
      %v2882 = vpop.f32.mrf.mxu0
      %v2883 = vadd.f32 %v2854, %v2882
      %2884 = vmatmul.f32.gmra.mxu0 %v1198
      %v2885 = vpop.f32.mrf.mxu0
      %v2886 = vadd.f32 %v2857, %v2885
      %2887 = vdwg.mxu0
      %2888 = vmatpush.msra.mxu0 %v2028
      %2889 = vmatpush.msra.mxu0 %v2022
      %2890 = vmatpush.msra.mxu0 %v2016
      %2891 = vmatpush.msra.mxu0 %v2010
      %2892 = vmatpush.msra.mxu0 %v2004
      %2893 = vmatpush.msra.mxu0 %v1998
      %2894 = vmatpush.msra.mxu0 %v1992
      %2895 = vmatpush.msra.mxu0 %v1986
      %2896 = vmatpush.msra.mxu0 %v1980
      %2897 = vmatpush.msra.mxu0 %v1974
      %2898 = vmatpush.msra.mxu0 %v1968
      %2899 = vmatpush.msra.mxu0 %v1962
      %2900 = vmatpush.msra.mxu0 %v1956
      %2901 = vmatpush.msra.mxu0 %v1950
      %2902 = vmatpush.msra.mxu0 %v1944
      %2903 = vmatpush.msra.mxu0 %v1938
      %2904 = vmatmul.f32.gmra.mxu0 %v1178
      %v2905 = vpop.f32.mrf.mxu0
      %v2906 = vadd.f32 %v2877, %v2905
      %2907 = vmatmul.f32.gmra.mxu0 %v1185
      %v2908 = vpop.f32.mrf.mxu0
      %v2909 = vadd.f32 %v2880, %v2908
      %2910 = vmatmul.f32.gmra.mxu0 %v1192
      %v2911 = vpop.f32.mrf.mxu0
      %v2912 = vadd.f32 %v2883, %v2911
      %2913 = vmatmul.f32.gmra.mxu0 %v1199
      %v2914 = vpop.f32.mrf.mxu0
      %v2915 = vadd.f32 %v2886, %v2914
      %2916 = vdwg.mxu0
      %2917 = vmatpush.msra.mxu0 %v2124
      %2918 = vmatpush.msra.mxu0 %v2118
      %2919 = vmatpush.msra.mxu0 %v2112
      %2920 = vmatpush.msra.mxu0 %v2106
      %2921 = vmatpush.msra.mxu0 %v2100
      %2922 = vmatpush.msra.mxu0 %v2094
      %2923 = vmatpush.msra.mxu0 %v2088
      %2924 = vmatpush.msra.mxu0 %v2082
      %2925 = vmatpush.msra.mxu0 %v2076
      %2926 = vmatpush.msra.mxu0 %v2070
      %2927 = vmatpush.msra.mxu0 %v2064
      %2928 = vmatpush.msra.mxu0 %v2058
      %2929 = vmatpush.msra.mxu0 %v2052
      %2930 = vmatpush.msra.mxu0 %v2046
      %2931 = vmatpush.msra.mxu0 %v2040
      %2932 = vmatpush.msra.mxu0 %v2034
      %2933 = vmatmul.f32.gmra.mxu0 %v1179
      %v2934 = vpop.f32.mrf.mxu0
      %v2935 = vadd.f32 %v2906, %v2934
      %2936 = vmatmul.f32.gmra.mxu0 %v1186
      %v2937 = vpop.f32.mrf.mxu0
      %v2938 = vadd.f32 %v2909, %v2937
      %2939 = vmatmul.f32.gmra.mxu0 %v1193
      %v2940 = vpop.f32.mrf.mxu0
      %v2941 = vadd.f32 %v2912, %v2940
      %2942 = vmatmul.f32.gmra.mxu0 %v1200
      %v2943 = vpop.f32.mrf.mxu0
      %v2944 = vadd.f32 %v2915, %v2943
      %2945 = vdwg.mxu0
      %2946 = vmatpush.msra.mxu0 0.0
      %2947 = vmatpush.msra.mxu0 0.0
      %2948 = vmatpush.msra.mxu0 0.0
      %2949 = vmatpush.msra.mxu0 0.0
      %2950 = vmatpush.msra.mxu0 0.0
      %2951 = vmatpush.msra.mxu0 0.0
      %2952 = vmatpush.msra.mxu0 0.0
      %2953 = vmatpush.msra.mxu0 0.0
      %2954 = vmatpush.msra.mxu0 0.0
      %2955 = vmatpush.msra.mxu0 0.0
      %2956 = vmatpush.msra.mxu0 0.0
      %2957 = vmatpush.msra.mxu0 0.0
      %2958 = vmatpush.msra.mxu0 %v2148
      %2959 = vmatpush.msra.mxu0 %v2142
      %2960 = vmatpush.msra.mxu0 %v2136
      %2961 = vmatpush.msra.mxu0 %v2130
      %2962 = vmatmul.f32.gmra.mxu0 %v2355
      %v2963 = vpop.f32.mrf.mxu0
      %v2964 = vadd.f32 %v2935, %v2963
      %2965 = vmatmul.f32.gmra.mxu0 %v2358
      %v2966 = vpop.f32.mrf.mxu0
      %v2967 = vadd.f32 %v2938, %v2966
      %2968 = vmatmul.f32.gmra.mxu0 %v2361
      %v2969 = vpop.f32.mrf.mxu0
      %v2970 = vadd.f32 %v2941, %v2969
      %2971 = vmatmul.f32.gmra.mxu0 %v2364
      %v2972 = vpop.f32.mrf.mxu0
      %v2973 = vadd.f32 %v2944, %v2972
      %2974 = vdwg.mxu0
      %v2975 = vadd.f32 %v2558, %v1718
      %v2976 = vadd.f32 %v2761, %v1719
      %v2977 = vadd.f32 %v2964, %v1699
      %v2978 = vadd.f32 %v2561, %v1720
      %v2979 = vadd.f32 %v2764, %v1721
      %v2980 = vadd.f32 %v2967, %v1705
      %v2981 = vadd.f32 %v2564, %v1722
      %v2982 = vadd.f32 %v2767, %v1723
      %v2983 = vadd.f32 %v2970, %v1711
      %v2984 = vadd.f32 %v2567, %v1724
      %v2985 = vadd.f32 %v2770, %v1725
      %v2986 = vadd.f32 %v2973, %v1717
      %vm2987 = vcmp.ge.f32.partialorder %v2975, 0.0
      %vm2988 = vcmp.ge.f32.partialorder %v2976, 0.0
      %vm2989 = vcmp.ge.f32.partialorder %v2977, 0.0
      %vm2990 = vcmp.ge.f32.partialorder %v2978, 0.0
      %vm2991 = vcmp.ge.f32.partialorder %v2979, 0.0
      %vm2992 = vcmp.ge.f32.partialorder %v2980, 0.0
      %vm2993 = vcmp.ge.f32.partialorder %v2981, 0.0
      %vm2994 = vcmp.ge.f32.partialorder %v2982, 0.0
      %vm2995 = vcmp.ge.f32.partialorder %v2983, 0.0
      %vm2996 = vcmp.ge.f32.partialorder %v2984, 0.0
      %vm2997 = vcmp.ge.f32.partialorder %v2985, 0.0
      %vm2998 = vcmp.ge.f32.partialorder %v2986, 0.0
      %v2999 = vmul.f32 %v2975, 0.2
      %v3000 = vmul.f32 %v2976, 0.2
      %v3001 = vmul.f32 %v2977, 0.2
      %v3002 = vmul.f32 %v2978, 0.2
      %v3003 = vmul.f32 %v2979, 0.2
      %v3004 = vmul.f32 %v2980, 0.2
      %v3005 = vmul.f32 %v2981, 0.2
      %v3006 = vmul.f32 %v2982, 0.2
      %v3007 = vmul.f32 %v2983, 0.2
      %v3008 = vmul.f32 %v2984, 0.2
      %v3009 = vmul.f32 %v2985, 0.2
      %v3010 = vmul.f32 %v2986, 0.2
      %v3011 = vsel %vm2987, %v2975, %v2999
      %v3012 = vsel %vm2988, %v2976, %v3000
      %v3013 = vsel %vm2989, %v2977, %v3001
      %v3014 = vsel %vm2990, %v2978, %v3002
      %v3015 = vsel %vm2991, %v2979, %v3003
      %v3016 = vsel %vm2992, %v2980, %v3004
      %v3017 = vsel %vm2993, %v2981, %v3005
      %v3018 = vsel %vm2994, %v2982, %v3006
      %v3019 = vsel %vm2995, %v2983, %v3007
      %v3020 = vsel %vm2996, %v2984, %v3008
      %v3021 = vsel %vm2997, %v2985, %v3009
      %v3022 = vsel %vm2998, %v2986, %v3010
      %v3023 = vmul.f32 %v3011, %v1091
      %v3024 = vmul.f32 %v3012, %v1092
      %v3025 = vmul.f32 %v3013, %v1093
      %v3026 = vmul.f32 %v3014, %v1091
      %v3027 = vmul.f32 %v3015, %v1092
      %v3028 = vmul.f32 %v3016, %v1093
      %v3029 = vmul.f32 %v3017, %v1091
      %v3030 = vmul.f32 %v3018, %v1092
      %v3031 = vmul.f32 %v3019, %v1093
      %v3032 = vmul.f32 %v3020, %v1091
      %v3033 = vmul.f32 %v3021, %v1092
      %v3034 = vmul.f32 %v3022, %v1093
      %3047 = vrot.lane.b32.xlu0 %v3023, 42
      %v3048 = vpop.permute.xlu0 %3047
      %3049 = vrot.lane.b32.xlu0 %v3024, 42
      %v3050 = vpop.permute.xlu0 %3049
      %3051 = vrot.lane.b32.xlu0 %v3025, 42
      %v3052 = vpop.permute.xlu0 %3051
      %3053 = vrot.lane.b32.xlu0 %v3026, 42
      %v3054 = vpop.permute.xlu0 %3053
      %3055 = vrot.lane.b32.xlu0 %v3027, 42
      %v3056 = vpop.permute.xlu0 %3055
      %3057 = vrot.lane.b32.xlu0 %v3028, 42
      %v3058 = vpop.permute.xlu0 %3057
      %3059 = vrot.lane.b32.xlu0 %v3029, 42
      %v3060 = vpop.permute.xlu0 %3059
      %3061 = vrot.lane.b32.xlu0 %v3030, 42
      %v3062 = vpop.permute.xlu0 %3061
      %3063 = vrot.lane.b32.xlu0 %v3031, 42
      %v3064 = vpop.permute.xlu0 %3063
      %3065 = vrot.lane.b32.xlu0 %v3032, 42
      %v3066 = vpop.permute.xlu0 %3065
      %3067 = vrot.lane.b32.xlu0 %v3033, 42
      %v3068 = vpop.permute.xlu0 %3067
      %3069 = vrot.lane.b32.xlu0 %v3034, 42
      %v3070 = vpop.permute.xlu0 %3069
      %v3071 = vsel %vm1145, %v3048, %v3050
      %v3072 = vsel %vm1145, %v3050, %v3052
      %v3073 = vsel %vm1145, %v3054, %v3056
      %v3074 = vsel %vm1145, %v3056, %v3058
      %v3075 = vsel %vm1145, %v3060, %v3062
      %v3076 = vsel %vm1145, %v3062, %v3064
      %v3077 = vsel %vm1145, %v3066, %v3068
      %v3078 = vsel %vm1145, %v3068, %v3070
      %v3091 = vsel %vm1145, 0.0, %v3048
      %v3092 = vsel %vm1145, 0.0, %v3054
      %v3093 = vsel %vm1145, 0.0, %v3060
      %v3094 = vsel %vm1145, 0.0, %v3066
      %v3095 = vsel %vm616, %v3072, 0.0
      %v3096 = vsel %vm616, %v3074, 0.0
      %v3097 = vsel %vm616, %v3076, 0.0
      %v3098 = vsel %vm616, %v3078, 0.0
      %v3099 = vld [vmem:[%s6] sm:$0xff]
      %v3100 = vld [vmem:[%s6 + $0x8] sm:$0xff]
      %v3101 = vld [vmem:[%s6 + $0x10] sm:$0xff]
      %v3102 = vld [vmem:[%s6 + $0x18] sm:$0xff]
      %v3103 = vld [vmem:[%s6 + $0x20] sm:$0xff]
      %v3104 = vld [vmem:[%s6 + $0x28] sm:$0xff]
      %v3105 = vld [vmem:[%s6 + $0x30] sm:$0xff]
      %v3106 = vld [vmem:[%s6 + $0x38] sm:$0xff]
      %v3107 = vld [vmem:[%s6 + $0x40] sm:$0xff]
      %v3108 = vld [vmem:[%s6 + $0x48] sm:$0xff]
      %v3109 = vld [vmem:[%s6 + $0x50] sm:$0xff]
      %v3110 = vld [vmem:[%s6 + $0x58] sm:$0xff]
      %v3111 = vld [vmem:[%s6 + $0x60] sm:$0xff]
      %v3112 = vld [vmem:[%s6 + $0x68] sm:$0xff]
      %v3113 = vld [vmem:[%s6 + $0x70] sm:$0xff]
      %v3114 = vld [vmem:[%s6 + $0x78] sm:$0xff]
      %v3115 = vld [vmem:[%s6 + $0x80] sm:$0xff]
      %v3116 = vld [vmem:[%s6 + $0x88] sm:$0xff]
      %v3117 = vld [vmem:[%s6 + $0x90] sm:$0xff]
      %v3118 = vld [vmem:[%s6 + $0x98] sm:$0xff]
      %v3119 = vld [vmem:[%s6 + $0xa0] sm:$0xff]
      %v3120 = vld [vmem:[%s6 + $0xa8] sm:$0xff]
      %v3121 = vld [vmem:[%s6 + $0xb0] sm:$0xff]
      %v3122 = vld [vmem:[%s6 + $0xb8] sm:$0xff]
      %v3123 = vld [vmem:[%s6 + $0xc0] sm:$0xff]
      %v3124 = vld [vmem:[%s6 + $0xc8] sm:$0xff]
      %v3125 = vld [vmem:[%s6 + $0xd0] sm:$0xff]
      %v3126 = vld [vmem:[%s6 + $0xd8] sm:$0xff]
      %3135 = vrot.lane.b32.xlu0 %v3091, 127
      %v3136 = vpop.permute.xlu0 %3135
      %3137 = vrot.lane.b32.xlu0 %v3071, 127
      %v3138 = vpop.permute.xlu0 %3137
      %3139 = vrot.lane.b32.xlu0 %v3095, 127
      %v3140 = vpop.permute.xlu0 %3139
      %3141 = vrot.lane.b32.xlu0 %v3092, 127
      %v3142 = vpop.permute.xlu0 %3141
      %3143 = vrot.lane.b32.xlu0 %v3073, 127
      %v3144 = vpop.permute.xlu0 %3143
      %3145 = vrot.lane.b32.xlu0 %v3096, 127
      %v3146 = vpop.permute.xlu0 %3145
      %3147 = vrot.lane.b32.xlu0 %v3093, 127
      %v3148 = vpop.permute.xlu0 %3147
      %3149 = vrot.lane.b32.xlu0 %v3075, 127
      %v3150 = vpop.permute.xlu0 %3149
      %3151 = vrot.lane.b32.xlu0 %v3097, 127
      %v3152 = vpop.permute.xlu0 %3151
      %3153 = vrot.lane.b32.xlu0 %v3094, 127
      %v3154 = vpop.permute.xlu0 %3153
      %3155 = vrot.lane.b32.xlu0 %v3077, 127
      %v3156 = vpop.permute.xlu0 %3155
      %3157 = vrot.lane.b32.xlu0 %v3098, 127
      %v3158 = vpop.permute.xlu0 %3157
      %v3159 = vsel %vm544, %v3136, %v3138
      %v3160 = vsel %vm544, %v3138, %v3140
      %v3161 = vsel %vm544, %v3142, %v3144
      %v3162 = vsel %vm544, %v3144, %v3146
      %v3163 = vsel %vm544, %v3148, %v3150
      %v3164 = vsel %vm544, %v3150, %v3152
      %v3165 = vsel %vm544, %v3154, %v3156
      %v3166 = vsel %vm544, %v3156, %v3158
      %3179 = vrot.lane.b32.xlu0 %v3091, 126
      %v3180 = vpop.permute.xlu0 %3179
      %3181 = vrot.lane.b32.xlu0 %v3071, 126
      %v3182 = vpop.permute.xlu0 %3181
      %3183 = vrot.lane.b32.xlu0 %v3095, 126
      %v3184 = vpop.permute.xlu0 %3183
      %3185 = vrot.lane.b32.xlu0 %v3092, 126
      %v3186 = vpop.permute.xlu0 %3185
      %3187 = vrot.lane.b32.xlu0 %v3073, 126
      %v3188 = vpop.permute.xlu0 %3187
      %3189 = vrot.lane.b32.xlu0 %v3096, 126
      %v3190 = vpop.permute.xlu0 %3189
      %3191 = vrot.lane.b32.xlu0 %v3093, 126
      %v3192 = vpop.permute.xlu0 %3191
      %3193 = vrot.lane.b32.xlu0 %v3075, 126
      %v3194 = vpop.permute.xlu0 %3193
      %3195 = vrot.lane.b32.xlu0 %v3097, 126
      %v3196 = vpop.permute.xlu0 %3195
      %3197 = vrot.lane.b32.xlu0 %v3094, 126
      %v3198 = vpop.permute.xlu0 %3197
      %3199 = vrot.lane.b32.xlu0 %v3077, 126
      %v3200 = vpop.permute.xlu0 %3199
      %3201 = vrot.lane.b32.xlu0 %v3098, 126
      %v3202 = vpop.permute.xlu0 %3201
      %v3203 = vsel %vm556, %v3180, %v3182
      %v3204 = vsel %vm556, %v3182, %v3184
      %v3205 = vsel %vm556, %v3186, %v3188
      %v3206 = vsel %vm556, %v3188, %v3190
      %v3207 = vsel %vm556, %v3192, %v3194
      %v3208 = vsel %vm556, %v3194, %v3196
      %v3209 = vsel %vm556, %v3198, %v3200
      %v3210 = vsel %vm556, %v3200, %v3202
      %3223 = vrot.lane.b32.xlu0 %v3091, 125
      %v3224 = vpop.permute.xlu0 %3223
      %3225 = vrot.lane.b32.xlu0 %v3071, 125
      %v3226 = vpop.permute.xlu0 %3225
      %3227 = vrot.lane.b32.xlu0 %v3095, 125
      %v3228 = vpop.permute.xlu0 %3227
      %3229 = vrot.lane.b32.xlu0 %v3092, 125
      %v3230 = vpop.permute.xlu0 %3229
      %3231 = vrot.lane.b32.xlu0 %v3073, 125
      %v3232 = vpop.permute.xlu0 %3231
      %3233 = vrot.lane.b32.xlu0 %v3096, 125
      %v3234 = vpop.permute.xlu0 %3233
      %3235 = vrot.lane.b32.xlu0 %v3093, 125
      %v3236 = vpop.permute.xlu0 %3235
      %3237 = vrot.lane.b32.xlu0 %v3075, 125
      %v3238 = vpop.permute.xlu0 %3237
      %3239 = vrot.lane.b32.xlu0 %v3097, 125
      %v3240 = vpop.permute.xlu0 %3239
      %3241 = vrot.lane.b32.xlu0 %v3094, 125
      %v3242 = vpop.permute.xlu0 %3241
      %3243 = vrot.lane.b32.xlu0 %v3077, 125
      %v3244 = vpop.permute.xlu0 %3243
      %3245 = vrot.lane.b32.xlu0 %v3098, 125
      %v3246 = vpop.permute.xlu0 %3245
      %v3247 = vsel %vm568, %v3224, %v3226
      %v3248 = vsel %vm568, %v3226, %v3228
      %v3249 = vsel %vm568, %v3230, %v3232
      %v3250 = vsel %vm568, %v3232, %v3234
      %v3251 = vsel %vm568, %v3236, %v3238
      %v3252 = vsel %vm568, %v3238, %v3240
      %v3253 = vsel %vm568, %v3242, %v3244
      %v3254 = vsel %vm568, %v3244, %v3246
      %3267 = vrot.lane.b32.xlu0 %v3091, 124
      %v3268 = vpop.permute.xlu0 %3267
      %3269 = vrot.lane.b32.xlu0 %v3071, 124
      %v3270 = vpop.permute.xlu0 %3269
      %3271 = vrot.lane.b32.xlu0 %v3095, 124
      %v3272 = vpop.permute.xlu0 %3271
      %3273 = vrot.lane.b32.xlu0 %v3092, 124
      %v3274 = vpop.permute.xlu0 %3273
      %3275 = vrot.lane.b32.xlu0 %v3073, 124
      %v3276 = vpop.permute.xlu0 %3275
      %3277 = vrot.lane.b32.xlu0 %v3096, 124
      %v3278 = vpop.permute.xlu0 %3277
      %3279 = vrot.lane.b32.xlu0 %v3093, 124
      %v3280 = vpop.permute.xlu0 %3279
      %3281 = vrot.lane.b32.xlu0 %v3075, 124
      %v3282 = vpop.permute.xlu0 %3281
      %3283 = vrot.lane.b32.xlu0 %v3097, 124
      %v3284 = vpop.permute.xlu0 %3283
      %3285 = vrot.lane.b32.xlu0 %v3094, 124
      %v3286 = vpop.permute.xlu0 %3285
      %3287 = vrot.lane.b32.xlu0 %v3077, 124
      %v3288 = vpop.permute.xlu0 %3287
      %3289 = vrot.lane.b32.xlu0 %v3098, 124
      %v3290 = vpop.permute.xlu0 %3289
      %v3291 = vsel %vm580, %v3268, %v3270
      %v3292 = vsel %vm580, %v3270, %v3272
      %v3293 = vsel %vm580, %v3274, %v3276
      %v3294 = vsel %vm580, %v3276, %v3278
      %v3295 = vsel %vm580, %v3280, %v3282
      %v3296 = vsel %vm580, %v3282, %v3284
      %v3297 = vsel %vm580, %v3286, %v3288
      %v3298 = vsel %vm580, %v3288, %v3290
      %3311 = vrot.lane.b32.xlu0 %v3091, 108
      %v3312 = vpop.permute.xlu0 %3311
      %3313 = vrot.lane.b32.xlu0 %v3071, 108
      %v3314 = vpop.permute.xlu0 %3313
      %3315 = vrot.lane.b32.xlu0 %v3095, 108
      %v3316 = vpop.permute.xlu0 %3315
      %3317 = vrot.lane.b32.xlu0 %v3092, 108
      %v3318 = vpop.permute.xlu0 %3317
      %3319 = vrot.lane.b32.xlu0 %v3073, 108
      %v3320 = vpop.permute.xlu0 %3319
      %3321 = vrot.lane.b32.xlu0 %v3096, 108
      %v3322 = vpop.permute.xlu0 %3321
      %3323 = vrot.lane.b32.xlu0 %v3093, 108
      %v3324 = vpop.permute.xlu0 %3323
      %3325 = vrot.lane.b32.xlu0 %v3075, 108
      %v3326 = vpop.permute.xlu0 %3325
      %3327 = vrot.lane.b32.xlu0 %v3097, 108
      %v3328 = vpop.permute.xlu0 %3327
      %3329 = vrot.lane.b32.xlu0 %v3094, 108
      %v3330 = vpop.permute.xlu0 %3329
      %3331 = vrot.lane.b32.xlu0 %v3077, 108
      %v3332 = vpop.permute.xlu0 %3331
      %3333 = vrot.lane.b32.xlu0 %v3098, 108
      %v3334 = vpop.permute.xlu0 %3333
      %v3335 = vsel %vm592, %v3312, %v3314
      %v3336 = vsel %vm592, %v3314, %v3316
      %v3337 = vsel %vm592, %v3318, %v3320
      %v3338 = vsel %vm592, %v3320, %v3322
      %v3339 = vsel %vm592, %v3324, %v3326
      %v3340 = vsel %vm592, %v3326, %v3328
      %v3341 = vsel %vm592, %v3330, %v3332
      %v3342 = vsel %vm592, %v3332, %v3334
      %3355 = vrot.lane.b32.xlu0 %v3091, 107
      %v3356 = vpop.permute.xlu0 %3355
      %3357 = vrot.lane.b32.xlu0 %v3071, 107
      %v3358 = vpop.permute.xlu0 %3357
      %3359 = vrot.lane.b32.xlu0 %v3095, 107
      %v3360 = vpop.permute.xlu0 %3359
      %3361 = vrot.lane.b32.xlu0 %v3092, 107
      %v3362 = vpop.permute.xlu0 %3361
      %3363 = vrot.lane.b32.xlu0 %v3073, 107
      %v3364 = vpop.permute.xlu0 %3363
      %3365 = vrot.lane.b32.xlu0 %v3096, 107
      %v3366 = vpop.permute.xlu0 %3365
      %3367 = vrot.lane.b32.xlu0 %v3093, 107
      %v3368 = vpop.permute.xlu0 %3367
      %3369 = vrot.lane.b32.xlu0 %v3075, 107
      %v3370 = vpop.permute.xlu0 %3369
      %3371 = vrot.lane.b32.xlu0 %v3097, 107
      %v3372 = vpop.permute.xlu0 %3371
      %3373 = vrot.lane.b32.xlu0 %v3094, 107
      %v3374 = vpop.permute.xlu0 %3373
      %3375 = vrot.lane.b32.xlu0 %v3077, 107
      %v3376 = vpop.permute.xlu0 %3375
      %3377 = vrot.lane.b32.xlu0 %v3098, 107
      %v3378 = vpop.permute.xlu0 %3377
      %v3379 = vsel %vm604, %v3356, %v3358
      %v3380 = vsel %vm604, %v3358, %v3360
      %v3381 = vsel %vm604, %v3362, %v3364
      %v3382 = vsel %vm604, %v3364, %v3366
      %v3383 = vsel %vm604, %v3368, %v3370
      %v3384 = vsel %vm604, %v3370, %v3372
      %v3385 = vsel %vm604, %v3374, %v3376
      %v3386 = vsel %vm604, %v3376, %v3378
      %3399 = vrot.lane.b32.xlu0 %v3091, 106
      %v3400 = vpop.permute.xlu0 %3399
      %3401 = vrot.lane.b32.xlu0 %v3071, 106
      %v3402 = vpop.permute.xlu0 %3401
      %3403 = vrot.lane.b32.xlu0 %v3095, 106
      %v3404 = vpop.permute.xlu0 %3403
      %3405 = vrot.lane.b32.xlu0 %v3092, 106
      %v3406 = vpop.permute.xlu0 %3405
      %3407 = vrot.lane.b32.xlu0 %v3073, 106
      %v3408 = vpop.permute.xlu0 %3407
      %3409 = vrot.lane.b32.xlu0 %v3096, 106
      %v3410 = vpop.permute.xlu0 %3409
      %3411 = vrot.lane.b32.xlu0 %v3093, 106
      %v3412 = vpop.permute.xlu0 %3411
      %3413 = vrot.lane.b32.xlu0 %v3075, 106
      %v3414 = vpop.permute.xlu0 %3413
      %3415 = vrot.lane.b32.xlu0 %v3097, 106
      %v3416 = vpop.permute.xlu0 %3415
      %3417 = vrot.lane.b32.xlu0 %v3094, 106
      %v3418 = vpop.permute.xlu0 %3417
      %3419 = vrot.lane.b32.xlu0 %v3077, 106
      %v3420 = vpop.permute.xlu0 %3419
      %3421 = vrot.lane.b32.xlu0 %v3098, 106
      %v3422 = vpop.permute.xlu0 %3421
      %v3423 = vsel %vm616, %v3400, %v3402
      %v3424 = vsel %vm616, %v3402, %v3404
      %v3425 = vsel %vm616, %v3406, %v3408
      %v3426 = vsel %vm616, %v3408, %v3410
      %v3427 = vsel %vm616, %v3412, %v3414
      %v3428 = vsel %vm616, %v3414, %v3416
      %v3429 = vsel %vm616, %v3418, %v3420
      %v3430 = vsel %vm616, %v3420, %v3422
      %3443 = vrot.lane.b32.xlu0 %v3091, 105
      %v3444 = vpop.permute.xlu0 %3443
      %3445 = vrot.lane.b32.xlu0 %v3071, 105
      %v3446 = vpop.permute.xlu0 %3445
      %3447 = vrot.lane.b32.xlu0 %v3095, 105
      %v3448 = vpop.permute.xlu0 %3447
      %3449 = vrot.lane.b32.xlu0 %v3092, 105
      %v3450 = vpop.permute.xlu0 %3449
      %3451 = vrot.lane.b32.xlu0 %v3073, 105
      %v3452 = vpop.permute.xlu0 %3451
      %3453 = vrot.lane.b32.xlu0 %v3096, 105
      %v3454 = vpop.permute.xlu0 %3453
      %3455 = vrot.lane.b32.xlu0 %v3093, 105
      %v3456 = vpop.permute.xlu0 %3455
      %3457 = vrot.lane.b32.xlu0 %v3075, 105
      %v3458 = vpop.permute.xlu0 %3457
      %3459 = vrot.lane.b32.xlu0 %v3097, 105
      %v3460 = vpop.permute.xlu0 %3459
      %3461 = vrot.lane.b32.xlu0 %v3094, 105
      %v3462 = vpop.permute.xlu0 %3461
      %3463 = vrot.lane.b32.xlu0 %v3077, 105
      %v3464 = vpop.permute.xlu0 %3463
      %3465 = vrot.lane.b32.xlu0 %v3098, 105
      %v3466 = vpop.permute.xlu0 %3465
      %v3467 = vsel %vm628, %v3444, %v3446
      %v3468 = vsel %vm628, %v3446, %v3448
      %v3469 = vsel %vm628, %v3450, %v3452
      %v3470 = vsel %vm628, %v3452, %v3454
      %v3471 = vsel %vm628, %v3456, %v3458
      %v3472 = vsel %vm628, %v3458, %v3460
      %v3473 = vsel %vm628, %v3462, %v3464
      %v3474 = vsel %vm628, %v3464, %v3466
      %3487 = vrot.lane.b32.xlu0 %v3091, 104
      %v3488 = vpop.permute.xlu0 %3487
      %3489 = vrot.lane.b32.xlu0 %v3071, 104
      %v3490 = vpop.permute.xlu0 %3489
      %3491 = vrot.lane.b32.xlu0 %v3095, 104
      %v3492 = vpop.permute.xlu0 %3491
      %3493 = vrot.lane.b32.xlu0 %v3092, 104
      %v3494 = vpop.permute.xlu0 %3493
      %3495 = vrot.lane.b32.xlu0 %v3073, 104
      %v3496 = vpop.permute.xlu0 %3495
      %3497 = vrot.lane.b32.xlu0 %v3096, 104
      %v3498 = vpop.permute.xlu0 %3497
      %3499 = vrot.lane.b32.xlu0 %v3093, 104
      %v3500 = vpop.permute.xlu0 %3499
      %3501 = vrot.lane.b32.xlu0 %v3075, 104
      %v3502 = vpop.permute.xlu0 %3501
      %3503 = vrot.lane.b32.xlu0 %v3097, 104
      %v3504 = vpop.permute.xlu0 %3503
      %3505 = vrot.lane.b32.xlu0 %v3094, 104
      %v3506 = vpop.permute.xlu0 %3505
      %3507 = vrot.lane.b32.xlu0 %v3077, 104
      %v3508 = vpop.permute.xlu0 %3507
      %3509 = vrot.lane.b32.xlu0 %v3098, 104
      %v3510 = vpop.permute.xlu0 %3509
      %v3511 = vsel %vm640, %v3488, %v3490
      %v3512 = vsel %vm640, %v3490, %v3492
      %v3513 = vsel %vm640, %v3494, %v3496
      %v3514 = vsel %vm640, %v3496, %v3498
      %v3515 = vsel %vm640, %v3500, %v3502
      %v3516 = vsel %vm640, %v3502, %v3504
      %v3517 = vsel %vm640, %v3506, %v3508
      %v3518 = vsel %vm640, %v3508, %v3510
      %3531 = vrot.lane.b32.xlu0 %v3091, 88
      %v3532 = vpop.permute.xlu0 %3531
      %3533 = vrot.lane.b32.xlu0 %v3071, 88
      %v3534 = vpop.permute.xlu0 %3533
      %3535 = vrot.lane.b32.xlu0 %v3095, 88
      %v3536 = vpop.permute.xlu0 %3535
      %3537 = vrot.lane.b32.xlu0 %v3092, 88
      %v3538 = vpop.permute.xlu0 %3537
      %3539 = vrot.lane.b32.xlu0 %v3073, 88
      %v3540 = vpop.permute.xlu0 %3539
      %3541 = vrot.lane.b32.xlu0 %v3096, 88
      %v3542 = vpop.permute.xlu0 %3541
      %3543 = vrot.lane.b32.xlu0 %v3093, 88
      %v3544 = vpop.permute.xlu0 %3543
      %3545 = vrot.lane.b32.xlu0 %v3075, 88
      %v3546 = vpop.permute.xlu0 %3545
      %3547 = vrot.lane.b32.xlu0 %v3097, 88
      %v3548 = vpop.permute.xlu0 %3547
      %3549 = vrot.lane.b32.xlu0 %v3094, 88
      %v3550 = vpop.permute.xlu0 %3549
      %3551 = vrot.lane.b32.xlu0 %v3077, 88
      %v3552 = vpop.permute.xlu0 %3551
      %3553 = vrot.lane.b32.xlu0 %v3098, 88
      %v3554 = vpop.permute.xlu0 %3553
      %v3555 = vsel %vm652, %v3532, %v3534
      %v3556 = vsel %vm652, %v3534, %v3536
      %v3557 = vsel %vm652, %v3538, %v3540
      %v3558 = vsel %vm652, %v3540, %v3542
      %v3559 = vsel %vm652, %v3544, %v3546
      %v3560 = vsel %vm652, %v3546, %v3548
      %v3561 = vsel %vm652, %v3550, %v3552
      %v3562 = vsel %vm652, %v3552, %v3554
      %3575 = vrot.lane.b32.xlu0 %v3091, 87
      %v3576 = vpop.permute.xlu0 %3575
      %3577 = vrot.lane.b32.xlu0 %v3071, 87
      %v3578 = vpop.permute.xlu0 %3577
      %3579 = vrot.lane.b32.xlu0 %v3095, 87
      %v3580 = vpop.permute.xlu0 %3579
      %3581 = vrot.lane.b32.xlu0 %v3092, 87
      %v3582 = vpop.permute.xlu0 %3581
      %3583 = vrot.lane.b32.xlu0 %v3073, 87
      %v3584 = vpop.permute.xlu0 %3583
      %3585 = vrot.lane.b32.xlu0 %v3096, 87
      %v3586 = vpop.permute.xlu0 %3585
      %3587 = vrot.lane.b32.xlu0 %v3093, 87
      %v3588 = vpop.permute.xlu0 %3587
      %3589 = vrot.lane.b32.xlu0 %v3075, 87
      %v3590 = vpop.permute.xlu0 %3589
      %3591 = vrot.lane.b32.xlu0 %v3097, 87
      %v3592 = vpop.permute.xlu0 %3591
      %3593 = vrot.lane.b32.xlu0 %v3094, 87
      %v3594 = vpop.permute.xlu0 %3593
      %3595 = vrot.lane.b32.xlu0 %v3077, 87
      %v3596 = vpop.permute.xlu0 %3595
      %3597 = vrot.lane.b32.xlu0 %v3098, 87
      %v3598 = vpop.permute.xlu0 %3597
      %v3599 = vsel %vm664, %v3576, %v3578
      %v3600 = vsel %vm664, %v3578, %v3580
      %v3601 = vsel %vm664, %v3582, %v3584
      %v3602 = vsel %vm664, %v3584, %v3586
      %v3603 = vsel %vm664, %v3588, %v3590
      %v3604 = vsel %vm664, %v3590, %v3592
      %v3605 = vsel %vm664, %v3594, %v3596
      %v3606 = vsel %vm664, %v3596, %v3598
      %3619 = vrot.lane.b32.xlu0 %v3091, 86
      %v3620 = vpop.permute.xlu0 %3619
      %3621 = vrot.lane.b32.xlu0 %v3071, 86
      %v3622 = vpop.permute.xlu0 %3621
      %3623 = vrot.lane.b32.xlu0 %v3095, 86
      %v3624 = vpop.permute.xlu0 %3623
      %3625 = vrot.lane.b32.xlu0 %v3092, 86
      %v3626 = vpop.permute.xlu0 %3625
      %3627 = vrot.lane.b32.xlu0 %v3073, 86
      %v3628 = vpop.permute.xlu0 %3627
      %3629 = vrot.lane.b32.xlu0 %v3096, 86
      %v3630 = vpop.permute.xlu0 %3629
      %3631 = vrot.lane.b32.xlu0 %v3093, 86
      %v3632 = vpop.permute.xlu0 %3631
      %3633 = vrot.lane.b32.xlu0 %v3075, 86
      %v3634 = vpop.permute.xlu0 %3633
      %3635 = vrot.lane.b32.xlu0 %v3097, 86
      %v3636 = vpop.permute.xlu0 %3635
      %3637 = vrot.lane.b32.xlu0 %v3094, 86
      %v3638 = vpop.permute.xlu0 %3637
      %3639 = vrot.lane.b32.xlu0 %v3077, 86
      %v3640 = vpop.permute.xlu0 %3639
      %3641 = vrot.lane.b32.xlu0 %v3098, 86
      %v3642 = vpop.permute.xlu0 %3641
      %v3643 = vsel %vm676, %v3620, %v3622
      %v3644 = vsel %vm676, %v3622, %v3624
      %v3645 = vsel %vm676, %v3626, %v3628
      %v3646 = vsel %vm676, %v3628, %v3630
      %v3647 = vsel %vm676, %v3632, %v3634
      %v3648 = vsel %vm676, %v3634, %v3636
      %v3649 = vsel %vm676, %v3638, %v3640
      %v3650 = vsel %vm676, %v3640, %v3642
      %3663 = vrot.lane.b32.xlu0 %v3091, 85
      %v3664 = vpop.permute.xlu0 %3663
      %3665 = vrot.lane.b32.xlu0 %v3071, 85
      %v3666 = vpop.permute.xlu0 %3665
      %3667 = vrot.lane.b32.xlu0 %v3095, 85
      %v3668 = vpop.permute.xlu0 %3667
      %3669 = vrot.lane.b32.xlu0 %v3092, 85
      %v3670 = vpop.permute.xlu0 %3669
      %3671 = vrot.lane.b32.xlu0 %v3073, 85
      %v3672 = vpop.permute.xlu0 %3671
      %3673 = vrot.lane.b32.xlu0 %v3096, 85
      %v3674 = vpop.permute.xlu0 %3673
      %3675 = vrot.lane.b32.xlu0 %v3093, 85
      %v3676 = vpop.permute.xlu0 %3675
      %3677 = vrot.lane.b32.xlu0 %v3075, 85
      %v3678 = vpop.permute.xlu0 %3677
      %3679 = vrot.lane.b32.xlu0 %v3097, 85
      %v3680 = vpop.permute.xlu0 %3679
      %3681 = vrot.lane.b32.xlu0 %v3094, 85
      %v3682 = vpop.permute.xlu0 %3681
      %3683 = vrot.lane.b32.xlu0 %v3077, 85
      %v3684 = vpop.permute.xlu0 %3683
      %3685 = vrot.lane.b32.xlu0 %v3098, 85
      %v3686 = vpop.permute.xlu0 %3685
      %v3687 = vsel %vm688, %v3664, %v3666
      %v3688 = vsel %vm688, %v3666, %v3668
      %v3689 = vsel %vm688, %v3670, %v3672
      %v3690 = vsel %vm688, %v3672, %v3674
      %v3691 = vsel %vm688, %v3676, %v3678
      %v3692 = vsel %vm688, %v3678, %v3680
      %v3693 = vsel %vm688, %v3682, %v3684
      %v3694 = vsel %vm688, %v3684, %v3686
      %3707 = vrot.lane.b32.xlu0 %v3091, 84
      %v3708 = vpop.permute.xlu0 %3707
      %3709 = vrot.lane.b32.xlu0 %v3071, 84
      %v3710 = vpop.permute.xlu0 %3709
      %3711 = vrot.lane.b32.xlu0 %v3095, 84
      %v3712 = vpop.permute.xlu0 %3711
      %3713 = vrot.lane.b32.xlu0 %v3092, 84
      %v3714 = vpop.permute.xlu0 %3713
      %3715 = vrot.lane.b32.xlu0 %v3073, 84
      %v3716 = vpop.permute.xlu0 %3715
      %3717 = vrot.lane.b32.xlu0 %v3096, 84
      %v3718 = vpop.permute.xlu0 %3717
      %3719 = vrot.lane.b32.xlu0 %v3093, 84
      %v3720 = vpop.permute.xlu0 %3719
      %3721 = vrot.lane.b32.xlu0 %v3075, 84
      %v3722 = vpop.permute.xlu0 %3721
      %3723 = vrot.lane.b32.xlu0 %v3097, 84
      %v3724 = vpop.permute.xlu0 %3723
      %3725 = vrot.lane.b32.xlu0 %v3094, 84
      %v3726 = vpop.permute.xlu0 %3725
      %3727 = vrot.lane.b32.xlu0 %v3077, 84
      %v3728 = vpop.permute.xlu0 %3727
      %3729 = vrot.lane.b32.xlu0 %v3098, 84
      %v3730 = vpop.permute.xlu0 %3729
      %v3731 = vsel %vm700, %v3708, %v3710
      %v3732 = vsel %vm700, %v3710, %v3712
      %v3733 = vsel %vm700, %v3714, %v3716
      %v3734 = vsel %vm700, %v3716, %v3718
      %v3735 = vsel %vm700, %v3720, %v3722
      %v3736 = vsel %vm700, %v3722, %v3724
      %v3737 = vsel %vm700, %v3726, %v3728
      %v3738 = vsel %vm700, %v3728, %v3730
      %3751 = vrot.lane.b32.xlu0 %v3091, 68
      %v3752 = vpop.permute.xlu0 %3751
      %3753 = vrot.lane.b32.xlu0 %v3071, 68
      %v3754 = vpop.permute.xlu0 %3753
      %3755 = vrot.lane.b32.xlu0 %v3095, 68
      %v3756 = vpop.permute.xlu0 %3755
      %3757 = vrot.lane.b32.xlu0 %v3092, 68
      %v3758 = vpop.permute.xlu0 %3757
      %3759 = vrot.lane.b32.xlu0 %v3073, 68
      %v3760 = vpop.permute.xlu0 %3759
      %3761 = vrot.lane.b32.xlu0 %v3096, 68
      %v3762 = vpop.permute.xlu0 %3761
      %3763 = vrot.lane.b32.xlu0 %v3093, 68
      %v3764 = vpop.permute.xlu0 %3763
      %3765 = vrot.lane.b32.xlu0 %v3075, 68
      %v3766 = vpop.permute.xlu0 %3765
      %3767 = vrot.lane.b32.xlu0 %v3097, 68
      %v3768 = vpop.permute.xlu0 %3767
      %3769 = vrot.lane.b32.xlu0 %v3094, 68
      %v3770 = vpop.permute.xlu0 %3769
      %3771 = vrot.lane.b32.xlu0 %v3077, 68
      %v3772 = vpop.permute.xlu0 %3771
      %3773 = vrot.lane.b32.xlu0 %v3098, 68
      %v3774 = vpop.permute.xlu0 %3773
      %v3775 = vsel %vm712, %v3752, %v3754
      %v3776 = vsel %vm712, %v3754, %v3756
      %v3777 = vsel %vm712, %v3758, %v3760
      %v3778 = vsel %vm712, %v3760, %v3762
      %v3779 = vsel %vm712, %v3764, %v3766
      %v3780 = vsel %vm712, %v3766, %v3768
      %v3781 = vsel %vm712, %v3770, %v3772
      %v3782 = vsel %vm712, %v3772, %v3774
      %3795 = vrot.lane.b32.xlu0 %v3091, 109
      %v3796 = vpop.permute.xlu0 %3795
      %3797 = vrot.lane.b32.xlu0 %v3071, 109
      %v3798 = vpop.permute.xlu0 %3797
      %3799 = vrot.lane.b32.xlu0 %v3095, 109
      %v3800 = vpop.permute.xlu0 %3799
      %3801 = vrot.lane.b32.xlu0 %v3092, 109
      %v3802 = vpop.permute.xlu0 %3801
      %3803 = vrot.lane.b32.xlu0 %v3073, 109
      %v3804 = vpop.permute.xlu0 %3803
      %3805 = vrot.lane.b32.xlu0 %v3096, 109
      %v3806 = vpop.permute.xlu0 %3805
      %3807 = vrot.lane.b32.xlu0 %v3093, 109
      %v3808 = vpop.permute.xlu0 %3807
      %3809 = vrot.lane.b32.xlu0 %v3075, 109
      %v3810 = vpop.permute.xlu0 %3809
      %3811 = vrot.lane.b32.xlu0 %v3097, 109
      %v3812 = vpop.permute.xlu0 %3811
      %3813 = vrot.lane.b32.xlu0 %v3094, 109
      %v3814 = vpop.permute.xlu0 %3813
      %3815 = vrot.lane.b32.xlu0 %v3077, 109
      %v3816 = vpop.permute.xlu0 %3815
      %3817 = vrot.lane.b32.xlu0 %v3098, 109
      %v3818 = vpop.permute.xlu0 %3817
      %v3819 = vsel %vm727, %v3796, %v3798
      %v3820 = vsel %vm727, %v3798, %v3800
      %v3821 = vsel %vm727, %v3800, %v1878
      %v3822 = vsel %vm727, %v3802, %v3804
      %v3823 = vsel %vm727, %v3804, %v3806
      %v3824 = vsel %vm727, %v3806, %v1878
      %v3825 = vsel %vm727, %v3808, %v3810
      %v3826 = vsel %vm727, %v3810, %v3812
      %v3827 = vsel %vm727, %v3812, %v1878
      %v3828 = vsel %vm727, %v3814, %v3816
      %v3829 = vsel %vm727, %v3816, %v3818
      %v3830 = vsel %vm727, %v3818, %v1878
      %v3831 = vsel %vm592, %v3316, %v1910
      %v3832 = vsel %vm592, %v3322, %v1910
      %v3833 = vsel %vm592, %v3328, %v1910
      %v3834 = vsel %vm592, %v3334, %v1910
      %v3835 = vsel %vm604, %v3360, %v1916
      %v3836 = vsel %vm604, %v3366, %v1916
      %v3837 = vsel %vm604, %v3372, %v1916
      %v3838 = vsel %vm604, %v3378, %v1916
      %v3839 = vsel %vm616, %v3404, %v1922
      %v3840 = vsel %vm616, %v3410, %v1922
      %v3841 = vsel %vm616, %v3416, %v1922
      %v3842 = vsel %vm616, %v3422, %v1922
      %v3843 = vsel %vm628, %v3448, %v1928
      %v3844 = vsel %vm628, %v3454, %v1928
      %v3845 = vsel %vm628, %v3460, %v1928
      %v3846 = vsel %vm628, %v3466, %v1928
      %3847 = vrot.lane.b32.xlu0 %v3091, 67
      %v3848 = vpop.permute.xlu0 %3847
      %3849 = vrot.lane.b32.xlu0 %v3071, 67
      %v3850 = vpop.permute.xlu0 %3849
      %3851 = vrot.lane.b32.xlu0 %v3095, 67
      %v3852 = vpop.permute.xlu0 %3851
      %3853 = vrot.lane.b32.xlu0 %v3092, 67
      %v3854 = vpop.permute.xlu0 %3853
      %3855 = vrot.lane.b32.xlu0 %v3073, 67
      %v3856 = vpop.permute.xlu0 %3855
      %3857 = vrot.lane.b32.xlu0 %v3096, 67
      %v3858 = vpop.permute.xlu0 %3857
      %3859 = vrot.lane.b32.xlu0 %v3093, 67
      %v3860 = vpop.permute.xlu0 %3859
      %3861 = vrot.lane.b32.xlu0 %v3075, 67
      %v3862 = vpop.permute.xlu0 %3861
      %3863 = vrot.lane.b32.xlu0 %v3097, 67
      %v3864 = vpop.permute.xlu0 %3863
      %3865 = vrot.lane.b32.xlu0 %v3094, 67
      %v3866 = vpop.permute.xlu0 %3865
      %3867 = vrot.lane.b32.xlu0 %v3077, 67
      %v3868 = vpop.permute.xlu0 %3867
      %3869 = vrot.lane.b32.xlu0 %v3098, 67
      %v3870 = vpop.permute.xlu0 %3869
      %3871 = vrot.lane.b32.xlu0 %v3159, 67
      %v3872 = vpop.permute.xlu0 %3871
      %3873 = vrot.lane.b32.xlu0 %v3160, 67
      %v3874 = vpop.permute.xlu0 %3873
      %3875 = vrot.lane.b32.xlu0 %v3140, 67
      %v3876 = vpop.permute.xlu0 %3875
      %3877 = vrot.lane.b32.xlu0 %v3161, 67
      %v3878 = vpop.permute.xlu0 %3877
      %3879 = vrot.lane.b32.xlu0 %v3162, 67
      %v3880 = vpop.permute.xlu0 %3879
      %3881 = vrot.lane.b32.xlu0 %v3146, 67
      %v3882 = vpop.permute.xlu0 %3881
      %3883 = vrot.lane.b32.xlu0 %v3163, 67
      %v3884 = vpop.permute.xlu0 %3883
      %3885 = vrot.lane.b32.xlu0 %v3164, 67
      %v3886 = vpop.permute.xlu0 %3885
      %3887 = vrot.lane.b32.xlu0 %v3152, 67
      %v3888 = vpop.permute.xlu0 %3887
      %3889 = vrot.lane.b32.xlu0 %v3165, 67
      %v3890 = vpop.permute.xlu0 %3889
      %3891 = vrot.lane.b32.xlu0 %v3166, 67
      %v3892 = vpop.permute.xlu0 %3891
      %3893 = vrot.lane.b32.xlu0 %v3158, 67
      %v3894 = vpop.permute.xlu0 %3893
      %3895 = vrot.lane.b32.xlu0 %v3203, 67
      %v3896 = vpop.permute.xlu0 %3895
      %3897 = vrot.lane.b32.xlu0 %v3204, 67
      %v3898 = vpop.permute.xlu0 %3897
      %3899 = vrot.lane.b32.xlu0 %v3184, 67
      %v3900 = vpop.permute.xlu0 %3899
      %3901 = vrot.lane.b32.xlu0 %v3205, 67
      %v3902 = vpop.permute.xlu0 %3901
      %3903 = vrot.lane.b32.xlu0 %v3206, 67
      %v3904 = vpop.permute.xlu0 %3903
      %3905 = vrot.lane.b32.xlu0 %v3190, 67
      %v3906 = vpop.permute.xlu0 %3905
      %3907 = vrot.lane.b32.xlu0 %v3207, 67
      %v3908 = vpop.permute.xlu0 %3907
      %3909 = vrot.lane.b32.xlu0 %v3208, 67
      %v3910 = vpop.permute.xlu0 %3909
      %3911 = vrot.lane.b32.xlu0 %v3196, 67
      %v3912 = vpop.permute.xlu0 %3911
      %3913 = vrot.lane.b32.xlu0 %v3209, 67
      %v3914 = vpop.permute.xlu0 %3913
      %3915 = vrot.lane.b32.xlu0 %v3210, 67
      %v3916 = vpop.permute.xlu0 %3915
      %3917 = vrot.lane.b32.xlu0 %v3202, 67
      %v3918 = vpop.permute.xlu0 %3917
      %3919 = vrot.lane.b32.xlu0 %v3247, 67
      %v3920 = vpop.permute.xlu0 %3919
      %3921 = vrot.lane.b32.xlu0 %v3248, 67
      %v3922 = vpop.permute.xlu0 %3921
      %3923 = vrot.lane.b32.xlu0 %v3228, 67
      %v3924 = vpop.permute.xlu0 %3923
      %3925 = vrot.lane.b32.xlu0 %v3249, 67
      %v3926 = vpop.permute.xlu0 %3925
      %3927 = vrot.lane.b32.xlu0 %v3250, 67
      %v3928 = vpop.permute.xlu0 %3927
      %3929 = vrot.lane.b32.xlu0 %v3234, 67
      %v3930 = vpop.permute.xlu0 %3929
      %3931 = vrot.lane.b32.xlu0 %v3251, 67
      %v3932 = vpop.permute.xlu0 %3931
      %3933 = vrot.lane.b32.xlu0 %v3252, 67
      %v3934 = vpop.permute.xlu0 %3933
      %3935 = vrot.lane.b32.xlu0 %v3240, 67
      %v3936 = vpop.permute.xlu0 %3935
      %3937 = vrot.lane.b32.xlu0 %v3253, 67
      %v3938 = vpop.permute.xlu0 %3937
      %3939 = vrot.lane.b32.xlu0 %v3254, 67
      %v3940 = vpop.permute.xlu0 %3939
      %3941 = vrot.lane.b32.xlu0 %v3246, 67
      %v3942 = vpop.permute.xlu0 %3941
      %3943 = vrot.lane.b32.xlu0 %v3819, 67
      %v3944 = vpop.permute.xlu0 %3943
      %3945 = vrot.lane.b32.xlu0 %v3820, 67
      %v3946 = vpop.permute.xlu0 %3945
      %3947 = vrot.lane.b32.xlu0 %v3821, 67
      %v3948 = vpop.permute.xlu0 %3947
      %3949 = vrot.lane.b32.xlu0 %v3822, 67
      %v3950 = vpop.permute.xlu0 %3949
      %3951 = vrot.lane.b32.xlu0 %v3823, 67
      %v3952 = vpop.permute.xlu0 %3951
      %3953 = vrot.lane.b32.xlu0 %v3824, 67
      %v3954 = vpop.permute.xlu0 %3953
      %3955 = vrot.lane.b32.xlu0 %v3825, 67
      %v3956 = vpop.permute.xlu0 %3955
      %3957 = vrot.lane.b32.xlu0 %v3826, 67
      %v3958 = vpop.permute.xlu0 %3957
      %3959 = vrot.lane.b32.xlu0 %v3827, 67
      %v3960 = vpop.permute.xlu0 %3959
      %3961 = vrot.lane.b32.xlu0 %v3828, 67
      %v3962 = vpop.permute.xlu0 %3961
      %3963 = vrot.lane.b32.xlu0 %v3829, 67
      %v3964 = vpop.permute.xlu0 %3963
      %3965 = vrot.lane.b32.xlu0 %v3830, 67
      %v3966 = vpop.permute.xlu0 %3965
      %3967 = vrot.lane.b32.xlu0 %v3335, 67
      %v3968 = vpop.permute.xlu0 %3967
      %3969 = vrot.lane.b32.xlu0 %v3336, 67
      %v3970 = vpop.permute.xlu0 %3969
      %3971 = vrot.lane.b32.xlu0 %v3831, 67
      %v3972 = vpop.permute.xlu0 %3971
      %3973 = vrot.lane.b32.xlu0 %v3337, 67
      %v3974 = vpop.permute.xlu0 %3973
      %3975 = vrot.lane.b32.xlu0 %v3338, 67
      %v3976 = vpop.permute.xlu0 %3975
      %3977 = vrot.lane.b32.xlu0 %v3832, 67
      %v3978 = vpop.permute.xlu0 %3977
      %3979 = vrot.lane.b32.xlu0 %v3339, 67
      %v3980 = vpop.permute.xlu0 %3979
      %3981 = vrot.lane.b32.xlu0 %v3340, 67
      %v3982 = vpop.permute.xlu0 %3981
      %3983 = vrot.lane.b32.xlu0 %v3833, 67
      %v3984 = vpop.permute.xlu0 %3983
      %3985 = vrot.lane.b32.xlu0 %v3341, 67
      %v3986 = vpop.permute.xlu0 %3985
      %3987 = vrot.lane.b32.xlu0 %v3342, 67
      %v3988 = vpop.permute.xlu0 %3987
      %3989 = vrot.lane.b32.xlu0 %v3834, 67
      %v3990 = vpop.permute.xlu0 %3989
      %3991 = vrot.lane.b32.xlu0 %v3379, 67
      %v3992 = vpop.permute.xlu0 %3991
      %3993 = vrot.lane.b32.xlu0 %v3380, 67
      %v3994 = vpop.permute.xlu0 %3993
      %3995 = vrot.lane.b32.xlu0 %v3835, 67
      %v3996 = vpop.permute.xlu0 %3995
      %3997 = vrot.lane.b32.xlu0 %v3381, 67
      %v3998 = vpop.permute.xlu0 %3997
      %3999 = vrot.lane.b32.xlu0 %v3382, 67
      %v4000 = vpop.permute.xlu0 %3999
      %4001 = vrot.lane.b32.xlu0 %v3836, 67
      %v4002 = vpop.permute.xlu0 %4001
      %4003 = vrot.lane.b32.xlu0 %v3383, 67
      %v4004 = vpop.permute.xlu0 %4003
      %4005 = vrot.lane.b32.xlu0 %v3384, 67
      %v4006 = vpop.permute.xlu0 %4005
      %4007 = vrot.lane.b32.xlu0 %v3837, 67
      %v4008 = vpop.permute.xlu0 %4007
      %4009 = vrot.lane.b32.xlu0 %v3385, 67
      %v4010 = vpop.permute.xlu0 %4009
      %4011 = vrot.lane.b32.xlu0 %v3386, 67
      %v4012 = vpop.permute.xlu0 %4011
      %4013 = vrot.lane.b32.xlu0 %v3838, 67
      %v4014 = vpop.permute.xlu0 %4013
      %4015 = vrot.lane.b32.xlu0 %v3423, 67
      %v4016 = vpop.permute.xlu0 %4015
      %4017 = vrot.lane.b32.xlu0 %v3424, 67
      %v4018 = vpop.permute.xlu0 %4017
      %4019 = vrot.lane.b32.xlu0 %v3839, 67
      %v4020 = vpop.permute.xlu0 %4019
      %4021 = vrot.lane.b32.xlu0 %v3425, 67
      %v4022 = vpop.permute.xlu0 %4021
      %4023 = vrot.lane.b32.xlu0 %v3426, 67
      %v4024 = vpop.permute.xlu0 %4023
      %4025 = vrot.lane.b32.xlu0 %v3840, 67
      %v4026 = vpop.permute.xlu0 %4025
      %4027 = vrot.lane.b32.xlu0 %v3427, 67
      %v4028 = vpop.permute.xlu0 %4027
      %4029 = vrot.lane.b32.xlu0 %v3428, 67
      %v4030 = vpop.permute.xlu0 %4029
      %4031 = vrot.lane.b32.xlu0 %v3841, 67
      %v4032 = vpop.permute.xlu0 %4031
      %4033 = vrot.lane.b32.xlu0 %v3429, 67
      %v4034 = vpop.permute.xlu0 %4033
      %4035 = vrot.lane.b32.xlu0 %v3430, 67
      %v4036 = vpop.permute.xlu0 %4035
      %4037 = vrot.lane.b32.xlu0 %v3842, 67
      %v4038 = vpop.permute.xlu0 %4037
      %4039 = vrot.lane.b32.xlu0 %v3467, 67
      %v4040 = vpop.permute.xlu0 %4039
      %4041 = vrot.lane.b32.xlu0 %v3468, 67
      %v4042 = vpop.permute.xlu0 %4041
      %4043 = vrot.lane.b32.xlu0 %v3843, 67
      %v4044 = vpop.permute.xlu0 %4043
      %4045 = vrot.lane.b32.xlu0 %v3469, 67
      %v4046 = vpop.permute.xlu0 %4045
      %4047 = vrot.lane.b32.xlu0 %v3470, 67
      %v4048 = vpop.permute.xlu0 %4047
      %4049 = vrot.lane.b32.xlu0 %v3844, 67
      %v4050 = vpop.permute.xlu0 %4049
      %4051 = vrot.lane.b32.xlu0 %v3471, 67
      %v4052 = vpop.permute.xlu0 %4051
      %4053 = vrot.lane.b32.xlu0 %v3472, 67
      %v4054 = vpop.permute.xlu0 %4053
      %4055 = vrot.lane.b32.xlu0 %v3845, 67
      %v4056 = vpop.permute.xlu0 %4055
      %4057 = vrot.lane.b32.xlu0 %v3473, 67
      %v4058 = vpop.permute.xlu0 %4057
      %4059 = vrot.lane.b32.xlu0 %v3474, 67
      %v4060 = vpop.permute.xlu0 %4059
      %4061 = vrot.lane.b32.xlu0 %v3846, 67
      %v4062 = vpop.permute.xlu0 %4061
      %v4063 = vsel %vm797, %v3848, %v3850
      %v4064 = vsel %vm797, %v3850, %v3852
      %v4065 = vsel %vm797, %v3854, %v3856
      %v4066 = vsel %vm797, %v3856, %v3858
      %v4067 = vsel %vm797, %v3860, %v3862
      %v4068 = vsel %vm797, %v3862, %v3864
      %v4069 = vsel %vm797, %v3866, %v3868
      %v4070 = vsel %vm797, %v3868, %v3870
      %v4071 = vsel %vm797, %v3872, %v3874
      %v4072 = vsel %vm797, %v3874, %v3876
      %v4073 = vsel %vm797, %v3878, %v3880
      %v4074 = vsel %vm797, %v3880, %v3882
      %v4075 = vsel %vm797, %v3884, %v3886
      %v4076 = vsel %vm797, %v3886, %v3888
      %v4077 = vsel %vm797, %v3890, %v3892
      %v4078 = vsel %vm797, %v3892, %v3894
      %v4079 = vsel %vm797, %v3896, %v3898
      %v4080 = vsel %vm797, %v3898, %v3900
      %v4081 = vsel %vm797, %v3902, %v3904
      %v4082 = vsel %vm797, %v3904, %v3906
      %v4083 = vsel %vm797, %v3908, %v3910
      %v4084 = vsel %vm797, %v3910, %v3912
      %v4085 = vsel %vm797, %v3914, %v3916
      %v4086 = vsel %vm797, %v3916, %v3918
      %v4087 = vsel %vm797, %v3920, %v3922
      %v4088 = vsel %vm797, %v3922, %v3924
      %v4089 = vsel %vm797, %v3926, %v3928
      %v4090 = vsel %vm797, %v3928, %v3930
      %v4091 = vsel %vm797, %v3932, %v3934
      %v4092 = vsel %vm797, %v3934, %v3936
      %v4093 = vsel %vm797, %v3938, %v3940
      %v4094 = vsel %vm797, %v3940, %v3942
      %v4095 = vsel %vm797, %v3944, %v3946
      %v4096 = vsel %vm797, %v3946, %v3948
      %v4097 = vsel %vm797, %v3950, %v3952
      %v4098 = vsel %vm797, %v3952, %v3954
      %v4099 = vsel %vm797, %v3956, %v3958
      %v4100 = vsel %vm797, %v3958, %v3960
      %v4101 = vsel %vm797, %v3962, %v3964
      %v4102 = vsel %vm797, %v3964, %v3966
      %v4103 = vsel %vm797, %v3968, %v3970
      %v4104 = vsel %vm797, %v3970, %v3972
      %v4105 = vsel %vm797, %v3974, %v3976
      %v4106 = vsel %vm797, %v3976, %v3978
      %v4107 = vsel %vm797, %v3980, %v3982
      %v4108 = vsel %vm797, %v3982, %v3984
      %v4109 = vsel %vm797, %v3986, %v3988
      %v4110 = vsel %vm797, %v3988, %v3990
      %v4111 = vsel %vm797, %v3992, %v3994
      %v4112 = vsel %vm797, %v3994, %v3996
      %v4113 = vsel %vm797, %v3998, %v4000
      %v4114 = vsel %vm797, %v4000, %v4002
      %v4115 = vsel %vm797, %v4004, %v4006
      %v4116 = vsel %vm797, %v4006, %v4008
      %v4117 = vsel %vm797, %v4010, %v4012
      %v4118 = vsel %vm797, %v4012, %v4014
      %v4119 = vsel %vm797, %v4016, %v4018
      %v4120 = vsel %vm797, %v4018, %v4020
      %v4121 = vsel %vm797, %v4022, %v4024
      %v4122 = vsel %vm797, %v4024, %v4026
      %v4123 = vsel %vm797, %v4028, %v4030
      %v4124 = vsel %vm797, %v4030, %v4032
      %v4125 = vsel %vm797, %v4034, %v4036
      %v4126 = vsel %vm797, %v4036, %v4038
      %v4127 = vsel %vm797, %v4040, %v4042
      %v4128 = vsel %vm797, %v4042, %v4044
      %v4129 = vsel %vm797, %v4046, %v4048
      %v4130 = vsel %vm797, %v4048, %v4050
      %v4131 = vsel %vm797, %v4052, %v4054
      %v4132 = vsel %vm797, %v4054, %v4056
      %v4133 = vsel %vm797, %v4058, %v4060
      %v4134 = vsel %vm797, %v4060, %v4062
      %v4243 = vld [vmem:[%s7] sm:$0xff]
      %v4244 = vld [vmem:[%s7 + $0x8] sm:$0xff]
      %v4245 = vld [vmem:[%s7 + $0x10] sm:$0xff]
      %v4246 = vld [vmem:[%s7 + $0x18] sm:$0xff]
      %4248 = vset.pattern.permute.xlu0 0
      %4249 = vperm.xlu0 %4248, %v4243
      %v4250 = vpop.permute.xlu0 %4249
      %4253 = vset.pattern.permute.xlu0 0
      %4254 = vperm.xlu0 %4253, %v4244
      %v4255 = vpop.permute.xlu0 %4254
      %4258 = vset.pattern.permute.xlu0 0
      %4259 = vperm.xlu0 %4258, %v4245
      %v4260 = vpop.permute.xlu0 %4259
      %4263 = vset.pattern.permute.xlu0 0
      %4264 = vperm.xlu0 %4263, %v4246
      %v4265 = vpop.permute.xlu0 %4264
      %v4268 = vsel %vm2353, %v3105, 0
      %v4271 = vsel %vm2353, %v3112, 0
      %v4274 = vsel %vm2353, %v3119, 0
      %v4277 = vsel %vm2353, %v3126, 0
      %4279 = vmatpush.msra.mxu0 %v3253
      %4280 = vmatpush.msra.mxu0 %v3251
      %4281 = vmatpush.msra.mxu0 %v3249
      %4282 = vmatpush.msra.mxu0 %v3247
      %4283 = vmatpush.msra.mxu0 %v3209
      %4284 = vmatpush.msra.mxu0 %v3207
      %4285 = vmatpush.msra.mxu0 %v3205
      %4286 = vmatpush.msra.mxu0 %v3203
      %4287 = vmatpush.msra.mxu0 %v3165
      %4288 = vmatpush.msra.mxu0 %v3163
      %4289 = vmatpush.msra.mxu0 %v3161
      %4290 = vmatpush.msra.mxu0 %v3159
      %4291 = vmatpush.msra.mxu0 %v3094
      %4292 = vmatpush.msra.mxu0 %v3093
      %4293 = vmatpush.msra.mxu0 %v3092
      %4294 = vmatpush.msra.mxu0 %v3091
      %4295 = vmatmul.f32.gmra.mxu0 %v3099
      %v4296 = vpop.f32.mrf.mxu0
      %v4297 = vadd.f32 %v4250, %v4296
      %4298 = vmatmul.f32.gmra.mxu0 %v3106
      %v4299 = vpop.f32.mrf.mxu0
      %v4300 = vadd.f32 %v4255, %v4299
      %4301 = vmatmul.f32.gmra.mxu0 %v3113
      %v4302 = vpop.f32.mrf.mxu0
      %v4303 = vadd.f32 %v4260, %v4302
      %4304 = vmatmul.f32.gmra.mxu0 %v3120
      %v4305 = vpop.f32.mrf.mxu0
      %v4306 = vadd.f32 %v4265, %v4305
      %4307 = vdwg.mxu0
      %4308 = vmatpush.msra.mxu0 %v3429
      %4309 = vmatpush.msra.mxu0 %v3427
      %4310 = vmatpush.msra.mxu0 %v3425
      %4311 = vmatpush.msra.mxu0 %v3423
      %4312 = vmatpush.msra.mxu0 %v3385
      %4313 = vmatpush.msra.mxu0 %v3383
      %4314 = vmatpush.msra.mxu0 %v3381
      %4315 = vmatpush.msra.mxu0 %v3379
      %4316 = vmatpush.msra.mxu0 %v3341
      %4317 = vmatpush.msra.mxu0 %v3339
      %4318 = vmatpush.msra.mxu0 %v3337
      %4319 = vmatpush.msra.mxu0 %v3335
      %4320 = vmatpush.msra.mxu0 %v3297
      %4321 = vmatpush.msra.mxu0 %v3295
      %4322 = vmatpush.msra.mxu0 %v3293
      %4323 = vmatpush.msra.mxu0 %v3291
      %4324 = vmatmul.f32.gmra.mxu0 %v3100
      %v4325 = vpop.f32.mrf.mxu0
      %v4326 = vadd.f32 %v4297, %v4325
      %4327 = vmatmul.f32.gmra.mxu0 %v3107
      %v4328 = vpop.f32.mrf.mxu0
      %v4329 = vadd.f32 %v4300, %v4328
      %4330 = vmatmul.f32.gmra.mxu0 %v3114
      %v4331 = vpop.f32.mrf.mxu0
      %v4332 = vadd.f32 %v4303, %v4331
      %4333 = vmatmul.f32.gmra.mxu0 %v3121
      %v4334 = vpop.f32.mrf.mxu0
      %v4335 = vadd.f32 %v4306, %v4334
      %4336 = vdwg.mxu0
      %4337 = vmatpush.msra.mxu0 %v3605
      %4338 = vmatpush.msra.mxu0 %v3603
      %4339 = vmatpush.msra.mxu0 %v3601
      %4340 = vmatpush.msra.mxu0 %v3599
      %4341 = vmatpush.msra.mxu0 %v3561
      %4342 = vmatpush.msra.mxu0 %v3559
      %4343 = vmatpush.msra.mxu0 %v3557
      %4344 = vmatpush.msra.mxu0 %v3555
      %4345 = vmatpush.msra.mxu0 %v3517
      %4346 = vmatpush.msra.mxu0 %v3515
      %4347 = vmatpush.msra.mxu0 %v3513
      %4348 = vmatpush.msra.mxu0 %v3511
      %4349 = vmatpush.msra.mxu0 %v3473
      %4350 = vmatpush.msra.mxu0 %v3471
      %4351 = vmatpush.msra.mxu0 %v3469
      %4352 = vmatpush.msra.mxu0 %v3467
      %4353 = vmatmul.f32.gmra.mxu0 %v3101
      %v4354 = vpop.f32.mrf.mxu0
      %v4355 = vadd.f32 %v4326, %v4354
      %4356 = vmatmul.f32.gmra.mxu0 %v3108
      %v4357 = vpop.f32.mrf.mxu0
      %v4358 = vadd.f32 %v4329, %v4357
      %4359 = vmatmul.f32.gmra.mxu0 %v3115
      %v4360 = vpop.f32.mrf.mxu0
      %v4361 = vadd.f32 %v4332, %v4360
      %4362 = vmatmul.f32.gmra.mxu0 %v3122
      %v4363 = vpop.f32.mrf.mxu0
      %v4364 = vadd.f32 %v4335, %v4363
      %4365 = vdwg.mxu0
      %4366 = vmatpush.msra.mxu0 %v3781
      %4367 = vmatpush.msra.mxu0 %v3779
      %4368 = vmatpush.msra.mxu0 %v3777
      %4369 = vmatpush.msra.mxu0 %v3775
      %4370 = vmatpush.msra.mxu0 %v3737
      %4371 = vmatpush.msra.mxu0 %v3735
      %4372 = vmatpush.msra.mxu0 %v3733
      %4373 = vmatpush.msra.mxu0 %v3731
      %4374 = vmatpush.msra.mxu0 %v3693
      %4375 = vmatpush.msra.mxu0 %v3691
      %4376 = vmatpush.msra.mxu0 %v3689
      %4377 = vmatpush.msra.mxu0 %v3687
      %4378 = vmatpush.msra.mxu0 %v3649
      %4379 = vmatpush.msra.mxu0 %v3647
      %4380 = vmatpush.msra.mxu0 %v3645
      %4381 = vmatpush.msra.mxu0 %v3643
      %4382 = vmatmul.f32.gmra.mxu0 %v3102
      %v4383 = vpop.f32.mrf.mxu0
      %v4384 = vadd.f32 %v4355, %v4383
      %4385 = vmatmul.f32.gmra.mxu0 %v3109
      %v4386 = vpop.f32.mrf.mxu0
      %v4387 = vadd.f32 %v4358, %v4386
      %4388 = vmatmul.f32.gmra.mxu0 %v3116
      %v4389 = vpop.f32.mrf.mxu0
      %v4390 = vadd.f32 %v4361, %v4389
      %4391 = vmatmul.f32.gmra.mxu0 %v3123
      %v4392 = vpop.f32.mrf.mxu0
      %v4393 = vadd.f32 %v4364, %v4392
      %4394 = vdwg.mxu0
      %4395 = vmatpush.msra.mxu0 %v4093
      %4396 = vmatpush.msra.mxu0 %v4091
      %4397 = vmatpush.msra.mxu0 %v4089
      %4398 = vmatpush.msra.mxu0 %v4087
      %4399 = vmatpush.msra.mxu0 %v4085
      %4400 = vmatpush.msra.mxu0 %v4083
      %4401 = vmatpush.msra.mxu0 %v4081
      %4402 = vmatpush.msra.mxu0 %v4079
      %4403 = vmatpush.msra.mxu0 %v4077
      %4404 = vmatpush.msra.mxu0 %v4075
      %4405 = vmatpush.msra.mxu0 %v4073
      %4406 = vmatpush.msra.mxu0 %v4071
      %4407 = vmatpush.msra.mxu0 %v4069
      %4408 = vmatpush.msra.mxu0 %v4067
      %4409 = vmatpush.msra.mxu0 %v4065
      %4410 = vmatpush.msra.mxu0 %v4063
      %4411 = vmatmul.f32.gmra.mxu0 %v3103
      %v4412 = vpop.f32.mrf.mxu0
      %v4413 = vadd.f32 %v4384, %v4412
      %4414 = vmatmul.f32.gmra.mxu0 %v3110
      %v4415 = vpop.f32.mrf.mxu0
      %v4416 = vadd.f32 %v4387, %v4415
      %4417 = vmatmul.f32.gmra.mxu0 %v3117
      %v4418 = vpop.f32.mrf.mxu0
      %v4419 = vadd.f32 %v4390, %v4418
      %4420 = vmatmul.f32.gmra.mxu0 %v3124
      %v4421 = vpop.f32.mrf.mxu0
      %v4422 = vadd.f32 %v4393, %v4421
      %4423 = vdwg.mxu0
      %4424 = vmatpush.msra.mxu0 %v4125
      %4425 = vmatpush.msra.mxu0 %v4123
      %4426 = vmatpush.msra.mxu0 %v4121
      %4427 = vmatpush.msra.mxu0 %v4119
      %4428 = vmatpush.msra.mxu0 %v4117
      %4429 = vmatpush.msra.mxu0 %v4115
      %4430 = vmatpush.msra.mxu0 %v4113
      %4431 = vmatpush.msra.mxu0 %v4111
      %4432 = vmatpush.msra.mxu0 %v4109
      %4433 = vmatpush.msra.mxu0 %v4107
      %4434 = vmatpush.msra.mxu0 %v4105
      %4435 = vmatpush.msra.mxu0 %v4103
      %4436 = vmatpush.msra.mxu0 %v4101
      %4437 = vmatpush.msra.mxu0 %v4099
      %4438 = vmatpush.msra.mxu0 %v4097
      %4439 = vmatpush.msra.mxu0 %v4095
      %4440 = vmatmul.f32.gmra.mxu0 %v3104
      %v4441 = vpop.f32.mrf.mxu0
      %v4442 = vadd.f32 %v4413, %v4441
      %4443 = vmatmul.f32.gmra.mxu0 %v3111
      %v4444 = vpop.f32.mrf.mxu0
      %v4445 = vadd.f32 %v4416, %v4444
      %4446 = vmatmul.f32.gmra.mxu0 %v3118
      %v4447 = vpop.f32.mrf.mxu0
      %v4448 = vadd.f32 %v4419, %v4447
      %4449 = vmatmul.f32.gmra.mxu0 %v3125
      %v4450 = vpop.f32.mrf.mxu0
      %v4451 = vadd.f32 %v4422, %v4450
      %4452 = vdwg.mxu0
      %4453 = vmatpush.msra.mxu0 0.0
      %4454 = vmatpush.msra.mxu0 0.0
      %4455 = vmatpush.msra.mxu0 0.0
      %4456 = vmatpush.msra.mxu0 0.0
      %4457 = vmatpush.msra.mxu0 0.0
      %4458 = vmatpush.msra.mxu0 0.0
      %4459 = vmatpush.msra.mxu0 0.0
      %4460 = vmatpush.msra.mxu0 0.0
      %4461 = vmatpush.msra.mxu0 0.0
      %4462 = vmatpush.msra.mxu0 0.0
      %4463 = vmatpush.msra.mxu0 0.0
      %4464 = vmatpush.msra.mxu0 0.0
      %4465 = vmatpush.msra.mxu0 %v4133
      %4466 = vmatpush.msra.mxu0 %v4131
      %4467 = vmatpush.msra.mxu0 %v4129
      %4468 = vmatpush.msra.mxu0 %v4127
      %4469 = vmatmul.f32.gmra.mxu0 %v4268
      %v4470 = vpop.f32.mrf.mxu0
      %v4471 = vadd.f32 %v4442, %v4470
      %4472 = vmatmul.f32.gmra.mxu0 %v4271
      %v4473 = vpop.f32.mrf.mxu0
      %v4474 = vadd.f32 %v4445, %v4473
      %4475 = vmatmul.f32.gmra.mxu0 %v4274
      %v4476 = vpop.f32.mrf.mxu0
      %v4477 = vadd.f32 %v4448, %v4476
      %4478 = vmatmul.f32.gmra.mxu0 %v4277
      %v4479 = vpop.f32.mrf.mxu0
      %v4480 = vadd.f32 %v4451, %v4479
      %4481 = vdwg.mxu0
      %4482 = vmatpush.msra.mxu0 %v3254
      %4483 = vmatpush.msra.mxu0 %v3252
      %4484 = vmatpush.msra.mxu0 %v3250
      %4485 = vmatpush.msra.mxu0 %v3248
      %4486 = vmatpush.msra.mxu0 %v3210
      %4487 = vmatpush.msra.mxu0 %v3208
      %4488 = vmatpush.msra.mxu0 %v3206
      %4489 = vmatpush.msra.mxu0 %v3204
      %4490 = vmatpush.msra.mxu0 %v3166
      %4491 = vmatpush.msra.mxu0 %v3164
      %4492 = vmatpush.msra.mxu0 %v3162
      %4493 = vmatpush.msra.mxu0 %v3160
      %4494 = vmatpush.msra.mxu0 %v3077
      %4495 = vmatpush.msra.mxu0 %v3075
      %4496 = vmatpush.msra.mxu0 %v3073
      %4497 = vmatpush.msra.mxu0 %v3071
      %4498 = vmatmul.f32.gmra.mxu0 %v3099
      %v4499 = vpop.f32.mrf.mxu0
      %v4500 = vadd.f32 %v4250, %v4499
      %4501 = vmatmul.f32.gmra.mxu0 %v3106
      %v4502 = vpop.f32.mrf.mxu0
      %v4503 = vadd.f32 %v4255, %v4502
      %4504 = vmatmul.f32.gmra.mxu0 %v3113
      %v4505 = vpop.f32.mrf.mxu0
      %v4506 = vadd.f32 %v4260, %v4505
      %4507 = vmatmul.f32.gmra.mxu0 %v3120
      %v4508 = vpop.f32.mrf.mxu0
      %v4509 = vadd.f32 %v4265, %v4508
      %4510 = vdwg.mxu0
      %4511 = vmatpush.msra.mxu0 %v3430
      %4512 = vmatpush.msra.mxu0 %v3428
      %4513 = vmatpush.msra.mxu0 %v3426
      %4514 = vmatpush.msra.mxu0 %v3424
      %4515 = vmatpush.msra.mxu0 %v3386
      %4516 = vmatpush.msra.mxu0 %v3384
      %4517 = vmatpush.msra.mxu0 %v3382
      %4518 = vmatpush.msra.mxu0 %v3380
      %4519 = vmatpush.msra.mxu0 %v3342
      %4520 = vmatpush.msra.mxu0 %v3340
      %4521 = vmatpush.msra.mxu0 %v3338
      %4522 = vmatpush.msra.mxu0 %v3336
      %4523 = vmatpush.msra.mxu0 %v3298
      %4524 = vmatpush.msra.mxu0 %v3296
      %4525 = vmatpush.msra.mxu0 %v3294
      %4526 = vmatpush.msra.mxu0 %v3292
      %4527 = vmatmul.f32.gmra.mxu0 %v3100
      %v4528 = vpop.f32.mrf.mxu0
      %v4529 = vadd.f32 %v4500, %v4528
      %4530 = vmatmul.f32.gmra.mxu0 %v3107
      %v4531 = vpop.f32.mrf.mxu0
      %v4532 = vadd.f32 %v4503, %v4531
      %4533 = vmatmul.f32.gmra.mxu0 %v3114
      %v4534 = vpop.f32.mrf.mxu0
      %v4535 = vadd.f32 %v4506, %v4534
      %4536 = vmatmul.f32.gmra.mxu0 %v3121
      %v4537 = vpop.f32.mrf.mxu0
      %v4538 = vadd.f32 %v4509, %v4537
      %4539 = vdwg.mxu0
      %4540 = vmatpush.msra.mxu0 %v3606
      %4541 = vmatpush.msra.mxu0 %v3604
      %4542 = vmatpush.msra.mxu0 %v3602
      %4543 = vmatpush.msra.mxu0 %v3600
      %4544 = vmatpush.msra.mxu0 %v3562
      %4545 = vmatpush.msra.mxu0 %v3560
      %4546 = vmatpush.msra.mxu0 %v3558
      %4547 = vmatpush.msra.mxu0 %v3556
      %4548 = vmatpush.msra.mxu0 %v3518
      %4549 = vmatpush.msra.mxu0 %v3516
      %4550 = vmatpush.msra.mxu0 %v3514
      %4551 = vmatpush.msra.mxu0 %v3512
      %4552 = vmatpush.msra.mxu0 %v3474
      %4553 = vmatpush.msra.mxu0 %v3472
      %4554 = vmatpush.msra.mxu0 %v3470
      %4555 = vmatpush.msra.mxu0 %v3468
      %4556 = vmatmul.f32.gmra.mxu0 %v3101
      %v4557 = vpop.f32.mrf.mxu0
      %v4558 = vadd.f32 %v4529, %v4557
      %4559 = vmatmul.f32.gmra.mxu0 %v3108
      %v4560 = vpop.f32.mrf.mxu0
      %v4561 = vadd.f32 %v4532, %v4560
      %4562 = vmatmul.f32.gmra.mxu0 %v3115
      %v4563 = vpop.f32.mrf.mxu0
      %v4564 = vadd.f32 %v4535, %v4563
      %4565 = vmatmul.f32.gmra.mxu0 %v3122
      %v4566 = vpop.f32.mrf.mxu0
      %v4567 = vadd.f32 %v4538, %v4566
      %4568 = vdwg.mxu0
      %4569 = vmatpush.msra.mxu0 %v3782
      %4570 = vmatpush.msra.mxu0 %v3780
      %4571 = vmatpush.msra.mxu0 %v3778
      %4572 = vmatpush.msra.mxu0 %v3776
      %4573 = vmatpush.msra.mxu0 %v3738
      %4574 = vmatpush.msra.mxu0 %v3736
      %4575 = vmatpush.msra.mxu0 %v3734
      %4576 = vmatpush.msra.mxu0 %v3732
      %4577 = vmatpush.msra.mxu0 %v3694
      %4578 = vmatpush.msra.mxu0 %v3692
      %4579 = vmatpush.msra.mxu0 %v3690
      %4580 = vmatpush.msra.mxu0 %v3688
      %4581 = vmatpush.msra.mxu0 %v3650
      %4582 = vmatpush.msra.mxu0 %v3648
      %4583 = vmatpush.msra.mxu0 %v3646
      %4584 = vmatpush.msra.mxu0 %v3644
      %4585 = vmatmul.f32.gmra.mxu0 %v3102
      %v4586 = vpop.f32.mrf.mxu0
      %v4587 = vadd.f32 %v4558, %v4586
      %4588 = vmatmul.f32.gmra.mxu0 %v3109
      %v4589 = vpop.f32.mrf.mxu0
      %v4590 = vadd.f32 %v4561, %v4589
      %4591 = vmatmul.f32.gmra.mxu0 %v3116
      %v4592 = vpop.f32.mrf.mxu0
      %v4593 = vadd.f32 %v4564, %v4592
      %4594 = vmatmul.f32.gmra.mxu0 %v3123
      %v4595 = vpop.f32.mrf.mxu0
      %v4596 = vadd.f32 %v4567, %v4595
      %4597 = vdwg.mxu0
      %4598 = vmatpush.msra.mxu0 %v4094
      %4599 = vmatpush.msra.mxu0 %v4092
      %4600 = vmatpush.msra.mxu0 %v4090
      %4601 = vmatpush.msra.mxu0 %v4088
      %4602 = vmatpush.msra.mxu0 %v4086
      %4603 = vmatpush.msra.mxu0 %v4084
      %4604 = vmatpush.msra.mxu0 %v4082
      %4605 = vmatpush.msra.mxu0 %v4080
      %4606 = vmatpush.msra.mxu0 %v4078
      %4607 = vmatpush.msra.mxu0 %v4076
      %4608 = vmatpush.msra.mxu0 %v4074
      %4609 = vmatpush.msra.mxu0 %v4072
      %4610 = vmatpush.msra.mxu0 %v4070
      %4611 = vmatpush.msra.mxu0 %v4068
      %4612 = vmatpush.msra.mxu0 %v4066
      %4613 = vmatpush.msra.mxu0 %v4064
      %4614 = vmatmul.f32.gmra.mxu0 %v3103
      %v4615 = vpop.f32.mrf.mxu0
      %v4616 = vadd.f32 %v4587, %v4615
      %4617 = vmatmul.f32.gmra.mxu0 %v3110
      %v4618 = vpop.f32.mrf.mxu0
      %v4619 = vadd.f32 %v4590, %v4618
      %4620 = vmatmul.f32.gmra.mxu0 %v3117
      %v4621 = vpop.f32.mrf.mxu0
      %v4622 = vadd.f32 %v4593, %v4621
      %4623 = vmatmul.f32.gmra.mxu0 %v3124
      %v4624 = vpop.f32.mrf.mxu0
      %v4625 = vadd.f32 %v4596, %v4624
      %4626 = vdwg.mxu0
      %4627 = vmatpush.msra.mxu0 %v4126
      %4628 = vmatpush.msra.mxu0 %v4124
      %4629 = vmatpush.msra.mxu0 %v4122
      %4630 = vmatpush.msra.mxu0 %v4120
      %4631 = vmatpush.msra.mxu0 %v4118
      %4632 = vmatpush.msra.mxu0 %v4116
      %4633 = vmatpush.msra.mxu0 %v4114
      %4634 = vmatpush.msra.mxu0 %v4112
      %4635 = vmatpush.msra.mxu0 %v4110
      %4636 = vmatpush.msra.mxu0 %v4108
      %4637 = vmatpush.msra.mxu0 %v4106
      %4638 = vmatpush.msra.mxu0 %v4104
      %4639 = vmatpush.msra.mxu0 %v4102
      %4640 = vmatpush.msra.mxu0 %v4100
      %4641 = vmatpush.msra.mxu0 %v4098
      %4642 = vmatpush.msra.mxu0 %v4096
      %4643 = vmatmul.f32.gmra.mxu0 %v3104
      %v4644 = vpop.f32.mrf.mxu0
      %v4645 = vadd.f32 %v4616, %v4644
      %4646 = vmatmul.f32.gmra.mxu0 %v3111
      %v4647 = vpop.f32.mrf.mxu0
      %v4648 = vadd.f32 %v4619, %v4647
      %4649 = vmatmul.f32.gmra.mxu0 %v3118
      %v4650 = vpop.f32.mrf.mxu0
      %v4651 = vadd.f32 %v4622, %v4650
      %4652 = vmatmul.f32.gmra.mxu0 %v3125
      %v4653 = vpop.f32.mrf.mxu0
      %v4654 = vadd.f32 %v4625, %v4653
      %4655 = vdwg.mxu0
      %4656 = vmatpush.msra.mxu0 0.0
      %4657 = vmatpush.msra.mxu0 0.0
      %4658 = vmatpush.msra.mxu0 0.0
      %4659 = vmatpush.msra.mxu0 0.0
      %4660 = vmatpush.msra.mxu0 0.0
      %4661 = vmatpush.msra.mxu0 0.0
      %4662 = vmatpush.msra.mxu0 0.0
      %4663 = vmatpush.msra.mxu0 0.0
      %4664 = vmatpush.msra.mxu0 0.0
      %4665 = vmatpush.msra.mxu0 0.0
      %4666 = vmatpush.msra.mxu0 0.0
      %4667 = vmatpush.msra.mxu0 0.0
      %4668 = vmatpush.msra.mxu0 %v4134
      %4669 = vmatpush.msra.mxu0 %v4132
      %4670 = vmatpush.msra.mxu0 %v4130
      %4671 = vmatpush.msra.mxu0 %v4128
      %4672 = vmatmul.f32.gmra.mxu0 %v4268
      %v4673 = vpop.f32.mrf.mxu0
      %v4674 = vadd.f32 %v4645, %v4673
      %4675 = vmatmul.f32.gmra.mxu0 %v4271
      %v4676 = vpop.f32.mrf.mxu0
      %v4677 = vadd.f32 %v4648, %v4676
      %4678 = vmatmul.f32.gmra.mxu0 %v4274
      %v4679 = vpop.f32.mrf.mxu0
      %v4680 = vadd.f32 %v4651, %v4679
      %4681 = vmatmul.f32.gmra.mxu0 %v4277
      %v4682 = vpop.f32.mrf.mxu0
      %v4683 = vadd.f32 %v4654, %v4682
      %4684 = vdwg.mxu0
      %4685 = vmatpush.msra.mxu0 %v3246
      %4686 = vmatpush.msra.mxu0 %v3240
      %4687 = vmatpush.msra.mxu0 %v3234
      %4688 = vmatpush.msra.mxu0 %v3228
      %4689 = vmatpush.msra.mxu0 %v3202
      %4690 = vmatpush.msra.mxu0 %v3196
      %4691 = vmatpush.msra.mxu0 %v3190
      %4692 = vmatpush.msra.mxu0 %v3184
      %4693 = vmatpush.msra.mxu0 %v3158
      %4694 = vmatpush.msra.mxu0 %v3152
      %4695 = vmatpush.msra.mxu0 %v3146
      %4696 = vmatpush.msra.mxu0 %v3140
      %4697 = vmatpush.msra.mxu0 %v3098
      %4698 = vmatpush.msra.mxu0 %v3097
      %4699 = vmatpush.msra.mxu0 %v3096
      %4700 = vmatpush.msra.mxu0 %v3095
      %4701 = vmatmul.f32.gmra.mxu0 %v3099
      %v4702 = vpop.f32.mrf.mxu0
      %v4703 = vadd.f32 %v4250, %v4702
      %4704 = vmatmul.f32.gmra.mxu0 %v3106
      %v4705 = vpop.f32.mrf.mxu0
      %v4706 = vadd.f32 %v4255, %v4705
      %4707 = vmatmul.f32.gmra.mxu0 %v3113
      %v4708 = vpop.f32.mrf.mxu0
      %v4709 = vadd.f32 %v4260, %v4708
      %4710 = vmatmul.f32.gmra.mxu0 %v3120
      %v4711 = vpop.f32.mrf.mxu0
      %v4712 = vadd.f32 %v4265, %v4711
      %4713 = vdwg.mxu0
      %4714 = vmatpush.msra.mxu0 %v3422
      %4715 = vmatpush.msra.mxu0 %v3416
      %4716 = vmatpush.msra.mxu0 %v3410
      %4717 = vmatpush.msra.mxu0 %v3404
      %4718 = vmatpush.msra.mxu0 %v3378
      %4719 = vmatpush.msra.mxu0 %v3372
      %4720 = vmatpush.msra.mxu0 %v3366
      %4721 = vmatpush.msra.mxu0 %v3360
      %4722 = vmatpush.msra.mxu0 %v3334
      %4723 = vmatpush.msra.mxu0 %v3328
      %4724 = vmatpush.msra.mxu0 %v3322
      %4725 = vmatpush.msra.mxu0 %v3316
      %4726 = vmatpush.msra.mxu0 %v3290
      %4727 = vmatpush.msra.mxu0 %v3284
      %4728 = vmatpush.msra.mxu0 %v3278
      %4729 = vmatpush.msra.mxu0 %v3272
      %4730 = vmatmul.f32.gmra.mxu0 %v3100
      %v4731 = vpop.f32.mrf.mxu0
      %v4732 = vadd.f32 %v4703, %v4731
      %4733 = vmatmul.f32.gmra.mxu0 %v3107
      %v4734 = vpop.f32.mrf.mxu0
      %v4735 = vadd.f32 %v4706, %v4734
      %4736 = vmatmul.f32.gmra.mxu0 %v3114
      %v4737 = vpop.f32.mrf.mxu0
      %v4738 = vadd.f32 %v4709, %v4737
      %4739 = vmatmul.f32.gmra.mxu0 %v3121
      %v4740 = vpop.f32.mrf.mxu0
      %v4741 = vadd.f32 %v4712, %v4740
      %4742 = vdwg.mxu0
      %4743 = vmatpush.msra.mxu0 %v3598
      %4744 = vmatpush.msra.mxu0 %v3592
      %4745 = vmatpush.msra.mxu0 %v3586
      %4746 = vmatpush.msra.mxu0 %v3580
      %4747 = vmatpush.msra.mxu0 %v3554
      %4748 = vmatpush.msra.mxu0 %v3548
      %4749 = vmatpush.msra.mxu0 %v3542
      %4750 = vmatpush.msra.mxu0 %v3536
      %4751 = vmatpush.msra.mxu0 %v3510
      %4752 = vmatpush.msra.mxu0 %v3504
      %4753 = vmatpush.msra.mxu0 %v3498
      %4754 = vmatpush.msra.mxu0 %v3492
      %4755 = vmatpush.msra.mxu0 %v3466
      %4756 = vmatpush.msra.mxu0 %v3460
      %4757 = vmatpush.msra.mxu0 %v3454
      %4758 = vmatpush.msra.mxu0 %v3448
      %4759 = vmatmul.f32.gmra.mxu0 %v3101
      %v4760 = vpop.f32.mrf.mxu0
      %v4761 = vadd.f32 %v4732, %v4760
      %4762 = vmatmul.f32.gmra.mxu0 %v3108
      %v4763 = vpop.f32.mrf.mxu0
      %v4764 = vadd.f32 %v4735, %v4763
      %4765 = vmatmul.f32.gmra.mxu0 %v3115
      %v4766 = vpop.f32.mrf.mxu0
      %v4767 = vadd.f32 %v4738, %v4766
      %4768 = vmatmul.f32.gmra.mxu0 %v3122
      %v4769 = vpop.f32.mrf.mxu0
      %v4770 = vadd.f32 %v4741, %v4769
      %4771 = vdwg.mxu0
      %4772 = vmatpush.msra.mxu0 %v3774
      %4773 = vmatpush.msra.mxu0 %v3768
      %4774 = vmatpush.msra.mxu0 %v3762
      %4775 = vmatpush.msra.mxu0 %v3756
      %4776 = vmatpush.msra.mxu0 %v3730
      %4777 = vmatpush.msra.mxu0 %v3724
      %4778 = vmatpush.msra.mxu0 %v3718
      %4779 = vmatpush.msra.mxu0 %v3712
      %4780 = vmatpush.msra.mxu0 %v3686
      %4781 = vmatpush.msra.mxu0 %v3680
      %4782 = vmatpush.msra.mxu0 %v3674
      %4783 = vmatpush.msra.mxu0 %v3668
      %4784 = vmatpush.msra.mxu0 %v3642
      %4785 = vmatpush.msra.mxu0 %v3636
      %4786 = vmatpush.msra.mxu0 %v3630
      %4787 = vmatpush.msra.mxu0 %v3624
      %4788 = vmatmul.f32.gmra.mxu0 %v3102
      %v4789 = vpop.f32.mrf.mxu0
      %v4790 = vadd.f32 %v4761, %v4789
      %4791 = vmatmul.f32.gmra.mxu0 %v3109
      %v4792 = vpop.f32.mrf.mxu0
      %v4793 = vadd.f32 %v4764, %v4792
      %4794 = vmatmul.f32.gmra.mxu0 %v3116
      %v4795 = vpop.f32.mrf.mxu0
      %v4796 = vadd.f32 %v4767, %v4795
      %4797 = vmatmul.f32.gmra.mxu0 %v3123
      %v4798 = vpop.f32.mrf.mxu0
      %v4799 = vadd.f32 %v4770, %v4798
      %4800 = vdwg.mxu0
      %4801 = vmatpush.msra.mxu0 %v3942
      %4802 = vmatpush.msra.mxu0 %v3936
      %4803 = vmatpush.msra.mxu0 %v3930
      %4804 = vmatpush.msra.mxu0 %v3924
      %4805 = vmatpush.msra.mxu0 %v3918
      %4806 = vmatpush.msra.mxu0 %v3912
      %4807 = vmatpush.msra.mxu0 %v3906
      %4808 = vmatpush.msra.mxu0 %v3900
      %4809 = vmatpush.msra.mxu0 %v3894
      %4810 = vmatpush.msra.mxu0 %v3888
      %4811 = vmatpush.msra.mxu0 %v3882
      %4812 = vmatpush.msra.mxu0 %v3876
      %4813 = vmatpush.msra.mxu0 %v3870
      %4814 = vmatpush.msra.mxu0 %v3864
      %4815 = vmatpush.msra.mxu0 %v3858
      %4816 = vmatpush.msra.mxu0 %v3852
      %4817 = vmatmul.f32.gmra.mxu0 %v3103
      %v4818 = vpop.f32.mrf.mxu0
      %v4819 = vadd.f32 %v4790, %v4818
      %4820 = vmatmul.f32.gmra.mxu0 %v3110
      %v4821 = vpop.f32.mrf.mxu0
      %v4822 = vadd.f32 %v4793, %v4821
      %4823 = vmatmul.f32.gmra.mxu0 %v3117
      %v4824 = vpop.f32.mrf.mxu0
      %v4825 = vadd.f32 %v4796, %v4824
      %4826 = vmatmul.f32.gmra.mxu0 %v3124
      %v4827 = vpop.f32.mrf.mxu0
      %v4828 = vadd.f32 %v4799, %v4827
      %4829 = vdwg.mxu0
      %4830 = vmatpush.msra.mxu0 %v4038
      %4831 = vmatpush.msra.mxu0 %v4032
      %4832 = vmatpush.msra.mxu0 %v4026
      %4833 = vmatpush.msra.mxu0 %v4020
      %4834 = vmatpush.msra.mxu0 %v4014
      %4835 = vmatpush.msra.mxu0 %v4008
      %4836 = vmatpush.msra.mxu0 %v4002
      %4837 = vmatpush.msra.mxu0 %v3996
      %4838 = vmatpush.msra.mxu0 %v3990
      %4839 = vmatpush.msra.mxu0 %v3984
      %4840 = vmatpush.msra.mxu0 %v3978
      %4841 = vmatpush.msra.mxu0 %v3972
      %4842 = vmatpush.msra.mxu0 %v3966
      %4843 = vmatpush.msra.mxu0 %v3960
      %4844 = vmatpush.msra.mxu0 %v3954
      %4845 = vmatpush.msra.mxu0 %v3948
      %4846 = vmatmul.f32.gmra.mxu0 %v3104
      %v4847 = vpop.f32.mrf.mxu0
      %v4848 = vadd.f32 %v4819, %v4847
      %4849 = vmatmul.f32.gmra.mxu0 %v3111
      %v4850 = vpop.f32.mrf.mxu0
      %v4851 = vadd.f32 %v4822, %v4850
      %4852 = vmatmul.f32.gmra.mxu0 %v3118
      %v4853 = vpop.f32.mrf.mxu0
      %v4854 = vadd.f32 %v4825, %v4853
      %4855 = vmatmul.f32.gmra.mxu0 %v3125
      %v4856 = vpop.f32.mrf.mxu0
      %v4857 = vadd.f32 %v4828, %v4856
      %4858 = vdwg.mxu0
      %4859 = vmatpush.msra.mxu0 0.0
      %4860 = vmatpush.msra.mxu0 0.0
      %4861 = vmatpush.msra.mxu0 0.0
      %4862 = vmatpush.msra.mxu0 0.0
      %4863 = vmatpush.msra.mxu0 0.0
      %4864 = vmatpush.msra.mxu0 0.0
      %4865 = vmatpush.msra.mxu0 0.0
      %4866 = vmatpush.msra.mxu0 0.0
      %4867 = vmatpush.msra.mxu0 0.0
      %4868 = vmatpush.msra.mxu0 0.0
      %4869 = vmatpush.msra.mxu0 0.0
      %4870 = vmatpush.msra.mxu0 0.0
      %4871 = vmatpush.msra.mxu0 %v4062
      %4872 = vmatpush.msra.mxu0 %v4056
      %4873 = vmatpush.msra.mxu0 %v4050
      %4874 = vmatpush.msra.mxu0 %v4044
      %4875 = vmatmul.f32.gmra.mxu0 %v4268
      %v4876 = vpop.f32.mrf.mxu0
      %v4877 = vadd.f32 %v4848, %v4876
      %4878 = vmatmul.f32.gmra.mxu0 %v4271
      %v4879 = vpop.f32.mrf.mxu0
      %v4880 = vadd.f32 %v4851, %v4879
      %4881 = vmatmul.f32.gmra.mxu0 %v4274
      %v4882 = vpop.f32.mrf.mxu0
      %v4883 = vadd.f32 %v4854, %v4882
      %4884 = vmatmul.f32.gmra.mxu0 %v4277
      %v4885 = vpop.f32.mrf.mxu0
      %v4886 = vadd.f32 %v4857, %v4885
      %4887 = vdwg.mxu0
      %v4888 = vadd.f32 %v4471, %v3643
      %v4889 = vadd.f32 %v4674, %v3644
      %v4890 = vadd.f32 %v4877, %v3624
      %v4891 = vadd.f32 %v4474, %v3645
      %v4892 = vadd.f32 %v4677, %v3646
      %v4893 = vadd.f32 %v4880, %v3630
      %v4894 = vadd.f32 %v4477, %v3647
      %v4895 = vadd.f32 %v4680, %v3648
      %v4896 = vadd.f32 %v4883, %v3636
      %v4897 = vadd.f32 %v4480, %v3649
      %v4898 = vadd.f32 %v4683, %v3650
      %v4899 = vadd.f32 %v4886, %v3642
      %vm4900 = vcmp.ge.f32.partialorder %v4888, 0.0
      %vm4901 = vcmp.ge.f32.partialorder %v4889, 0.0
      %vm4902 = vcmp.ge.f32.partialorder %v4890, 0.0
      %vm4903 = vcmp.ge.f32.partialorder %v4891, 0.0
      %vm4904 = vcmp.ge.f32.partialorder %v4892, 0.0
      %vm4905 = vcmp.ge.f32.partialorder %v4893, 0.0
      %vm4906 = vcmp.ge.f32.partialorder %v4894, 0.0
      %vm4907 = vcmp.ge.f32.partialorder %v4895, 0.0
      %vm4908 = vcmp.ge.f32.partialorder %v4896, 0.0
      %vm4909 = vcmp.ge.f32.partialorder %v4897, 0.0
      %vm4910 = vcmp.ge.f32.partialorder %v4898, 0.0
      %vm4911 = vcmp.ge.f32.partialorder %v4899, 0.0
      %v4912 = vmul.f32 %v4888, 0.2
      %v4913 = vmul.f32 %v4889, 0.2
      %v4914 = vmul.f32 %v4890, 0.2
      %v4915 = vmul.f32 %v4891, 0.2
      %v4916 = vmul.f32 %v4892, 0.2
      %v4917 = vmul.f32 %v4893, 0.2
      %v4918 = vmul.f32 %v4894, 0.2
      %v4919 = vmul.f32 %v4895, 0.2
      %v4920 = vmul.f32 %v4896, 0.2
      %v4921 = vmul.f32 %v4897, 0.2
      %v4922 = vmul.f32 %v4898, 0.2
      %v4923 = vmul.f32 %v4899, 0.2
      %v4924 = vsel %vm4900, %v4888, %v4912
      %v4925 = vsel %vm4901, %v4889, %v4913
      %v4926 = vsel %vm4902, %v4890, %v4914
      %v4927 = vsel %vm4903, %v4891, %v4915
      %v4928 = vsel %vm4904, %v4892, %v4916
      %v4929 = vsel %vm4905, %v4893, %v4917
      %v4930 = vsel %vm4906, %v4894, %v4918
      %v4931 = vsel %vm4907, %v4895, %v4919
      %v4932 = vsel %vm4908, %v4896, %v4920
      %v4933 = vsel %vm4909, %v4897, %v4921
      %v4934 = vsel %vm4910, %v4898, %v4922
      %v4935 = vsel %vm4911, %v4899, %v4923
      %v4936 = vmul.f32 %v4924, %v1091
      %v4937 = vmul.f32 %v4925, %v1092
      %v4938 = vmul.f32 %v4926, %v1093
      %v4939 = vmul.f32 %v4927, %v1091
      %v4940 = vmul.f32 %v4928, %v1092
      %v4941 = vmul.f32 %v4929, %v1093
      %v4942 = vmul.f32 %v4930, %v1091
      %v4943 = vmul.f32 %v4931, %v1092
      %v4944 = vmul.f32 %v4932, %v1093
      %v4945 = vmul.f32 %v4933, %v1091
      %v4946 = vmul.f32 %v4934, %v1092
      %v4947 = vmul.f32 %v4935, %v1093
      %4960 = vrot.lane.b32.xlu0 %v4936, 42
      %v4961 = vpop.permute.xlu0 %4960
      %4962 = vrot.lane.b32.xlu0 %v4937, 42
      %v4963 = vpop.permute.xlu0 %4962
      %4964 = vrot.lane.b32.xlu0 %v4938, 42
      %v4965 = vpop.permute.xlu0 %4964
      %4966 = vrot.lane.b32.xlu0 %v4939, 42
      %v4967 = vpop.permute.xlu0 %4966
      %4968 = vrot.lane.b32.xlu0 %v4940, 42
      %v4969 = vpop.permute.xlu0 %4968
      %4970 = vrot.lane.b32.xlu0 %v4941, 42
      %v4971 = vpop.permute.xlu0 %4970
      %4972 = vrot.lane.b32.xlu0 %v4942, 42
      %v4973 = vpop.permute.xlu0 %4972
      %4974 = vrot.lane.b32.xlu0 %v4943, 42
      %v4975 = vpop.permute.xlu0 %4974
      %4976 = vrot.lane.b32.xlu0 %v4944, 42
      %v4977 = vpop.permute.xlu0 %4976
      %4978 = vrot.lane.b32.xlu0 %v4945, 42
      %v4979 = vpop.permute.xlu0 %4978
      %4980 = vrot.lane.b32.xlu0 %v4946, 42
      %v4981 = vpop.permute.xlu0 %4980
      %4982 = vrot.lane.b32.xlu0 %v4947, 42
      %v4983 = vpop.permute.xlu0 %4982
      %v4984 = vsel %vm1145, %v4961, %v4963
      %v4985 = vsel %vm1145, %v4963, %v4965
      %v4986 = vsel %vm1145, %v4967, %v4969
      %v4987 = vsel %vm1145, %v4969, %v4971
      %v4988 = vsel %vm1145, %v4973, %v4975
      %v4989 = vsel %vm1145, %v4975, %v4977
      %v4990 = vsel %vm1145, %v4979, %v4981
      %v4991 = vsel %vm1145, %v4981, %v4983
      %v5004 = vsel %vm1145, 0.0, %v4961
      %v5005 = vsel %vm1145, 0.0, %v4967
      %v5006 = vsel %vm1145, 0.0, %v4973
      %v5007 = vsel %vm1145, 0.0, %v4979
      %v5008 = vsel %vm616, %v4985, 0.0
      %v5009 = vsel %vm616, %v4987, 0.0
      %v5010 = vsel %vm616, %v4989, 0.0
      %v5011 = vsel %vm616, %v4991, 0.0
      %v5012 = vld [vmem:[%s8] sm:$0xff]
      %v5013 = vld [vmem:[%s8 + $0x8] sm:$0xff]
      %v5014 = vld [vmem:[%s8 + $0x10] sm:$0xff]
      %v5015 = vld [vmem:[%s8 + $0x18] sm:$0xff]
      %v5016 = vld [vmem:[%s8 + $0x20] sm:$0xff]
      %v5017 = vld [vmem:[%s8 + $0x28] sm:$0xff]
      %v5018 = vld [vmem:[%s8 + $0x30] sm:$0xff]
      %5027 = vrot.lane.b32.xlu0 %v5004, 127
      %v5028 = vpop.permute.xlu0 %5027
      %5029 = vrot.lane.b32.xlu0 %v4984, 127
      %v5030 = vpop.permute.xlu0 %5029
      %5031 = vrot.lane.b32.xlu0 %v5008, 127
      %v5032 = vpop.permute.xlu0 %5031
      %5033 = vrot.lane.b32.xlu0 %v5005, 127
      %v5034 = vpop.permute.xlu0 %5033
      %5035 = vrot.lane.b32.xlu0 %v4986, 127
      %v5036 = vpop.permute.xlu0 %5035
      %5037 = vrot.lane.b32.xlu0 %v5009, 127
      %v5038 = vpop.permute.xlu0 %5037
      %5039 = vrot.lane.b32.xlu0 %v5006, 127
      %v5040 = vpop.permute.xlu0 %5039
      %5041 = vrot.lane.b32.xlu0 %v4988, 127
      %v5042 = vpop.permute.xlu0 %5041
      %5043 = vrot.lane.b32.xlu0 %v5010, 127
      %v5044 = vpop.permute.xlu0 %5043
      %5045 = vrot.lane.b32.xlu0 %v5007, 127
      %v5046 = vpop.permute.xlu0 %5045
      %5047 = vrot.lane.b32.xlu0 %v4990, 127
      %v5048 = vpop.permute.xlu0 %5047
      %5049 = vrot.lane.b32.xlu0 %v5011, 127
      %v5050 = vpop.permute.xlu0 %5049
      %v5051 = vsel %vm544, %v5028, %v5030
      %v5052 = vsel %vm544, %v5030, %v5032
      %v5053 = vsel %vm544, %v5034, %v5036
      %v5054 = vsel %vm544, %v5036, %v5038
      %v5055 = vsel %vm544, %v5040, %v5042
      %v5056 = vsel %vm544, %v5042, %v5044
      %v5057 = vsel %vm544, %v5046, %v5048
      %v5058 = vsel %vm544, %v5048, %v5050
      %5071 = vrot.lane.b32.xlu0 %v5004, 126
      %v5072 = vpop.permute.xlu0 %5071
      %5073 = vrot.lane.b32.xlu0 %v4984, 126
      %v5074 = vpop.permute.xlu0 %5073
      %5075 = vrot.lane.b32.xlu0 %v5008, 126
      %v5076 = vpop.permute.xlu0 %5075
      %5077 = vrot.lane.b32.xlu0 %v5005, 126
      %v5078 = vpop.permute.xlu0 %5077
      %5079 = vrot.lane.b32.xlu0 %v4986, 126
      %v5080 = vpop.permute.xlu0 %5079
      %5081 = vrot.lane.b32.xlu0 %v5009, 126
      %v5082 = vpop.permute.xlu0 %5081
      %5083 = vrot.lane.b32.xlu0 %v5006, 126
      %v5084 = vpop.permute.xlu0 %5083
      %5085 = vrot.lane.b32.xlu0 %v4988, 126
      %v5086 = vpop.permute.xlu0 %5085
      %5087 = vrot.lane.b32.xlu0 %v5010, 126
      %v5088 = vpop.permute.xlu0 %5087
      %5089 = vrot.lane.b32.xlu0 %v5007, 126
      %v5090 = vpop.permute.xlu0 %5089
      %5091 = vrot.lane.b32.xlu0 %v4990, 126
      %v5092 = vpop.permute.xlu0 %5091
      %5093 = vrot.lane.b32.xlu0 %v5011, 126
      %v5094 = vpop.permute.xlu0 %5093
      %v5095 = vsel %vm556, %v5072, %v5074
      %v5096 = vsel %vm556, %v5074, %v5076
      %v5097 = vsel %vm556, %v5078, %v5080
      %v5098 = vsel %vm556, %v5080, %v5082
      %v5099 = vsel %vm556, %v5084, %v5086
      %v5100 = vsel %vm556, %v5086, %v5088
      %v5101 = vsel %vm556, %v5090, %v5092
      %v5102 = vsel %vm556, %v5092, %v5094
      %5115 = vrot.lane.b32.xlu0 %v5004, 125
      %v5116 = vpop.permute.xlu0 %5115
      %5117 = vrot.lane.b32.xlu0 %v4984, 125
      %v5118 = vpop.permute.xlu0 %5117
      %5119 = vrot.lane.b32.xlu0 %v5008, 125
      %v5120 = vpop.permute.xlu0 %5119
      %5121 = vrot.lane.b32.xlu0 %v5005, 125
      %v5122 = vpop.permute.xlu0 %5121
      %5123 = vrot.lane.b32.xlu0 %v4986, 125
      %v5124 = vpop.permute.xlu0 %5123
      %5125 = vrot.lane.b32.xlu0 %v5009, 125
      %v5126 = vpop.permute.xlu0 %5125
      %5127 = vrot.lane.b32.xlu0 %v5006, 125
      %v5128 = vpop.permute.xlu0 %5127
      %5129 = vrot.lane.b32.xlu0 %v4988, 125
      %v5130 = vpop.permute.xlu0 %5129
      %5131 = vrot.lane.b32.xlu0 %v5010, 125
      %v5132 = vpop.permute.xlu0 %5131
      %5133 = vrot.lane.b32.xlu0 %v5007, 125
      %v5134 = vpop.permute.xlu0 %5133
      %5135 = vrot.lane.b32.xlu0 %v4990, 125
      %v5136 = vpop.permute.xlu0 %5135
      %5137 = vrot.lane.b32.xlu0 %v5011, 125
      %v5138 = vpop.permute.xlu0 %5137
      %v5139 = vsel %vm568, %v5116, %v5118
      %v5140 = vsel %vm568, %v5118, %v5120
      %v5141 = vsel %vm568, %v5122, %v5124
      %v5142 = vsel %vm568, %v5124, %v5126
      %v5143 = vsel %vm568, %v5128, %v5130
      %v5144 = vsel %vm568, %v5130, %v5132
      %v5145 = vsel %vm568, %v5134, %v5136
      %v5146 = vsel %vm568, %v5136, %v5138
      %5159 = vrot.lane.b32.xlu0 %v5004, 124
      %v5160 = vpop.permute.xlu0 %5159
      %5161 = vrot.lane.b32.xlu0 %v4984, 124
      %v5162 = vpop.permute.xlu0 %5161
      %5163 = vrot.lane.b32.xlu0 %v5008, 124
      %v5164 = vpop.permute.xlu0 %5163
      %5165 = vrot.lane.b32.xlu0 %v5005, 124
      %v5166 = vpop.permute.xlu0 %5165
      %5167 = vrot.lane.b32.xlu0 %v4986, 124
      %v5168 = vpop.permute.xlu0 %5167
      %5169 = vrot.lane.b32.xlu0 %v5009, 124
      %v5170 = vpop.permute.xlu0 %5169
      %5171 = vrot.lane.b32.xlu0 %v5006, 124
      %v5172 = vpop.permute.xlu0 %5171
      %5173 = vrot.lane.b32.xlu0 %v4988, 124
      %v5174 = vpop.permute.xlu0 %5173
      %5175 = vrot.lane.b32.xlu0 %v5010, 124
      %v5176 = vpop.permute.xlu0 %5175
      %5177 = vrot.lane.b32.xlu0 %v5007, 124
      %v5178 = vpop.permute.xlu0 %5177
      %5179 = vrot.lane.b32.xlu0 %v4990, 124
      %v5180 = vpop.permute.xlu0 %5179
      %5181 = vrot.lane.b32.xlu0 %v5011, 124
      %v5182 = vpop.permute.xlu0 %5181
      %v5183 = vsel %vm580, %v5160, %v5162
      %v5184 = vsel %vm580, %v5162, %v5164
      %v5185 = vsel %vm580, %v5166, %v5168
      %v5186 = vsel %vm580, %v5168, %v5170
      %v5187 = vsel %vm580, %v5172, %v5174
      %v5188 = vsel %vm580, %v5174, %v5176
      %v5189 = vsel %vm580, %v5178, %v5180
      %v5190 = vsel %vm580, %v5180, %v5182
      %5203 = vrot.lane.b32.xlu0 %v5004, 108
      %v5204 = vpop.permute.xlu0 %5203
      %5205 = vrot.lane.b32.xlu0 %v4984, 108
      %v5206 = vpop.permute.xlu0 %5205
      %5207 = vrot.lane.b32.xlu0 %v5008, 108
      %v5208 = vpop.permute.xlu0 %5207
      %5209 = vrot.lane.b32.xlu0 %v5005, 108
      %v5210 = vpop.permute.xlu0 %5209
      %5211 = vrot.lane.b32.xlu0 %v4986, 108
      %v5212 = vpop.permute.xlu0 %5211
      %5213 = vrot.lane.b32.xlu0 %v5009, 108
      %v5214 = vpop.permute.xlu0 %5213
      %5215 = vrot.lane.b32.xlu0 %v5006, 108
      %v5216 = vpop.permute.xlu0 %5215
      %5217 = vrot.lane.b32.xlu0 %v4988, 108
      %v5218 = vpop.permute.xlu0 %5217
      %5219 = vrot.lane.b32.xlu0 %v5010, 108
      %v5220 = vpop.permute.xlu0 %5219
      %5221 = vrot.lane.b32.xlu0 %v5007, 108
      %v5222 = vpop.permute.xlu0 %5221
      %5223 = vrot.lane.b32.xlu0 %v4990, 108
      %v5224 = vpop.permute.xlu0 %5223
      %5225 = vrot.lane.b32.xlu0 %v5011, 108
      %v5226 = vpop.permute.xlu0 %5225
      %v5227 = vsel %vm592, %v5204, %v5206
      %v5228 = vsel %vm592, %v5206, %v5208
      %v5229 = vsel %vm592, %v5210, %v5212
      %v5230 = vsel %vm592, %v5212, %v5214
      %v5231 = vsel %vm592, %v5216, %v5218
      %v5232 = vsel %vm592, %v5218, %v5220
      %v5233 = vsel %vm592, %v5222, %v5224
      %v5234 = vsel %vm592, %v5224, %v5226
      %5247 = vrot.lane.b32.xlu0 %v5004, 107
      %v5248 = vpop.permute.xlu0 %5247
      %5249 = vrot.lane.b32.xlu0 %v4984, 107
      %v5250 = vpop.permute.xlu0 %5249
      %5251 = vrot.lane.b32.xlu0 %v5008, 107
      %v5252 = vpop.permute.xlu0 %5251
      %5253 = vrot.lane.b32.xlu0 %v5005, 107
      %v5254 = vpop.permute.xlu0 %5253
      %5255 = vrot.lane.b32.xlu0 %v4986, 107
      %v5256 = vpop.permute.xlu0 %5255
      %5257 = vrot.lane.b32.xlu0 %v5009, 107
      %v5258 = vpop.permute.xlu0 %5257
      %5259 = vrot.lane.b32.xlu0 %v5006, 107
      %v5260 = vpop.permute.xlu0 %5259
      %5261 = vrot.lane.b32.xlu0 %v4988, 107
      %v5262 = vpop.permute.xlu0 %5261
      %5263 = vrot.lane.b32.xlu0 %v5010, 107
      %v5264 = vpop.permute.xlu0 %5263
      %5265 = vrot.lane.b32.xlu0 %v5007, 107
      %v5266 = vpop.permute.xlu0 %5265
      %5267 = vrot.lane.b32.xlu0 %v4990, 107
      %v5268 = vpop.permute.xlu0 %5267
      %5269 = vrot.lane.b32.xlu0 %v5011, 107
      %v5270 = vpop.permute.xlu0 %5269
      %v5271 = vsel %vm604, %v5248, %v5250
      %v5272 = vsel %vm604, %v5250, %v5252
      %v5273 = vsel %vm604, %v5254, %v5256
      %v5274 = vsel %vm604, %v5256, %v5258
      %v5275 = vsel %vm604, %v5260, %v5262
      %v5276 = vsel %vm604, %v5262, %v5264
      %v5277 = vsel %vm604, %v5266, %v5268
      %v5278 = vsel %vm604, %v5268, %v5270
      %5291 = vrot.lane.b32.xlu0 %v5004, 106
      %v5292 = vpop.permute.xlu0 %5291
      %5293 = vrot.lane.b32.xlu0 %v4984, 106
      %v5294 = vpop.permute.xlu0 %5293
      %5295 = vrot.lane.b32.xlu0 %v5008, 106
      %v5296 = vpop.permute.xlu0 %5295
      %5297 = vrot.lane.b32.xlu0 %v5005, 106
      %v5298 = vpop.permute.xlu0 %5297
      %5299 = vrot.lane.b32.xlu0 %v4986, 106
      %v5300 = vpop.permute.xlu0 %5299
      %5301 = vrot.lane.b32.xlu0 %v5009, 106
      %v5302 = vpop.permute.xlu0 %5301
      %5303 = vrot.lane.b32.xlu0 %v5006, 106
      %v5304 = vpop.permute.xlu0 %5303
      %5305 = vrot.lane.b32.xlu0 %v4988, 106
      %v5306 = vpop.permute.xlu0 %5305
      %5307 = vrot.lane.b32.xlu0 %v5010, 106
      %v5308 = vpop.permute.xlu0 %5307
      %5309 = vrot.lane.b32.xlu0 %v5007, 106
      %v5310 = vpop.permute.xlu0 %5309
      %5311 = vrot.lane.b32.xlu0 %v4990, 106
      %v5312 = vpop.permute.xlu0 %5311
      %5313 = vrot.lane.b32.xlu0 %v5011, 106
      %v5314 = vpop.permute.xlu0 %5313
      %v5315 = vsel %vm616, %v5292, %v5294
      %v5316 = vsel %vm616, %v5294, %v5296
      %v5317 = vsel %vm616, %v5298, %v5300
      %v5318 = vsel %vm616, %v5300, %v5302
      %v5319 = vsel %vm616, %v5304, %v5306
      %v5320 = vsel %vm616, %v5306, %v5308
      %v5321 = vsel %vm616, %v5310, %v5312
      %v5322 = vsel %vm616, %v5312, %v5314
      %5335 = vrot.lane.b32.xlu0 %v5004, 105
      %v5336 = vpop.permute.xlu0 %5335
      %5337 = vrot.lane.b32.xlu0 %v4984, 105
      %v5338 = vpop.permute.xlu0 %5337
      %5339 = vrot.lane.b32.xlu0 %v5008, 105
      %v5340 = vpop.permute.xlu0 %5339
      %5341 = vrot.lane.b32.xlu0 %v5005, 105
      %v5342 = vpop.permute.xlu0 %5341
      %5343 = vrot.lane.b32.xlu0 %v4986, 105
      %v5344 = vpop.permute.xlu0 %5343
      %5345 = vrot.lane.b32.xlu0 %v5009, 105
      %v5346 = vpop.permute.xlu0 %5345
      %5347 = vrot.lane.b32.xlu0 %v5006, 105
      %v5348 = vpop.permute.xlu0 %5347
      %5349 = vrot.lane.b32.xlu0 %v4988, 105
      %v5350 = vpop.permute.xlu0 %5349
      %5351 = vrot.lane.b32.xlu0 %v5010, 105
      %v5352 = vpop.permute.xlu0 %5351
      %5353 = vrot.lane.b32.xlu0 %v5007, 105
      %v5354 = vpop.permute.xlu0 %5353
      %5355 = vrot.lane.b32.xlu0 %v4990, 105
      %v5356 = vpop.permute.xlu0 %5355
      %5357 = vrot.lane.b32.xlu0 %v5011, 105
      %v5358 = vpop.permute.xlu0 %5357
      %v5359 = vsel %vm628, %v5336, %v5338
      %v5360 = vsel %vm628, %v5338, %v5340
      %v5361 = vsel %vm628, %v5342, %v5344
      %v5362 = vsel %vm628, %v5344, %v5346
      %v5363 = vsel %vm628, %v5348, %v5350
      %v5364 = vsel %vm628, %v5350, %v5352
      %v5365 = vsel %vm628, %v5354, %v5356
      %v5366 = vsel %vm628, %v5356, %v5358
      %5379 = vrot.lane.b32.xlu0 %v5004, 104
      %v5380 = vpop.permute.xlu0 %5379
      %5381 = vrot.lane.b32.xlu0 %v4984, 104
      %v5382 = vpop.permute.xlu0 %5381
      %5383 = vrot.lane.b32.xlu0 %v5008, 104
      %v5384 = vpop.permute.xlu0 %5383
      %5385 = vrot.lane.b32.xlu0 %v5005, 104
      %v5386 = vpop.permute.xlu0 %5385
      %5387 = vrot.lane.b32.xlu0 %v4986, 104
      %v5388 = vpop.permute.xlu0 %5387
      %5389 = vrot.lane.b32.xlu0 %v5009, 104
      %v5390 = vpop.permute.xlu0 %5389
      %5391 = vrot.lane.b32.xlu0 %v5006, 104
      %v5392 = vpop.permute.xlu0 %5391
      %5393 = vrot.lane.b32.xlu0 %v4988, 104
      %v5394 = vpop.permute.xlu0 %5393
      %5395 = vrot.lane.b32.xlu0 %v5010, 104
      %v5396 = vpop.permute.xlu0 %5395
      %5397 = vrot.lane.b32.xlu0 %v5007, 104
      %v5398 = vpop.permute.xlu0 %5397
      %5399 = vrot.lane.b32.xlu0 %v4990, 104
      %v5400 = vpop.permute.xlu0 %5399
      %5401 = vrot.lane.b32.xlu0 %v5011, 104
      %v5402 = vpop.permute.xlu0 %5401
      %v5403 = vsel %vm640, %v5380, %v5382
      %v5404 = vsel %vm640, %v5382, %v5384
      %v5405 = vsel %vm640, %v5386, %v5388
      %v5406 = vsel %vm640, %v5388, %v5390
      %v5407 = vsel %vm640, %v5392, %v5394
      %v5408 = vsel %vm640, %v5394, %v5396
      %v5409 = vsel %vm640, %v5398, %v5400
      %v5410 = vsel %vm640, %v5400, %v5402
      %5423 = vrot.lane.b32.xlu0 %v5004, 88
      %v5424 = vpop.permute.xlu0 %5423
      %5425 = vrot.lane.b32.xlu0 %v4984, 88
      %v5426 = vpop.permute.xlu0 %5425
      %5427 = vrot.lane.b32.xlu0 %v5008, 88
      %v5428 = vpop.permute.xlu0 %5427
      %5429 = vrot.lane.b32.xlu0 %v5005, 88
      %v5430 = vpop.permute.xlu0 %5429
      %5431 = vrot.lane.b32.xlu0 %v4986, 88
      %v5432 = vpop.permute.xlu0 %5431
      %5433 = vrot.lane.b32.xlu0 %v5009, 88
      %v5434 = vpop.permute.xlu0 %5433
      %5435 = vrot.lane.b32.xlu0 %v5006, 88
      %v5436 = vpop.permute.xlu0 %5435
      %5437 = vrot.lane.b32.xlu0 %v4988, 88
      %v5438 = vpop.permute.xlu0 %5437
      %5439 = vrot.lane.b32.xlu0 %v5010, 88
      %v5440 = vpop.permute.xlu0 %5439
      %5441 = vrot.lane.b32.xlu0 %v5007, 88
      %v5442 = vpop.permute.xlu0 %5441
      %5443 = vrot.lane.b32.xlu0 %v4990, 88
      %v5444 = vpop.permute.xlu0 %5443
      %5445 = vrot.lane.b32.xlu0 %v5011, 88
      %v5446 = vpop.permute.xlu0 %5445
      %v5447 = vsel %vm652, %v5424, %v5426
      %v5448 = vsel %vm652, %v5426, %v5428
      %v5449 = vsel %vm652, %v5430, %v5432
      %v5450 = vsel %vm652, %v5432, %v5434
      %v5451 = vsel %vm652, %v5436, %v5438
      %v5452 = vsel %vm652, %v5438, %v5440
      %v5453 = vsel %vm652, %v5442, %v5444
      %v5454 = vsel %vm652, %v5444, %v5446
      %5467 = vrot.lane.b32.xlu0 %v5004, 87
      %v5468 = vpop.permute.xlu0 %5467
      %5469 = vrot.lane.b32.xlu0 %v4984, 87
      %v5470 = vpop.permute.xlu0 %5469
      %5471 = vrot.lane.b32.xlu0 %v5008, 87
      %v5472 = vpop.permute.xlu0 %5471
      %5473 = vrot.lane.b32.xlu0 %v5005, 87
      %v5474 = vpop.permute.xlu0 %5473
      %5475 = vrot.lane.b32.xlu0 %v4986, 87
      %v5476 = vpop.permute.xlu0 %5475
      %5477 = vrot.lane.b32.xlu0 %v5009, 87
      %v5478 = vpop.permute.xlu0 %5477
      %5479 = vrot.lane.b32.xlu0 %v5006, 87
      %v5480 = vpop.permute.xlu0 %5479
      %5481 = vrot.lane.b32.xlu0 %v4988, 87
      %v5482 = vpop.permute.xlu0 %5481
      %5483 = vrot.lane.b32.xlu0 %v5010, 87
      %v5484 = vpop.permute.xlu0 %5483
      %5485 = vrot.lane.b32.xlu0 %v5007, 87
      %v5486 = vpop.permute.xlu0 %5485
      %5487 = vrot.lane.b32.xlu0 %v4990, 87
      %v5488 = vpop.permute.xlu0 %5487
      %5489 = vrot.lane.b32.xlu0 %v5011, 87
      %v5490 = vpop.permute.xlu0 %5489
      %v5491 = vsel %vm664, %v5468, %v5470
      %v5492 = vsel %vm664, %v5470, %v5472
      %v5493 = vsel %vm664, %v5474, %v5476
      %v5494 = vsel %vm664, %v5476, %v5478
      %v5495 = vsel %vm664, %v5480, %v5482
      %v5496 = vsel %vm664, %v5482, %v5484
      %v5497 = vsel %vm664, %v5486, %v5488
      %v5498 = vsel %vm664, %v5488, %v5490
      %5511 = vrot.lane.b32.xlu0 %v5004, 86
      %v5512 = vpop.permute.xlu0 %5511
      %5513 = vrot.lane.b32.xlu0 %v4984, 86
      %v5514 = vpop.permute.xlu0 %5513
      %5515 = vrot.lane.b32.xlu0 %v5008, 86
      %v5516 = vpop.permute.xlu0 %5515
      %5517 = vrot.lane.b32.xlu0 %v5005, 86
      %v5518 = vpop.permute.xlu0 %5517
      %5519 = vrot.lane.b32.xlu0 %v4986, 86
      %v5520 = vpop.permute.xlu0 %5519
      %5521 = vrot.lane.b32.xlu0 %v5009, 86
      %v5522 = vpop.permute.xlu0 %5521
      %5523 = vrot.lane.b32.xlu0 %v5006, 86
      %v5524 = vpop.permute.xlu0 %5523
      %5525 = vrot.lane.b32.xlu0 %v4988, 86
      %v5526 = vpop.permute.xlu0 %5525
      %5527 = vrot.lane.b32.xlu0 %v5010, 86
      %v5528 = vpop.permute.xlu0 %5527
      %5529 = vrot.lane.b32.xlu0 %v5007, 86
      %v5530 = vpop.permute.xlu0 %5529
      %5531 = vrot.lane.b32.xlu0 %v4990, 86
      %v5532 = vpop.permute.xlu0 %5531
      %5533 = vrot.lane.b32.xlu0 %v5011, 86
      %v5534 = vpop.permute.xlu0 %5533
      %v5535 = vsel %vm676, %v5512, %v5514
      %v5536 = vsel %vm676, %v5514, %v5516
      %v5537 = vsel %vm676, %v5518, %v5520
      %v5538 = vsel %vm676, %v5520, %v5522
      %v5539 = vsel %vm676, %v5524, %v5526
      %v5540 = vsel %vm676, %v5526, %v5528
      %v5541 = vsel %vm676, %v5530, %v5532
      %v5542 = vsel %vm676, %v5532, %v5534
      %5555 = vrot.lane.b32.xlu0 %v5004, 85
      %v5556 = vpop.permute.xlu0 %5555
      %5557 = vrot.lane.b32.xlu0 %v4984, 85
      %v5558 = vpop.permute.xlu0 %5557
      %5559 = vrot.lane.b32.xlu0 %v5008, 85
      %v5560 = vpop.permute.xlu0 %5559
      %5561 = vrot.lane.b32.xlu0 %v5005, 85
      %v5562 = vpop.permute.xlu0 %5561
      %5563 = vrot.lane.b32.xlu0 %v4986, 85
      %v5564 = vpop.permute.xlu0 %5563
      %5565 = vrot.lane.b32.xlu0 %v5009, 85
      %v5566 = vpop.permute.xlu0 %5565
      %5567 = vrot.lane.b32.xlu0 %v5006, 85
      %v5568 = vpop.permute.xlu0 %5567
      %5569 = vrot.lane.b32.xlu0 %v4988, 85
      %v5570 = vpop.permute.xlu0 %5569
      %5571 = vrot.lane.b32.xlu0 %v5010, 85
      %v5572 = vpop.permute.xlu0 %5571
      %5573 = vrot.lane.b32.xlu0 %v5007, 85
      %v5574 = vpop.permute.xlu0 %5573
      %5575 = vrot.lane.b32.xlu0 %v4990, 85
      %v5576 = vpop.permute.xlu0 %5575
      %5577 = vrot.lane.b32.xlu0 %v5011, 85
      %v5578 = vpop.permute.xlu0 %5577
      %v5579 = vsel %vm688, %v5556, %v5558
      %v5580 = vsel %vm688, %v5558, %v5560
      %v5581 = vsel %vm688, %v5562, %v5564
      %v5582 = vsel %vm688, %v5564, %v5566
      %v5583 = vsel %vm688, %v5568, %v5570
      %v5584 = vsel %vm688, %v5570, %v5572
      %v5585 = vsel %vm688, %v5574, %v5576
      %v5586 = vsel %vm688, %v5576, %v5578
      %5599 = vrot.lane.b32.xlu0 %v5004, 84
      %v5600 = vpop.permute.xlu0 %5599
      %5601 = vrot.lane.b32.xlu0 %v4984, 84
      %v5602 = vpop.permute.xlu0 %5601
      %5603 = vrot.lane.b32.xlu0 %v5008, 84
      %v5604 = vpop.permute.xlu0 %5603
      %5605 = vrot.lane.b32.xlu0 %v5005, 84
      %v5606 = vpop.permute.xlu0 %5605
      %5607 = vrot.lane.b32.xlu0 %v4986, 84
      %v5608 = vpop.permute.xlu0 %5607
      %5609 = vrot.lane.b32.xlu0 %v5009, 84
      %v5610 = vpop.permute.xlu0 %5609
      %5611 = vrot.lane.b32.xlu0 %v5006, 84
      %v5612 = vpop.permute.xlu0 %5611
      %5613 = vrot.lane.b32.xlu0 %v4988, 84
      %v5614 = vpop.permute.xlu0 %5613
      %5615 = vrot.lane.b32.xlu0 %v5010, 84
      %v5616 = vpop.permute.xlu0 %5615
      %5617 = vrot.lane.b32.xlu0 %v5007, 84
      %v5618 = vpop.permute.xlu0 %5617
      %5619 = vrot.lane.b32.xlu0 %v4990, 84
      %v5620 = vpop.permute.xlu0 %5619
      %5621 = vrot.lane.b32.xlu0 %v5011, 84
      %v5622 = vpop.permute.xlu0 %5621
      %v5623 = vsel %vm700, %v5600, %v5602
      %v5624 = vsel %vm700, %v5602, %v5604
      %v5625 = vsel %vm700, %v5606, %v5608
      %v5626 = vsel %vm700, %v5608, %v5610
      %v5627 = vsel %vm700, %v5612, %v5614
      %v5628 = vsel %vm700, %v5614, %v5616
      %v5629 = vsel %vm700, %v5618, %v5620
      %v5630 = vsel %vm700, %v5620, %v5622
      %5643 = vrot.lane.b32.xlu0 %v5004, 68
      %v5644 = vpop.permute.xlu0 %5643
      %5645 = vrot.lane.b32.xlu0 %v4984, 68
      %v5646 = vpop.permute.xlu0 %5645
      %5647 = vrot.lane.b32.xlu0 %v5008, 68
      %v5648 = vpop.permute.xlu0 %5647
      %5649 = vrot.lane.b32.xlu0 %v5005, 68
      %v5650 = vpop.permute.xlu0 %5649
      %5651 = vrot.lane.b32.xlu0 %v4986, 68
      %v5652 = vpop.permute.xlu0 %5651
      %5653 = vrot.lane.b32.xlu0 %v5009, 68
      %v5654 = vpop.permute.xlu0 %5653
      %5655 = vrot.lane.b32.xlu0 %v5006, 68
      %v5656 = vpop.permute.xlu0 %5655
      %5657 = vrot.lane.b32.xlu0 %v4988, 68
      %v5658 = vpop.permute.xlu0 %5657
      %5659 = vrot.lane.b32.xlu0 %v5010, 68
      %v5660 = vpop.permute.xlu0 %5659
      %5661 = vrot.lane.b32.xlu0 %v5007, 68
      %v5662 = vpop.permute.xlu0 %5661
      %5663 = vrot.lane.b32.xlu0 %v4990, 68
      %v5664 = vpop.permute.xlu0 %5663
      %5665 = vrot.lane.b32.xlu0 %v5011, 68
      %v5666 = vpop.permute.xlu0 %5665
      %v5667 = vsel %vm712, %v5644, %v5646
      %v5668 = vsel %vm712, %v5646, %v5648
      %v5669 = vsel %vm712, %v5650, %v5652
      %v5670 = vsel %vm712, %v5652, %v5654
      %v5671 = vsel %vm712, %v5656, %v5658
      %v5672 = vsel %vm712, %v5658, %v5660
      %v5673 = vsel %vm712, %v5662, %v5664
      %v5674 = vsel %vm712, %v5664, %v5666
      %5687 = vrot.lane.b32.xlu0 %v5004, 109
      %v5688 = vpop.permute.xlu0 %5687
      %5689 = vrot.lane.b32.xlu0 %v4984, 109
      %v5690 = vpop.permute.xlu0 %5689
      %5691 = vrot.lane.b32.xlu0 %v5008, 109
      %v5692 = vpop.permute.xlu0 %5691
      %5693 = vrot.lane.b32.xlu0 %v5005, 109
      %v5694 = vpop.permute.xlu0 %5693
      %5695 = vrot.lane.b32.xlu0 %v4986, 109
      %v5696 = vpop.permute.xlu0 %5695
      %5697 = vrot.lane.b32.xlu0 %v5009, 109
      %v5698 = vpop.permute.xlu0 %5697
      %5699 = vrot.lane.b32.xlu0 %v5006, 109
      %v5700 = vpop.permute.xlu0 %5699
      %5701 = vrot.lane.b32.xlu0 %v4988, 109
      %v5702 = vpop.permute.xlu0 %5701
      %5703 = vrot.lane.b32.xlu0 %v5010, 109
      %v5704 = vpop.permute.xlu0 %5703
      %5705 = vrot.lane.b32.xlu0 %v5007, 109
      %v5706 = vpop.permute.xlu0 %5705
      %5707 = vrot.lane.b32.xlu0 %v4990, 109
      %v5708 = vpop.permute.xlu0 %5707
      %5709 = vrot.lane.b32.xlu0 %v5011, 109
      %v5710 = vpop.permute.xlu0 %5709
      %v5711 = vsel %vm727, %v5688, %v5690
      %v5712 = vsel %vm727, %v5690, %v5692
      %v5713 = vsel %vm727, %v5692, %v1878
      %v5714 = vsel %vm727, %v5694, %v5696
      %v5715 = vsel %vm727, %v5696, %v5698
      %v5716 = vsel %vm727, %v5698, %v1878
      %v5717 = vsel %vm727, %v5700, %v5702
      %v5718 = vsel %vm727, %v5702, %v5704
      %v5719 = vsel %vm727, %v5704, %v1878
      %v5720 = vsel %vm727, %v5706, %v5708
      %v5721 = vsel %vm727, %v5708, %v5710
      %v5722 = vsel %vm727, %v5710, %v1878
      %v5723 = vsel %vm592, %v5208, %v1910
      %v5724 = vsel %vm592, %v5214, %v1910
      %v5725 = vsel %vm592, %v5220, %v1910
      %v5726 = vsel %vm592, %v5226, %v1910
      %v5727 = vsel %vm604, %v5252, %v1916
      %v5728 = vsel %vm604, %v5258, %v1916
      %v5729 = vsel %vm604, %v5264, %v1916
      %v5730 = vsel %vm604, %v5270, %v1916
      %v5731 = vsel %vm616, %v5296, %v1922
      %v5732 = vsel %vm616, %v5302, %v1922
      %v5733 = vsel %vm616, %v5308, %v1922
      %v5734 = vsel %vm616, %v5314, %v1922
      %v5735 = vsel %vm628, %v5340, %v1928
      %v5736 = vsel %vm628, %v5346, %v1928
      %v5737 = vsel %vm628, %v5352, %v1928
      %v5738 = vsel %vm628, %v5358, %v1928
      %5739 = vrot.lane.b32.xlu0 %v5004, 67
      %v5740 = vpop.permute.xlu0 %5739
      %5741 = vrot.lane.b32.xlu0 %v4984, 67
      %v5742 = vpop.permute.xlu0 %5741
      %5743 = vrot.lane.b32.xlu0 %v5008, 67
      %v5744 = vpop.permute.xlu0 %5743
      %5745 = vrot.lane.b32.xlu0 %v5005, 67
      %v5746 = vpop.permute.xlu0 %5745
      %5747 = vrot.lane.b32.xlu0 %v4986, 67
      %v5748 = vpop.permute.xlu0 %5747
      %5749 = vrot.lane.b32.xlu0 %v5009, 67
      %v5750 = vpop.permute.xlu0 %5749
      %5751 = vrot.lane.b32.xlu0 %v5006, 67
      %v5752 = vpop.permute.xlu0 %5751
      %5753 = vrot.lane.b32.xlu0 %v4988, 67
      %v5754 = vpop.permute.xlu0 %5753
      %5755 = vrot.lane.b32.xlu0 %v5010, 67
      %v5756 = vpop.permute.xlu0 %5755
      %5757 = vrot.lane.b32.xlu0 %v5007, 67
      %v5758 = vpop.permute.xlu0 %5757
      %5759 = vrot.lane.b32.xlu0 %v4990, 67
      %v5760 = vpop.permute.xlu0 %5759
      %5761 = vrot.lane.b32.xlu0 %v5011, 67
      %v5762 = vpop.permute.xlu0 %5761
      %5763 = vrot.lane.b32.xlu0 %v5051, 67
      %v5764 = vpop.permute.xlu0 %5763
      %5765 = vrot.lane.b32.xlu0 %v5052, 67
      %v5766 = vpop.permute.xlu0 %5765
      %5767 = vrot.lane.b32.xlu0 %v5032, 67
      %v5768 = vpop.permute.xlu0 %5767
      %5769 = vrot.lane.b32.xlu0 %v5053, 67
      %v5770 = vpop.permute.xlu0 %5769
      %5771 = vrot.lane.b32.xlu0 %v5054, 67
      %v5772 = vpop.permute.xlu0 %5771
      %5773 = vrot.lane.b32.xlu0 %v5038, 67
      %v5774 = vpop.permute.xlu0 %5773
      %5775 = vrot.lane.b32.xlu0 %v5055, 67
      %v5776 = vpop.permute.xlu0 %5775
      %5777 = vrot.lane.b32.xlu0 %v5056, 67
      %v5778 = vpop.permute.xlu0 %5777
      %5779 = vrot.lane.b32.xlu0 %v5044, 67
      %v5780 = vpop.permute.xlu0 %5779
      %5781 = vrot.lane.b32.xlu0 %v5057, 67
      %v5782 = vpop.permute.xlu0 %5781
      %5783 = vrot.lane.b32.xlu0 %v5058, 67
      %v5784 = vpop.permute.xlu0 %5783
      %5785 = vrot.lane.b32.xlu0 %v5050, 67
      %v5786 = vpop.permute.xlu0 %5785
      %5787 = vrot.lane.b32.xlu0 %v5095, 67
      %v5788 = vpop.permute.xlu0 %5787
      %5789 = vrot.lane.b32.xlu0 %v5096, 67
      %v5790 = vpop.permute.xlu0 %5789
      %5791 = vrot.lane.b32.xlu0 %v5076, 67
      %v5792 = vpop.permute.xlu0 %5791
      %5793 = vrot.lane.b32.xlu0 %v5097, 67
      %v5794 = vpop.permute.xlu0 %5793
      %5795 = vrot.lane.b32.xlu0 %v5098, 67
      %v5796 = vpop.permute.xlu0 %5795
      %5797 = vrot.lane.b32.xlu0 %v5082, 67
      %v5798 = vpop.permute.xlu0 %5797
      %5799 = vrot.lane.b32.xlu0 %v5099, 67
      %v5800 = vpop.permute.xlu0 %5799
      %5801 = vrot.lane.b32.xlu0 %v5100, 67
      %v5802 = vpop.permute.xlu0 %5801
      %5803 = vrot.lane.b32.xlu0 %v5088, 67
      %v5804 = vpop.permute.xlu0 %5803
      %5805 = vrot.lane.b32.xlu0 %v5101, 67
      %v5806 = vpop.permute.xlu0 %5805
      %5807 = vrot.lane.b32.xlu0 %v5102, 67
      %v5808 = vpop.permute.xlu0 %5807
      %5809 = vrot.lane.b32.xlu0 %v5094, 67
      %v5810 = vpop.permute.xlu0 %5809
      %5811 = vrot.lane.b32.xlu0 %v5139, 67
      %v5812 = vpop.permute.xlu0 %5811
      %5813 = vrot.lane.b32.xlu0 %v5140, 67
      %v5814 = vpop.permute.xlu0 %5813
      %5815 = vrot.lane.b32.xlu0 %v5120, 67
      %v5816 = vpop.permute.xlu0 %5815
      %5817 = vrot.lane.b32.xlu0 %v5141, 67
      %v5818 = vpop.permute.xlu0 %5817
      %5819 = vrot.lane.b32.xlu0 %v5142, 67
      %v5820 = vpop.permute.xlu0 %5819
      %5821 = vrot.lane.b32.xlu0 %v5126, 67
      %v5822 = vpop.permute.xlu0 %5821
      %5823 = vrot.lane.b32.xlu0 %v5143, 67
      %v5824 = vpop.permute.xlu0 %5823
      %5825 = vrot.lane.b32.xlu0 %v5144, 67
      %v5826 = vpop.permute.xlu0 %5825
      %5827 = vrot.lane.b32.xlu0 %v5132, 67
      %v5828 = vpop.permute.xlu0 %5827
      %5829 = vrot.lane.b32.xlu0 %v5145, 67
      %v5830 = vpop.permute.xlu0 %5829
      %5831 = vrot.lane.b32.xlu0 %v5146, 67
      %v5832 = vpop.permute.xlu0 %5831
      %5833 = vrot.lane.b32.xlu0 %v5138, 67
      %v5834 = vpop.permute.xlu0 %5833
      %5835 = vrot.lane.b32.xlu0 %v5711, 67
      %v5836 = vpop.permute.xlu0 %5835
      %5837 = vrot.lane.b32.xlu0 %v5712, 67
      %v5838 = vpop.permute.xlu0 %5837
      %5839 = vrot.lane.b32.xlu0 %v5713, 67
      %v5840 = vpop.permute.xlu0 %5839
      %5841 = vrot.lane.b32.xlu0 %v5714, 67
      %v5842 = vpop.permute.xlu0 %5841
      %5843 = vrot.lane.b32.xlu0 %v5715, 67
      %v5844 = vpop.permute.xlu0 %5843
      %5845 = vrot.lane.b32.xlu0 %v5716, 67
      %v5846 = vpop.permute.xlu0 %5845
      %5847 = vrot.lane.b32.xlu0 %v5717, 67
      %v5848 = vpop.permute.xlu0 %5847
      %5849 = vrot.lane.b32.xlu0 %v5718, 67
      %v5850 = vpop.permute.xlu0 %5849
      %5851 = vrot.lane.b32.xlu0 %v5719, 67
      %v5852 = vpop.permute.xlu0 %5851
      %5853 = vrot.lane.b32.xlu0 %v5720, 67
      %v5854 = vpop.permute.xlu0 %5853
      %5855 = vrot.lane.b32.xlu0 %v5721, 67
      %v5856 = vpop.permute.xlu0 %5855
      %5857 = vrot.lane.b32.xlu0 %v5722, 67
      %v5858 = vpop.permute.xlu0 %5857
      %5859 = vrot.lane.b32.xlu0 %v5227, 67
      %v5860 = vpop.permute.xlu0 %5859
      %5861 = vrot.lane.b32.xlu0 %v5228, 67
      %v5862 = vpop.permute.xlu0 %5861
      %5863 = vrot.lane.b32.xlu0 %v5723, 67
      %v5864 = vpop.permute.xlu0 %5863
      %5865 = vrot.lane.b32.xlu0 %v5229, 67
      %v5866 = vpop.permute.xlu0 %5865
      %5867 = vrot.lane.b32.xlu0 %v5230, 67
      %v5868 = vpop.permute.xlu0 %5867
      %5869 = vrot.lane.b32.xlu0 %v5724, 67
      %v5870 = vpop.permute.xlu0 %5869
      %5871 = vrot.lane.b32.xlu0 %v5231, 67
      %v5872 = vpop.permute.xlu0 %5871
      %5873 = vrot.lane.b32.xlu0 %v5232, 67
      %v5874 = vpop.permute.xlu0 %5873
      %5875 = vrot.lane.b32.xlu0 %v5725, 67
      %v5876 = vpop.permute.xlu0 %5875
      %5877 = vrot.lane.b32.xlu0 %v5233, 67
      %v5878 = vpop.permute.xlu0 %5877
      %5879 = vrot.lane.b32.xlu0 %v5234, 67
      %v5880 = vpop.permute.xlu0 %5879
      %5881 = vrot.lane.b32.xlu0 %v5726, 67
      %v5882 = vpop.permute.xlu0 %5881
      %5883 = vrot.lane.b32.xlu0 %v5271, 67
      %v5884 = vpop.permute.xlu0 %5883
      %5885 = vrot.lane.b32.xlu0 %v5272, 67
      %v5886 = vpop.permute.xlu0 %5885
      %5887 = vrot.lane.b32.xlu0 %v5727, 67
      %v5888 = vpop.permute.xlu0 %5887
      %5889 = vrot.lane.b32.xlu0 %v5273, 67
      %v5890 = vpop.permute.xlu0 %5889
      %5891 = vrot.lane.b32.xlu0 %v5274, 67
      %v5892 = vpop.permute.xlu0 %5891
      %5893 = vrot.lane.b32.xlu0 %v5728, 67
      %v5894 = vpop.permute.xlu0 %5893
      %5895 = vrot.lane.b32.xlu0 %v5275, 67
      %v5896 = vpop.permute.xlu0 %5895
      %5897 = vrot.lane.b32.xlu0 %v5276, 67
      %v5898 = vpop.permute.xlu0 %5897
      %5899 = vrot.lane.b32.xlu0 %v5729, 67
      %v5900 = vpop.permute.xlu0 %5899
      %5901 = vrot.lane.b32.xlu0 %v5277, 67
      %v5902 = vpop.permute.xlu0 %5901
      %5903 = vrot.lane.b32.xlu0 %v5278, 67
      %v5904 = vpop.permute.xlu0 %5903
      %5905 = vrot.lane.b32.xlu0 %v5730, 67
      %v5906 = vpop.permute.xlu0 %5905
      %5907 = vrot.lane.b32.xlu0 %v5315, 67
      %v5908 = vpop.permute.xlu0 %5907
      %5909 = vrot.lane.b32.xlu0 %v5316, 67
      %v5910 = vpop.permute.xlu0 %5909
      %5911 = vrot.lane.b32.xlu0 %v5731, 67
      %v5912 = vpop.permute.xlu0 %5911
      %5913 = vrot.lane.b32.xlu0 %v5317, 67
      %v5914 = vpop.permute.xlu0 %5913
      %5915 = vrot.lane.b32.xlu0 %v5318, 67
      %v5916 = vpop.permute.xlu0 %5915
      %5917 = vrot.lane.b32.xlu0 %v5732, 67
      %v5918 = vpop.permute.xlu0 %5917
      %5919 = vrot.lane.b32.xlu0 %v5319, 67
      %v5920 = vpop.permute.xlu0 %5919
      %5921 = vrot.lane.b32.xlu0 %v5320, 67
      %v5922 = vpop.permute.xlu0 %5921
      %5923 = vrot.lane.b32.xlu0 %v5733, 67
      %v5924 = vpop.permute.xlu0 %5923
      %5925 = vrot.lane.b32.xlu0 %v5321, 67
      %v5926 = vpop.permute.xlu0 %5925
      %5927 = vrot.lane.b32.xlu0 %v5322, 67
      %v5928 = vpop.permute.xlu0 %5927
      %5929 = vrot.lane.b32.xlu0 %v5734, 67
      %v5930 = vpop.permute.xlu0 %5929
      %5931 = vrot.lane.b32.xlu0 %v5359, 67
      %v5932 = vpop.permute.xlu0 %5931
      %5933 = vrot.lane.b32.xlu0 %v5360, 67
      %v5934 = vpop.permute.xlu0 %5933
      %5935 = vrot.lane.b32.xlu0 %v5735, 67
      %v5936 = vpop.permute.xlu0 %5935
      %5937 = vrot.lane.b32.xlu0 %v5361, 67
      %v5938 = vpop.permute.xlu0 %5937
      %5939 = vrot.lane.b32.xlu0 %v5362, 67
      %v5940 = vpop.permute.xlu0 %5939
      %5941 = vrot.lane.b32.xlu0 %v5736, 67
      %v5942 = vpop.permute.xlu0 %5941
      %5943 = vrot.lane.b32.xlu0 %v5363, 67
      %v5944 = vpop.permute.xlu0 %5943
      %5945 = vrot.lane.b32.xlu0 %v5364, 67
      %v5946 = vpop.permute.xlu0 %5945
      %5947 = vrot.lane.b32.xlu0 %v5737, 67
      %v5948 = vpop.permute.xlu0 %5947
      %5949 = vrot.lane.b32.xlu0 %v5365, 67
      %v5950 = vpop.permute.xlu0 %5949
      %5951 = vrot.lane.b32.xlu0 %v5366, 67
      %v5952 = vpop.permute.xlu0 %5951
      %5953 = vrot.lane.b32.xlu0 %v5738, 67
      %v5954 = vpop.permute.xlu0 %5953
      %v5955 = vsel %vm797, %v5740, %v5742
      %v5956 = vsel %vm797, %v5742, %v5744
      %v5957 = vsel %vm797, %v5746, %v5748
      %v5958 = vsel %vm797, %v5748, %v5750
      %v5959 = vsel %vm797, %v5752, %v5754
      %v5960 = vsel %vm797, %v5754, %v5756
      %v5961 = vsel %vm797, %v5758, %v5760
      %v5962 = vsel %vm797, %v5760, %v5762
      %v5963 = vsel %vm797, %v5764, %v5766
      %v5964 = vsel %vm797, %v5766, %v5768
      %v5965 = vsel %vm797, %v5770, %v5772
      %v5966 = vsel %vm797, %v5772, %v5774
      %v5967 = vsel %vm797, %v5776, %v5778
      %v5968 = vsel %vm797, %v5778, %v5780
      %v5969 = vsel %vm797, %v5782, %v5784
      %v5970 = vsel %vm797, %v5784, %v5786
      %v5971 = vsel %vm797, %v5788, %v5790
      %v5972 = vsel %vm797, %v5790, %v5792
      %v5973 = vsel %vm797, %v5794, %v5796
      %v5974 = vsel %vm797, %v5796, %v5798
      %v5975 = vsel %vm797, %v5800, %v5802
      %v5976 = vsel %vm797, %v5802, %v5804
      %v5977 = vsel %vm797, %v5806, %v5808
      %v5978 = vsel %vm797, %v5808, %v5810
      %v5979 = vsel %vm797, %v5812, %v5814
      %v5980 = vsel %vm797, %v5814, %v5816
      %v5981 = vsel %vm797, %v5818, %v5820
      %v5982 = vsel %vm797, %v5820, %v5822
      %v5983 = vsel %vm797, %v5824, %v5826
      %v5984 = vsel %vm797, %v5826, %v5828
      %v5985 = vsel %vm797, %v5830, %v5832
      %v5986 = vsel %vm797, %v5832, %v5834
      %v5987 = vsel %vm797, %v5836, %v5838
      %v5988 = vsel %vm797, %v5838, %v5840
      %v5989 = vsel %vm797, %v5842, %v5844
      %v5990 = vsel %vm797, %v5844, %v5846
      %v5991 = vsel %vm797, %v5848, %v5850
      %v5992 = vsel %vm797, %v5850, %v5852
      %v5993 = vsel %vm797, %v5854, %v5856
      %v5994 = vsel %vm797, %v5856, %v5858
      %v5995 = vsel %vm797, %v5860, %v5862
      %v5996 = vsel %vm797, %v5862, %v5864
      %v5997 = vsel %vm797, %v5866, %v5868
      %v5998 = vsel %vm797, %v5868, %v5870
      %v5999 = vsel %vm797, %v5872, %v5874
      %v6000 = vsel %vm797, %v5874, %v5876
      %v6001 = vsel %vm797, %v5878, %v5880
      %v6002 = vsel %vm797, %v5880, %v5882
      %v6003 = vsel %vm797, %v5884, %v5886
      %v6004 = vsel %vm797, %v5886, %v5888
      %v6005 = vsel %vm797, %v5890, %v5892
      %v6006 = vsel %vm797, %v5892, %v5894
      %v6007 = vsel %vm797, %v5896, %v5898
      %v6008 = vsel %vm797, %v5898, %v5900
      %v6009 = vsel %vm797, %v5902, %v5904
      %v6010 = vsel %vm797, %v5904, %v5906
      %v6011 = vsel %vm797, %v5908, %v5910
      %v6012 = vsel %vm797, %v5910, %v5912
      %v6013 = vsel %vm797, %v5914, %v5916
      %v6014 = vsel %vm797, %v5916, %v5918
      %v6015 = vsel %vm797, %v5920, %v5922
      %v6016 = vsel %vm797, %v5922, %v5924
      %v6017 = vsel %vm797, %v5926, %v5928
      %v6018 = vsel %vm797, %v5928, %v5930
      %v6019 = vsel %vm797, %v5932, %v5934
      %v6020 = vsel %vm797, %v5934, %v5936
      %v6021 = vsel %vm797, %v5938, %v5940
      %v6022 = vsel %vm797, %v5940, %v5942
      %v6023 = vsel %vm797, %v5944, %v5946
      %v6024 = vsel %vm797, %v5946, %v5948
      %v6025 = vsel %vm797, %v5950, %v5952
      %v6026 = vsel %vm797, %v5952, %v5954
      %v6135 = vld [vmem:[%s9] sm:$0xff]
      %6137 = vset.pattern.permute.xlu0 0
      %6138 = vperm.xlu0 %6137, %v6135
      %v6139 = vpop.permute.xlu0 %6138
      %v6142 = vsel %vm2353, %v5018, 0
      %6144 = vmatpush.msra.mxu0 %v5145
      %6145 = vmatpush.msra.mxu0 %v5143
      %6146 = vmatpush.msra.mxu0 %v5141
      %6147 = vmatpush.msra.mxu0 %v5139
      %6148 = vmatpush.msra.mxu0 %v5101
      %6149 = vmatpush.msra.mxu0 %v5099
      %6150 = vmatpush.msra.mxu0 %v5097
      %6151 = vmatpush.msra.mxu0 %v5095
      %6152 = vmatpush.msra.mxu0 %v5057
      %6153 = vmatpush.msra.mxu0 %v5055
      %6154 = vmatpush.msra.mxu0 %v5053
      %6155 = vmatpush.msra.mxu0 %v5051
      %6156 = vmatpush.msra.mxu0 %v5007
      %6157 = vmatpush.msra.mxu0 %v5006
      %6158 = vmatpush.msra.mxu0 %v5005
      %6159 = vmatpush.msra.mxu0 %v5004
      %6160 = vmatmul.f32.gmra.mxu0 %v5012
      %v6161 = vpop.f32.mrf.mxu0
      %v6162 = vadd.f32 %v6139, %v6161
      %6163 = vdwg.mxu0
      %6164 = vmatpush.msra.mxu0 %v5321
      %6165 = vmatpush.msra.mxu0 %v5319
      %6166 = vmatpush.msra.mxu0 %v5317
      %6167 = vmatpush.msra.mxu0 %v5315
      %6168 = vmatpush.msra.mxu0 %v5277
      %6169 = vmatpush.msra.mxu0 %v5275
      %6170 = vmatpush.msra.mxu0 %v5273
      %6171 = vmatpush.msra.mxu0 %v5271
      %6172 = vmatpush.msra.mxu0 %v5233
      %6173 = vmatpush.msra.mxu0 %v5231
      %6174 = vmatpush.msra.mxu0 %v5229
      %6175 = vmatpush.msra.mxu0 %v5227
      %6176 = vmatpush.msra.mxu0 %v5189
      %6177 = vmatpush.msra.mxu0 %v5187
      %6178 = vmatpush.msra.mxu0 %v5185
      %6179 = vmatpush.msra.mxu0 %v5183
      %6180 = vmatmul.f32.gmra.mxu0 %v5013
      %v6181 = vpop.f32.mrf.mxu0
      %v6182 = vadd.f32 %v6162, %v6181
      %6183 = vdwg.mxu0
      %6184 = vmatpush.msra.mxu0 %v5497
      %6185 = vmatpush.msra.mxu0 %v5495
      %6186 = vmatpush.msra.mxu0 %v5493
      %6187 = vmatpush.msra.mxu0 %v5491
      %6188 = vmatpush.msra.mxu0 %v5453
      %6189 = vmatpush.msra.mxu0 %v5451
      %6190 = vmatpush.msra.mxu0 %v5449
      %6191 = vmatpush.msra.mxu0 %v5447
      %6192 = vmatpush.msra.mxu0 %v5409
      %6193 = vmatpush.msra.mxu0 %v5407
      %6194 = vmatpush.msra.mxu0 %v5405
      %6195 = vmatpush.msra.mxu0 %v5403
      %6196 = vmatpush.msra.mxu0 %v5365
      %6197 = vmatpush.msra.mxu0 %v5363
      %6198 = vmatpush.msra.mxu0 %v5361
      %6199 = vmatpush.msra.mxu0 %v5359
      %6200 = vmatmul.f32.gmra.mxu0 %v5014
      %v6201 = vpop.f32.mrf.mxu0
      %v6202 = vadd.f32 %v6182, %v6201
      %6203 = vdwg.mxu0
      %6204 = vmatpush.msra.mxu0 %v5673
      %6205 = vmatpush.msra.mxu0 %v5671
      %6206 = vmatpush.msra.mxu0 %v5669
      %6207 = vmatpush.msra.mxu0 %v5667
      %6208 = vmatpush.msra.mxu0 %v5629
      %6209 = vmatpush.msra.mxu0 %v5627
      %6210 = vmatpush.msra.mxu0 %v5625
      %6211 = vmatpush.msra.mxu0 %v5623
      %6212 = vmatpush.msra.mxu0 %v5585
      %6213 = vmatpush.msra.mxu0 %v5583
      %6214 = vmatpush.msra.mxu0 %v5581
      %6215 = vmatpush.msra.mxu0 %v5579
      %6216 = vmatpush.msra.mxu0 %v5541
      %6217 = vmatpush.msra.mxu0 %v5539
      %6218 = vmatpush.msra.mxu0 %v5537
      %6219 = vmatpush.msra.mxu0 %v5535
      %6220 = vmatmul.f32.gmra.mxu0 %v5015
      %v6221 = vpop.f32.mrf.mxu0
      %v6222 = vadd.f32 %v6202, %v6221
      %6223 = vdwg.mxu0
      %6224 = vmatpush.msra.mxu0 %v5985
      %6225 = vmatpush.msra.mxu0 %v5983
      %6226 = vmatpush.msra.mxu0 %v5981
      %6227 = vmatpush.msra.mxu0 %v5979
      %6228 = vmatpush.msra.mxu0 %v5977
      %6229 = vmatpush.msra.mxu0 %v5975
      %6230 = vmatpush.msra.mxu0 %v5973
      %6231 = vmatpush.msra.mxu0 %v5971
      %6232 = vmatpush.msra.mxu0 %v5969
      %6233 = vmatpush.msra.mxu0 %v5967
      %6234 = vmatpush.msra.mxu0 %v5965
      %6235 = vmatpush.msra.mxu0 %v5963
      %6236 = vmatpush.msra.mxu0 %v5961
      %6237 = vmatpush.msra.mxu0 %v5959
      %6238 = vmatpush.msra.mxu0 %v5957
      %6239 = vmatpush.msra.mxu0 %v5955
      %6240 = vmatmul.f32.gmra.mxu0 %v5016
      %v6241 = vpop.f32.mrf.mxu0
      %v6242 = vadd.f32 %v6222, %v6241
      %6243 = vdwg.mxu0
      %6244 = vmatpush.msra.mxu0 %v6017
      %6245 = vmatpush.msra.mxu0 %v6015
      %6246 = vmatpush.msra.mxu0 %v6013
      %6247 = vmatpush.msra.mxu0 %v6011
      %6248 = vmatpush.msra.mxu0 %v6009
      %6249 = vmatpush.msra.mxu0 %v6007
      %6250 = vmatpush.msra.mxu0 %v6005
      %6251 = vmatpush.msra.mxu0 %v6003
      %6252 = vmatpush.msra.mxu0 %v6001
      %6253 = vmatpush.msra.mxu0 %v5999
      %6254 = vmatpush.msra.mxu0 %v5997
      %6255 = vmatpush.msra.mxu0 %v5995
      %6256 = vmatpush.msra.mxu0 %v5993
      %6257 = vmatpush.msra.mxu0 %v5991
      %6258 = vmatpush.msra.mxu0 %v5989
      %6259 = vmatpush.msra.mxu0 %v5987
      %6260 = vmatmul.f32.gmra.mxu0 %v5017
      %v6261 = vpop.f32.mrf.mxu0
      %v6262 = vadd.f32 %v6242, %v6261
      %6263 = vdwg.mxu0
      %6264 = vmatpush.msra.mxu0 0.0
      %6265 = vmatpush.msra.mxu0 0.0
      %6266 = vmatpush.msra.mxu0 0.0
      %6267 = vmatpush.msra.mxu0 0.0
      %6268 = vmatpush.msra.mxu0 0.0
      %6269 = vmatpush.msra.mxu0 0.0
      %6270 = vmatpush.msra.mxu0 0.0
      %6271 = vmatpush.msra.mxu0 0.0
      %6272 = vmatpush.msra.mxu0 0.0
      %6273 = vmatpush.msra.mxu0 0.0
      %6274 = vmatpush.msra.mxu0 0.0
      %6275 = vmatpush.msra.mxu0 0.0
      %6276 = vmatpush.msra.mxu0 %v6025
      %6277 = vmatpush.msra.mxu0 %v6023
      %6278 = vmatpush.msra.mxu0 %v6021
      %6279 = vmatpush.msra.mxu0 %v6019
      %6280 = vmatmul.f32.gmra.mxu0 %v6142
      %v6281 = vpop.f32.mrf.mxu0
      %v6282 = vadd.f32 %v6262, %v6281
      %6283 = vdwg.mxu0
      %6284 = vmatpush.msra.mxu0 %v5146
      %6285 = vmatpush.msra.mxu0 %v5144
      %6286 = vmatpush.msra.mxu0 %v5142
      %6287 = vmatpush.msra.mxu0 %v5140
      %6288 = vmatpush.msra.mxu0 %v5102
      %6289 = vmatpush.msra.mxu0 %v5100
      %6290 = vmatpush.msra.mxu0 %v5098
      %6291 = vmatpush.msra.mxu0 %v5096
      %6292 = vmatpush.msra.mxu0 %v5058
      %6293 = vmatpush.msra.mxu0 %v5056
      %6294 = vmatpush.msra.mxu0 %v5054
      %6295 = vmatpush.msra.mxu0 %v5052
      %6296 = vmatpush.msra.mxu0 %v4990
      %6297 = vmatpush.msra.mxu0 %v4988
      %6298 = vmatpush.msra.mxu0 %v4986
      %6299 = vmatpush.msra.mxu0 %v4984
      %6300 = vmatmul.f32.gmra.mxu0 %v5012
      %v6301 = vpop.f32.mrf.mxu0
      %v6302 = vadd.f32 %v6139, %v6301
      %6303 = vdwg.mxu0
      %6304 = vmatpush.msra.mxu0 %v5322
      %6305 = vmatpush.msra.mxu0 %v5320
      %6306 = vmatpush.msra.mxu0 %v5318
      %6307 = vmatpush.msra.mxu0 %v5316
      %6308 = vmatpush.msra.mxu0 %v5278
      %6309 = vmatpush.msra.mxu0 %v5276
      %6310 = vmatpush.msra.mxu0 %v5274
      %6311 = vmatpush.msra.mxu0 %v5272
      %6312 = vmatpush.msra.mxu0 %v5234
      %6313 = vmatpush.msra.mxu0 %v5232
      %6314 = vmatpush.msra.mxu0 %v5230
      %6315 = vmatpush.msra.mxu0 %v5228
      %6316 = vmatpush.msra.mxu0 %v5190
      %6317 = vmatpush.msra.mxu0 %v5188
      %6318 = vmatpush.msra.mxu0 %v5186
      %6319 = vmatpush.msra.mxu0 %v5184
      %6320 = vmatmul.f32.gmra.mxu0 %v5013
      %v6321 = vpop.f32.mrf.mxu0
      %v6322 = vadd.f32 %v6302, %v6321
      %6323 = vdwg.mxu0
      %6324 = vmatpush.msra.mxu0 %v5498
      %6325 = vmatpush.msra.mxu0 %v5496
      %6326 = vmatpush.msra.mxu0 %v5494
      %6327 = vmatpush.msra.mxu0 %v5492
      %6328 = vmatpush.msra.mxu0 %v5454
      %6329 = vmatpush.msra.mxu0 %v5452
      %6330 = vmatpush.msra.mxu0 %v5450
      %6331 = vmatpush.msra.mxu0 %v5448
      %6332 = vmatpush.msra.mxu0 %v5410
      %6333 = vmatpush.msra.mxu0 %v5408
      %6334 = vmatpush.msra.mxu0 %v5406
      %6335 = vmatpush.msra.mxu0 %v5404
      %6336 = vmatpush.msra.mxu0 %v5366
      %6337 = vmatpush.msra.mxu0 %v5364
      %6338 = vmatpush.msra.mxu0 %v5362
      %6339 = vmatpush.msra.mxu0 %v5360
      %6340 = vmatmul.f32.gmra.mxu0 %v5014
      %v6341 = vpop.f32.mrf.mxu0
      %v6342 = vadd.f32 %v6322, %v6341
      %6343 = vdwg.mxu0
      %6344 = vmatpush.msra.mxu0 %v5674
      %6345 = vmatpush.msra.mxu0 %v5672
      %6346 = vmatpush.msra.mxu0 %v5670
      %6347 = vmatpush.msra.mxu0 %v5668
      %6348 = vmatpush.msra.mxu0 %v5630
      %6349 = vmatpush.msra.mxu0 %v5628
      %6350 = vmatpush.msra.mxu0 %v5626
      %6351 = vmatpush.msra.mxu0 %v5624
      %6352 = vmatpush.msra.mxu0 %v5586
      %6353 = vmatpush.msra.mxu0 %v5584
      %6354 = vmatpush.msra.mxu0 %v5582
      %6355 = vmatpush.msra.mxu0 %v5580
      %6356 = vmatpush.msra.mxu0 %v5542
      %6357 = vmatpush.msra.mxu0 %v5540
      %6358 = vmatpush.msra.mxu0 %v5538
      %6359 = vmatpush.msra.mxu0 %v5536
      %6360 = vmatmul.f32.gmra.mxu0 %v5015
      %v6361 = vpop.f32.mrf.mxu0
      %v6362 = vadd.f32 %v6342, %v6361
      %6363 = vdwg.mxu0
      %6364 = vmatpush.msra.mxu0 %v5986
      %6365 = vmatpush.msra.mxu0 %v5984
      %6366 = vmatpush.msra.mxu0 %v5982
      %6367 = vmatpush.msra.mxu0 %v5980
      %6368 = vmatpush.msra.mxu0 %v5978
      %6369 = vmatpush.msra.mxu0 %v5976
      %6370 = vmatpush.msra.mxu0 %v5974
      %6371 = vmatpush.msra.mxu0 %v5972
      %6372 = vmatpush.msra.mxu0 %v5970
      %6373 = vmatpush.msra.mxu0 %v5968
      %6374 = vmatpush.msra.mxu0 %v5966
      %6375 = vmatpush.msra.mxu0 %v5964
      %6376 = vmatpush.msra.mxu0 %v5962
      %6377 = vmatpush.msra.mxu0 %v5960
      %6378 = vmatpush.msra.mxu0 %v5958
      %6379 = vmatpush.msra.mxu0 %v5956
      %6380 = vmatmul.f32.gmra.mxu0 %v5016
      %v6381 = vpop.f32.mrf.mxu0
      %v6382 = vadd.f32 %v6362, %v6381
      %6383 = vdwg.mxu0
      %6384 = vmatpush.msra.mxu0 %v6018
      %6385 = vmatpush.msra.mxu0 %v6016
      %6386 = vmatpush.msra.mxu0 %v6014
      %6387 = vmatpush.msra.mxu0 %v6012
      %6388 = vmatpush.msra.mxu0 %v6010
      %6389 = vmatpush.msra.mxu0 %v6008
      %6390 = vmatpush.msra.mxu0 %v6006
      %6391 = vmatpush.msra.mxu0 %v6004
      %6392 = vmatpush.msra.mxu0 %v6002
      %6393 = vmatpush.msra.mxu0 %v6000
      %6394 = vmatpush.msra.mxu0 %v5998
      %6395 = vmatpush.msra.mxu0 %v5996
      %6396 = vmatpush.msra.mxu0 %v5994
      %6397 = vmatpush.msra.mxu0 %v5992
      %6398 = vmatpush.msra.mxu0 %v5990
      %6399 = vmatpush.msra.mxu0 %v5988
      %6400 = vmatmul.f32.gmra.mxu0 %v5017
      %v6401 = vpop.f32.mrf.mxu0
      %v6402 = vadd.f32 %v6382, %v6401
      %6403 = vdwg.mxu0
      %6404 = vmatpush.msra.mxu0 0.0
      %6405 = vmatpush.msra.mxu0 0.0
      %6406 = vmatpush.msra.mxu0 0.0
      %6407 = vmatpush.msra.mxu0 0.0
      %6408 = vmatpush.msra.mxu0 0.0
      %6409 = vmatpush.msra.mxu0 0.0
      %6410 = vmatpush.msra.mxu0 0.0
      %6411 = vmatpush.msra.mxu0 0.0
      %6412 = vmatpush.msra.mxu0 0.0
      %6413 = vmatpush.msra.mxu0 0.0
      %6414 = vmatpush.msra.mxu0 0.0
      %6415 = vmatpush.msra.mxu0 0.0
      %6416 = vmatpush.msra.mxu0 %v6026
      %6417 = vmatpush.msra.mxu0 %v6024
      %6418 = vmatpush.msra.mxu0 %v6022
      %6419 = vmatpush.msra.mxu0 %v6020
      %6420 = vmatmul.f32.gmra.mxu0 %v6142
      %v6421 = vpop.f32.mrf.mxu0
      %v6422 = vadd.f32 %v6402, %v6421
      %6423 = vdwg.mxu0
      %6424 = vmatpush.msra.mxu0 %v5138
      %6425 = vmatpush.msra.mxu0 %v5132
      %6426 = vmatpush.msra.mxu0 %v5126
      %6427 = vmatpush.msra.mxu0 %v5120
      %6428 = vmatpush.msra.mxu0 %v5094
      %6429 = vmatpush.msra.mxu0 %v5088
      %6430 = vmatpush.msra.mxu0 %v5082
      %6431 = vmatpush.msra.mxu0 %v5076
      %6432 = vmatpush.msra.mxu0 %v5050
      %6433 = vmatpush.msra.mxu0 %v5044
      %6434 = vmatpush.msra.mxu0 %v5038
      %6435 = vmatpush.msra.mxu0 %v5032
      %6436 = vmatpush.msra.mxu0 %v5011
      %6437 = vmatpush.msra.mxu0 %v5010
      %6438 = vmatpush.msra.mxu0 %v5009
      %6439 = vmatpush.msra.mxu0 %v5008
      %6440 = vmatmul.f32.gmra.mxu0 %v5012
      %v6441 = vpop.f32.mrf.mxu0
      %v6442 = vadd.f32 %v6139, %v6441
      %6443 = vdwg.mxu0
      %6444 = vmatpush.msra.mxu0 %v5314
      %6445 = vmatpush.msra.mxu0 %v5308
      %6446 = vmatpush.msra.mxu0 %v5302
      %6447 = vmatpush.msra.mxu0 %v5296
      %6448 = vmatpush.msra.mxu0 %v5270
      %6449 = vmatpush.msra.mxu0 %v5264
      %6450 = vmatpush.msra.mxu0 %v5258
      %6451 = vmatpush.msra.mxu0 %v5252
      %6452 = vmatpush.msra.mxu0 %v5226
      %6453 = vmatpush.msra.mxu0 %v5220
      %6454 = vmatpush.msra.mxu0 %v5214
      %6455 = vmatpush.msra.mxu0 %v5208
      %6456 = vmatpush.msra.mxu0 %v5182
      %6457 = vmatpush.msra.mxu0 %v5176
      %6458 = vmatpush.msra.mxu0 %v5170
      %6459 = vmatpush.msra.mxu0 %v5164
      %6460 = vmatmul.f32.gmra.mxu0 %v5013
      %v6461 = vpop.f32.mrf.mxu0
      %v6462 = vadd.f32 %v6442, %v6461
      %6463 = vdwg.mxu0
      %6464 = vmatpush.msra.mxu0 %v5490
      %6465 = vmatpush.msra.mxu0 %v5484
      %6466 = vmatpush.msra.mxu0 %v5478
      %6467 = vmatpush.msra.mxu0 %v5472
      %6468 = vmatpush.msra.mxu0 %v5446
      %6469 = vmatpush.msra.mxu0 %v5440
      %6470 = vmatpush.msra.mxu0 %v5434
      %6471 = vmatpush.msra.mxu0 %v5428
      %6472 = vmatpush.msra.mxu0 %v5402
      %6473 = vmatpush.msra.mxu0 %v5396
      %6474 = vmatpush.msra.mxu0 %v5390
      %6475 = vmatpush.msra.mxu0 %v5384
      %6476 = vmatpush.msra.mxu0 %v5358
      %6477 = vmatpush.msra.mxu0 %v5352
      %6478 = vmatpush.msra.mxu0 %v5346
      %6479 = vmatpush.msra.mxu0 %v5340
      %6480 = vmatmul.f32.gmra.mxu0 %v5014
      %v6481 = vpop.f32.mrf.mxu0
      %v6482 = vadd.f32 %v6462, %v6481
      %6483 = vdwg.mxu0
      %6484 = vmatpush.msra.mxu0 %v5666
      %6485 = vmatpush.msra.mxu0 %v5660
      %6486 = vmatpush.msra.mxu0 %v5654
      %6487 = vmatpush.msra.mxu0 %v5648
      %6488 = vmatpush.msra.mxu0 %v5622
      %6489 = vmatpush.msra.mxu0 %v5616
      %6490 = vmatpush.msra.mxu0 %v5610
      %6491 = vmatpush.msra.mxu0 %v5604
      %6492 = vmatpush.msra.mxu0 %v5578
      %6493 = vmatpush.msra.mxu0 %v5572
      %6494 = vmatpush.msra.mxu0 %v5566
      %6495 = vmatpush.msra.mxu0 %v5560
      %6496 = vmatpush.msra.mxu0 %v5534
      %6497 = vmatpush.msra.mxu0 %v5528
      %6498 = vmatpush.msra.mxu0 %v5522
      %6499 = vmatpush.msra.mxu0 %v5516
      %6500 = vmatmul.f32.gmra.mxu0 %v5015
      %v6501 = vpop.f32.mrf.mxu0
      %v6502 = vadd.f32 %v6482, %v6501
      %6503 = vdwg.mxu0
      %6504 = vmatpush.msra.mxu0 %v5834
      %6505 = vmatpush.msra.mxu0 %v5828
      %6506 = vmatpush.msra.mxu0 %v5822
      %6507 = vmatpush.msra.mxu0 %v5816
      %6508 = vmatpush.msra.mxu0 %v5810
      %6509 = vmatpush.msra.mxu0 %v5804
      %6510 = vmatpush.msra.mxu0 %v5798
      %6511 = vmatpush.msra.mxu0 %v5792
      %6512 = vmatpush.msra.mxu0 %v5786
      %6513 = vmatpush.msra.mxu0 %v5780
      %6514 = vmatpush.msra.mxu0 %v5774
      %6515 = vmatpush.msra.mxu0 %v5768
      %6516 = vmatpush.msra.mxu0 %v5762
      %6517 = vmatpush.msra.mxu0 %v5756
      %6518 = vmatpush.msra.mxu0 %v5750
      %6519 = vmatpush.msra.mxu0 %v5744
      %6520 = vmatmul.f32.gmra.mxu0 %v5016
      %v6521 = vpop.f32.mrf.mxu0
      %v6522 = vadd.f32 %v6502, %v6521
      %6523 = vdwg.mxu0
      %6524 = vmatpush.msra.mxu0 %v5930
      %6525 = vmatpush.msra.mxu0 %v5924
      %6526 = vmatpush.msra.mxu0 %v5918
      %6527 = vmatpush.msra.mxu0 %v5912
      %6528 = vmatpush.msra.mxu0 %v5906
      %6529 = vmatpush.msra.mxu0 %v5900
      %6530 = vmatpush.msra.mxu0 %v5894
      %6531 = vmatpush.msra.mxu0 %v5888
      %6532 = vmatpush.msra.mxu0 %v5882
      %6533 = vmatpush.msra.mxu0 %v5876
      %6534 = vmatpush.msra.mxu0 %v5870
      %6535 = vmatpush.msra.mxu0 %v5864
      %6536 = vmatpush.msra.mxu0 %v5858
      %6537 = vmatpush.msra.mxu0 %v5852
      %6538 = vmatpush.msra.mxu0 %v5846
      %6539 = vmatpush.msra.mxu0 %v5840
      %6540 = vmatmul.f32.gmra.mxu0 %v5017
      %v6541 = vpop.f32.mrf.mxu0
      %v6542 = vadd.f32 %v6522, %v6541
      %6543 = vdwg.mxu0
      %6544 = vmatpush.msra.mxu0 0.0
      %6545 = vmatpush.msra.mxu0 0.0
      %6546 = vmatpush.msra.mxu0 0.0
      %6547 = vmatpush.msra.mxu0 0.0
      %6548 = vmatpush.msra.mxu0 0.0
      %6549 = vmatpush.msra.mxu0 0.0
      %6550 = vmatpush.msra.mxu0 0.0
      %6551 = vmatpush.msra.mxu0 0.0
      %6552 = vmatpush.msra.mxu0 0.0
      %6553 = vmatpush.msra.mxu0 0.0
      %6554 = vmatpush.msra.mxu0 0.0
      %6555 = vmatpush.msra.mxu0 0.0
      %6556 = vmatpush.msra.mxu0 %v5954
      %6557 = vmatpush.msra.mxu0 %v5948
      %6558 = vmatpush.msra.mxu0 %v5942
      %6559 = vmatpush.msra.mxu0 %v5936
      %6560 = vmatmul.f32.gmra.mxu0 %v6142
      %v6561 = vpop.f32.mrf.mxu0
      %v6562 = vadd.f32 %v6542, %v6561
      %6563 = vdwg.mxu0
      %v6564 = vmul.f32 %v6282, %v1091
      %v6565 = vmul.f32 %v6422, %v1092
      %v6566 = vmul.f32 %v6562, %v1093
      %v6567 = vadd.f32 %v6564, %v6565
      %vm6568 = vcmask 523264
      %v6569 = vsel %vm6568, %v6566, 0.0
      %v6570 = vadd.f32 %v6567, %v6569
      %6571 = vadd.xlane.f32.xlu0 %v6570
      %v6572 = vpop.xlane.xlu0 %6571
      %v6573 = vmul.f32 %v6572, 0.00390625
      %v6574 = vld [vmem:[%s10] sm:$0xff]
      %v6575 = vmul.f32 %v6574, %v6573
      %vm6576 = vcmask 31744
      %v6577 = vsel %vm6576, %v6575, 0.0
      %v6578 = vrot.slane %v6577, 4
      %v6579 = vadd.f32 %v6577, %v6578
      %v6580 = vrot.slane %v6579, 2
      %v6581 = vadd.f32 %v6579, %v6580
      %v6582 = vrot.slane %v6581, 1
      %v6583 = vadd.f32 %v6581, %v6582
      %v6584 = vld [vmem:[%s11] sm:$0x1]
      %v6585 = vadd.f32 %v6583, %v6584
      %v6586 = vmax.f32 %v6585, 0.0
      %v6587 = vld [vmem:[%s12] sm:$0xff]
      %v6588 = vperm.slane %v6586, 0
      %v6589 = vmul.f32 %v6587, %v6588
      %v6590 = vsel %vm6576, %v6589, 0.0
      %6591 = vadd.xlane.f32.xlu0 %v6590
      %v6592 = vpop.xlane.xlu0 %6591
      %v6593 = vld [vmem:[%s13] sm:$0xff]
      %v6594 = vadd.f32 %v6592, %v6593
      %v6595 = vxor.u32 %v6594, 2147483648
      %v6596 = vmul.f32 %v6595, 1.442695
      %v6597 = vpow.pop %v6596
      %v6598 = vadd.f32 %v6597, 1.0
      %v6599 = vrcp.pop %v6598
      %v6600 = vmul.f32 %v6598, %v6599
      %v6601 = vsub.f32 1.0, %v6600
      %v6602 = vmul.f32 %v6599, %v6601
      %v6603 = vadd.f32 %v6599, %v6602
      %vm6604 = vweird.f32 %v6598
      %vm6605 = vweird.f32 %v6599
      %vm6606 = vmor %vm6604, %vm6605
      %v6607 = vsel %vm6606, %v6599, %v6603
      %v6608 = vand.u32 2147483647, %v6598
      %vm6609 = vcmp.eq.f32.partialorder %v6608, 8.507059e+37
      %v6610 = vand.u32 %v6598, 2147483648
      %v6611 = vor.u32 1.1754944e-38, %v6610
      %v6612 = vsel %vm6609, %v6611, %v6607
      %v6613 = vmul.f32 1.0, %v6612
      %6615 = vset.pattern.permute.xlu0 0
      %6616 = vperm.xlu0 %6615, %v6613
      %v6617 = vpop.permute.xlu0 %6616
      %v6619 = vmul.f32 %v6282, %v6617
      %v6620 = vmul.f32 %v6422, %v6617
      %v6621 = vmul.f32 %v6562, %v6617
      %vm6622 = vcmp.ge.f32.partialorder %v6619, 0.0
      %vm6623 = vcmp.ge.f32.partialorder %v6620, 0.0
      %vm6624 = vcmp.ge.f32.partialorder %v6621, 0.0
      %v6625 = vmul.f32 %v6619, 0.2
      %v6626 = vmul.f32 %v6620, 0.2
      %v6627 = vmul.f32 %v6621, 0.2
      %v6628 = vsel %vm6622, %v6619, %v6625
      %v6629 = vsel %vm6623, %v6620, %v6626
      %v6630 = vsel %vm6624, %v6621, %v6627
      %v6631 = vld [vmem:[%s14] sm:$0x7]
      %v6632 = vld [vmem:[%s15] sm:$0x7]
      %6634 = vset.pattern.permute.xlu0 0
      %6635 = vperm.xlu0 %6634, %v6632
      %v6636 = vpop.permute.xlu0 %6635
      %vm6638 = vcmask 64512
      %v6640 = vsel %vm6638, %v6631, 0
      %6642 = vmatpush.msra.mxu0 0.0
      %6643 = vmatpush.msra.mxu0 0.0
      %6644 = vmatpush.msra.mxu0 0.0
      %6645 = vmatpush.msra.mxu0 0.0
      %6646 = vmatpush.msra.mxu0 0.0
      %6647 = vmatpush.msra.mxu0 0.0
      %6648 = vmatpush.msra.mxu0 0.0
      %6649 = vmatpush.msra.mxu0 0.0
      %6650 = vmatpush.msra.mxu0 0.0
      %6651 = vmatpush.msra.mxu0 0.0
      %6652 = vmatpush.msra.mxu0 0.0
      %6653 = vmatpush.msra.mxu0 0.0
      %6654 = vmatpush.msra.mxu0 0.0
      %6655 = vmatpush.msra.mxu0 0.0
      %6656 = vmatpush.msra.mxu0 0.0
      %6657 = vmatpush.msra.mxu0 %v6628
      %6658 = vmatmul.f32.gmra.mxu0 %v6640
      %v6659 = vpop.f32.mrf.mxu0
      %v6660 = vadd.f32 %v6636, %v6659
      %6661 = vdwg.mxu0
      %6662 = vmatpush.msra.mxu0 0.0
      %6663 = vmatpush.msra.mxu0 0.0
      %6664 = vmatpush.msra.mxu0 0.0
      %6665 = vmatpush.msra.mxu0 0.0
      %6666 = vmatpush.msra.mxu0 0.0
      %6667 = vmatpush.msra.mxu0 0.0
      %6668 = vmatpush.msra.mxu0 0.0
      %6669 = vmatpush.msra.mxu0 0.0
      %6670 = vmatpush.msra.mxu0 0.0
      %6671 = vmatpush.msra.mxu0 0.0
      %6672 = vmatpush.msra.mxu0 0.0
      %6673 = vmatpush.msra.mxu0 0.0
      %6674 = vmatpush.msra.mxu0 0.0
      %6675 = vmatpush.msra.mxu0 0.0
      %6676 = vmatpush.msra.mxu0 0.0
      %6677 = vmatpush.msra.mxu0 %v6629
      %6678 = vmatmul.f32.gmra.mxu0 %v6640
      %v6679 = vpop.f32.mrf.mxu0
      %v6680 = vadd.f32 %v6636, %v6679
      %6681 = vdwg.mxu0
      %6682 = vmatpush.msra.mxu0 0.0
      %6683 = vmatpush.msra.mxu0 0.0
      %6684 = vmatpush.msra.mxu0 0.0
      %6685 = vmatpush.msra.mxu0 0.0
      %6686 = vmatpush.msra.mxu0 0.0
      %6687 = vmatpush.msra.mxu0 0.0
      %6688 = vmatpush.msra.mxu0 0.0
      %6689 = vmatpush.msra.mxu0 0.0
      %6690 = vmatpush.msra.mxu0 0.0
      %6691 = vmatpush.msra.mxu0 0.0
      %6692 = vmatpush.msra.mxu0 0.0
      %6693 = vmatpush.msra.mxu0 0.0
      %6694 = vmatpush.msra.mxu0 0.0
      %6695 = vmatpush.msra.mxu0 0.0
      %6696 = vmatpush.msra.mxu0 0.0
      %6697 = vmatpush.msra.mxu0 %v6630
      %6698 = vmatmul.f32.gmra.mxu0 %v6640
      %v6699 = vpop.f32.mrf.mxu0
      %v6700 = vadd.f32 %v6636, %v6699
      %6701 = vdwg.mxu0
      %v6704 = vrot.slane %v6680, 4
      %vm6705 = vcmask 1043456
      %v6706 = vsel %vm6705, %v6660, %v6704
      %6708 = vst [vmem:[%s521] sm:$0x77] %v6706
      %vm6709 = vcmask 518144
      %6710 = vst.msk [vmem:[%s521 + $0x8] sm:$0x7] %vm6709, %v6700
      %p6711 = scmp.lt.s32.totalorder %s27, 1
      %s6712 = scalar_select %p6711, %s27, 1
      %s6713 = smul.addr %s6712, 3
      %s6714 = smul.addr %s6713, 4
      %s6715 = scalar_lea.vmem %s16, %s6714
      // Predicated region
      $region85: #{dsen_forward.1} parent=83 // pred_check
        %p6716 = pneg %p386
      $region86: #{dsen_forward.1} parent=83 // pred_check_branch
        %6718 = sbr.rel (%p6716) target = $region88
      $region87: #{dsen_forward.1} parent=83 // pred_region
        _
      $region88: #{dsen_forward.1} parent=83 // pred_fallthru
        _
    $region84: #{dsen_forward.1} parent=5 // pred_fallthru
      _
    %p6719 = scmp.le.s32.totalorder 2, %s22
    // Predicated region
    $region89: #{dsen_forward.1} parent=5 // pred_check
      %p6720 = pneg %p6719
    $region90: #{dsen_forward.1} parent=5 // pred_check_branch
      %6722 = sbr.rel (%p6720) target = $region92
    $region91: #{dsen_forward.1} parent=5 // pred_region
      %s6723 = ssub.s32 %s22, 2
      // Predicated region
      $region93: #{dsen_forward.1} parent=91 // pred_check
        %p6724 = pneg %p392
      $region94: #{dsen_forward.1} parent=91 // pred_check_branch
        %6726 = sbr.rel (%p6724) target = $region96
      $region95: #{dsen_forward.1} parent=91 // pred_region
        %p6727 = scmp.lt.s32.totalorder %s28, 1
        %s6728 = scalar_select %p6727, %s28, 1
        %s6729 = smul.addr %s6728, 3
        %s6730 = smul.addr %s6729, 4
        %s6731 = scalar_lea.vmem %s16, %s6730
      $region96: #{dsen_forward.1} parent=91 // pred_fallthru
        _
    $region92: #{dsen_forward.1} parent=5 // pred_fallthru
      _
  $region6: #{dsen_forward.1} parent=0 // loop_footer
    %s26 = sadd.s32 1, %s22
  $region7: #{dsen_forward.1} parent=0 // loop_footer_branch
    %21 = sbr.rel target = $region3
  $region8: #{dsen_forward.1} parent=0 // loop_exit
    _

</llo_original>
